<compile_context>
chip_gen: v7x
topology: tpu7x:2x2x1
jax: 0.10.0
libtpu: 0.0.40
codegen_flags: <defaults>
</compile_context>

<pallas_src>
import functools

import jax
import jax.numpy as jnp
from jax.experimental import pallas as pl
from jax.experimental.pallas import tpu as pltpu


def _sigmoid(z):
    # sigmoid(z) = 0.5 * (1 + tanh(z / 2)); tanh runs on the EUP (free slot)
    # and is overflow-safe for large |z|.
    return 0.5 * jnp.tanh(0.5 * z) + 0.5


def cbam_kernel(x_ref, col_ref, row_ref, w1_ref, b1_ref, w2_ref, b2_ref,
                wsp_ref, bsp_ref, bn_ref, out_ref, *, H, W, K):
    x = x_ref[...]                                   # (N, C, HW) f32, lane-dense
    N, C, HW = x.shape
    P = K // 2

    # -------- channel attention: global avg-pool + max-pool over HW --------
    avg_pool = jnp.mean(x, axis=2)                   # (N, C)   lane reduce
    max_pool = jnp.max(x, axis=2)                    # (N, C)
    pooled = avg_pool + max_pool                     # matches mean(x) + max_pool(x)

    # fusion1: 1x1 conv -> ReLU -> 1x1 conv  (two small matmuls; MXU latency is
    # pure overhead at toy sizes but correct, and right at production sizes).
    h = jnp.dot(pooled, w1_ref[...],
                preferred_element_type=jnp.float32) + b1_ref[...]   # (N, mip)
    h = jnp.maximum(h, 0.0)
    ca = _sigmoid(jnp.dot(h, w2_ref[...],
                          preferred_element_type=jnp.float32) + b2_ref[...])  # (N, C)

    # -------- spatial attention: mean & max over channel axis (vector reduce) --------
    mean_c = jnp.mean(x, axis=1)                     # (N, HW)  sublane reduce (XLU)
    max_c = jnp.max(x, axis=1)                       # (N, HW)

    col = col_ref[...]                               # (N, HW) int32: p % W
    row = row_ref[...]                               # (N, HW) int32: p // W

    def shifted(f, shift):
        # shifted[p] = f[p + shift] (circular); wrapped entries are always
        # masked out below, so the wrap never leaks into the result.
        s = (-shift) % HW                            # static python int >= 0
        return f if s == 0 else pltpu.roll(f, s, axis=1)

    # 7x7 conv, 2 -> 1 channels, padding=3, done as 49 rolled+masked taps.
    acc = jnp.zeros((N, HW), jnp.float32)
    for kh in range(K):
        dh = kh - P
        for kw in range(K):
            dw = kw - P
            shift = dh * W + dw
            w_mean = wsp_ref[0 * K * K + kh * K + kw]    # SMEM scalars
            w_max = wsp_ref[1 * K * K + kh * K + kw]
            tap = (w_mean * shifted(mean_c, shift)
                   + w_max * shifted(max_c, shift))      # (N, HW)

            valid = None                                  # zero-padding mask
            if dw < 0:
                valid = col >= -dw
            elif dw > 0:
                valid = col < (W - dw)
            if dh < 0:
                v = row >= -dh
                valid = v if valid is None else (valid & v)
            elif dh > 0:
                v = row < (H - dh)
                valid = v if valid is None else (valid & v)
            if valid is not None:
                tap = jnp.where(valid, tap, 0.0)
            acc = acc + tap
    conv = acc + bsp_ref[0]                           # (N, HW)

    # BatchNorm2d(1), training mode: batch statistics over (N, H, W)
    mu = jnp.mean(conv)
    var = jnp.mean((conv - mu) ** 2)
    sa = _sigmoid((conv - mu) * jax.lax.rsqrt(var + 1e-5) * bn_ref[0] + bn_ref[1])

    # -------- combine: x * channel_gate * spatial_gate (single fused store) --------
    out_ref[...] = x * ca[:, :, None] * sa[:, None, :]


@functools.partial(jax.jit, static_argnames=("kernel_size",))
def cbam_forward(x, w1, b1, w2, b2, wsp, bsp, bn, *, kernel_size=7):
    N, C, H, W = x.shape
    HW = H * W

    # Lane-dense layout: flatten (H, W) -> HW in the wrapper (layout-preserving).
    x2 = x.reshape(N, C, HW)
    p = jnp.arange(HW, dtype=jnp.int32)
    col = jnp.broadcast_to(p % W, (N, HW))
    row = jnp.broadcast_to(p // W, (N, HW))

    vmem = pl.BlockSpec(memory_space=pltpu.MemorySpace.VMEM)
    smem = pl.BlockSpec(memory_space=pltpu.MemorySpace.SMEM)

    kernel = functools.partial(cbam_kernel, H=H, W=W, K=kernel_size)
    out = pl.pallas_call(
        kernel,
        out_shape=jax.ShapeDtypeStruct((N, C, HW), x.dtype),
        in_specs=[vmem, vmem, vmem, vmem, vmem, vmem, vmem, smem, smem, smem],
        out_specs=vmem,
        compiler_params=pltpu.CompilerParams(vmem_limit_bytes=64 * 1024 * 1024),
    )(x2, col, row, w1, b1, w2, b2, wsp, bsp, bn)
    return out.reshape(N, C, H, W)


def init_cbam_params(key, planes, ratio=32, kernel_size=7):
    """Deterministic synthetic parameters matching CBAM.__init__ shapes."""
    mip = max(8, planes // ratio)
    k1, k2, k3, k4, k5, k6 = jax.random.split(key, 6)
    # fusion1.Conv2d(planes -> mip, 1x1): torch weight (mip, planes, 1, 1)
    w1 = 0.1 * jax.random.normal(k1, (mip, planes), jnp.float32)
    b1 = 0.1 * jax.random.normal(k2, (mip,), jnp.float32)
    # fusion1.Conv2d(mip -> planes, 1x1): torch weight (planes, mip, 1, 1)
    w2 = 0.1 * jax.random.normal(k3, (planes, mip), jnp.float32)
    b2 = 0.1 * jax.random.normal(k4, (planes,), jnp.float32)
    # fusion2.Conv2d(2 -> 1, kxk): torch weight (1, 2, k, k), bias (1,)
    wsp = 0.1 * jax.random.normal(k5, (2, kernel_size, kernel_size), jnp.float32)
    bsp = 0.1 * jax.random.normal(k6, (1,), jnp.float32)
    # BatchNorm2d(1): gamma=1, beta=0 (PyTorch default init)
    bn = jnp.array([1.0, 0.0], jnp.float32)
    return dict(
        w1=w1.T,                        # (planes, mip) so pooled @ w1
        b1=b1.reshape(1, mip),
        w2=w2.T,                        # (mip, planes)
        b2=b2.reshape(1, planes),
        wsp=wsp.reshape(-1),            # (2*k*k,) flattened [c, kh, kw]
        bsp=bsp,
        bn=bn,
    )


if __name__ == "__main__":
    N, C, H, W = 2, 4, 16, 16
    key = jax.random.PRNGKey(0)
    kx, kp = jax.random.split(key)
    x = jax.random.normal(kx, (N, C, H, W), jnp.float32)
    p = init_cbam_params(kp, planes=C, ratio=32, kernel_size=7)

    out = cbam_forward(x, p["w1"], p["b1"], p["w2"], p["b2"],
                       p["wsp"], p["bsp"], p["bn"])
    jax.block_until_ready(out)
    assert out.shape == (N, C, H, W) and out.dtype == jnp.float32
    print("KERNEL_OK")
</pallas_src>

<mosaic_0001>
module attributes {stable_mosaic.version = 11 : i64} {
  func.func @cbam_kernel(%arg0: memref<2x4x256xf32, #tpu.memory_space<vmem>>, %arg1: memref<2x256xi32, #tpu.memory_space<vmem>>, %arg2: memref<2x256xi32, #tpu.memory_space<vmem>>, %arg3: memref<4x8xf32, #tpu.memory_space<vmem>>, %arg4: memref<1x8xf32, #tpu.memory_space<vmem>>, %arg5: memref<8x4xf32, #tpu.memory_space<vmem>>, %arg6: memref<1x4xf32, #tpu.memory_space<vmem>>, %arg7: memref<98xf32, #tpu.memory_space<smem>>, %arg8: memref<1xf32, #tpu.memory_space<smem>>, %arg9: memref<2xf32, #tpu.memory_space<smem>>, %arg10: memref<2x4x256xf32, #tpu.memory_space<vmem>>) attributes {dimension_semantics = [], scalar_prefetch = 0 : i64, scratch_operands = 0 : i64, tpu.core_type = #tpu.core_type<tc>} {
    %c0 = arith.constant 0 : index
    %c0_0 = arith.constant 0 : index
    %c0_1 = arith.constant 0 : index
    %0 = vector.load %arg0[%c0, %c0_0, %c0_1] : memref<2x4x256xf32, #tpu.memory_space<vmem>>, vector<2x4x256xf32>
    %cst = arith.constant dense<0.000000e+00> : vector<2x4xf32>
    %1 = vector.multi_reduction <add>, %0, %cst [2] : vector<2x4x256xf32> to vector<2x4xf32>
    %cst_2 = arith.constant 2.560000e+02 : f32
    %2 = vector.broadcast %cst_2 : f32 to vector<2x4xf32>
    %3 = arith.divf %1, %2 : vector<2x4xf32>
    %cst_3 = arith.constant dense<0xFF800000> : vector<2x4xf32>
    %4 = vector.multi_reduction <maximumf>, %0, %cst_3 [2] : vector<2x4x256xf32> to vector<2x4xf32>
    %5 = arith.addf %3, %4 : vector<2x4xf32>
    %c0_4 = arith.constant 0 : index
    %c0_5 = arith.constant 0 : index
    %6 = vector.load %arg3[%c0_4, %c0_5] : memref<4x8xf32, #tpu.memory_space<vmem>>, vector<4x8xf32>
    %cst_6 = arith.constant dense<0.000000e+00> : vector<2x8xf32>
    %7 = tpu.matmul %5, %6, %cst_6 {dimension_numbers = #tpu.dot_dimension_numbers<[1], [0], [0], [1], [0, 0, 1, 1], [], []>} : vector<2x4xf32>, vector<4x8xf32>, vector<2x8xf32> -> vector<2x8xf32>
    %c0_7 = arith.constant 0 : index
    %c0_8 = arith.constant 0 : index
    %8 = vector.load %arg4[%c0_7, %c0_8] : memref<1x8xf32, #tpu.memory_space<vmem>>, vector<1x8xf32>
    %9 = vector.broadcast %8 : vector<1x8xf32> to vector<2x8xf32>
    %10 = arith.addf %7, %9 : vector<2x8xf32>
    %cst_9 = arith.constant 0.000000e+00 : f32
    %11 = vector.broadcast %cst_9 : f32 to vector<2x8xf32>
    %12 = arith.maximumf %10, %11 : vector<2x8xf32>
    %c0_10 = arith.constant 0 : index
    %c0_11 = arith.constant 0 : index
    %13 = vector.load %arg5[%c0_10, %c0_11] : memref<8x4xf32, #tpu.memory_space<vmem>>, vector<8x4xf32>
    %cst_12 = arith.constant dense<0.000000e+00> : vector<2x4xf32>
    %14 = tpu.matmul %12, %13, %cst_12 {dimension_numbers = #tpu.dot_dimension_numbers<[1], [0], [0], [1], [0, 0, 1, 1], [], []>} : vector<2x8xf32>, vector<8x4xf32>, vector<2x4xf32> -> vector<2x4xf32>
    %c0_13 = arith.constant 0 : index
    %c0_14 = arith.constant 0 : index
    %15 = vector.load %arg6[%c0_13, %c0_14] : memref<1x4xf32, #tpu.memory_space<vmem>>, vector<1x4xf32>
    %16 = vector.broadcast %15 : vector<1x4xf32> to vector<2x4xf32>
    %17 = arith.addf %14, %16 : vector<2x4xf32>
    %cst_15 = arith.constant 5.000000e-01 : f32
    %18 = vector.broadcast %cst_15 : f32 to vector<2x4xf32>
    %19 = arith.mulf %18, %17 : vector<2x4xf32>
    %20 = math.tanh %19 : vector<2x4xf32>
    %cst_16 = arith.constant 5.000000e-01 : f32
    %21 = vector.broadcast %cst_16 : f32 to vector<2x4xf32>
    %22 = arith.mulf %21, %20 : vector<2x4xf32>
    %cst_17 = arith.constant 5.000000e-01 : f32
    %23 = vector.broadcast %cst_17 : f32 to vector<2x4xf32>
    %24 = arith.addf %22, %23 : vector<2x4xf32>
    %cst_18 = arith.constant dense<0.000000e+00> : vector<2x256xf32>
    %25 = vector.multi_reduction <add>, %0, %cst_18 [1] : vector<2x4x256xf32> to vector<2x256xf32>
    %cst_19 = arith.constant 4.000000e+00 : f32
    %26 = vector.broadcast %cst_19 : f32 to vector<2x256xf32>
    %27 = arith.divf %25, %26 : vector<2x256xf32>
    %cst_20 = arith.constant dense<0xFF800000> : vector<2x256xf32>
    %28 = vector.multi_reduction <maximumf>, %0, %cst_20 [1] : vector<2x4x256xf32> to vector<2x256xf32>
    %c0_21 = arith.constant 0 : index
    %c0_22 = arith.constant 0 : index
    %29 = vector.load %arg1[%c0_21, %c0_22] : memref<2x256xi32, #tpu.memory_space<vmem>>, vector<2x256xi32>
    %c0_23 = arith.constant 0 : index
    %c0_24 = arith.constant 0 : index
    %30 = vector.load %arg2[%c0_23, %c0_24] : memref<2x256xi32, #tpu.memory_space<vmem>>, vector<2x256xi32>
    %cst_25 = arith.constant 0.000000e+00 : f32
    %31 = vector.broadcast %cst_25 : f32 to vector<2x256xf32>
    %c0_26 = arith.constant 0 : index
    %32 = memref.load %arg7[%c0_26] : memref<98xf32, #tpu.memory_space<smem>>
    %c49 = arith.constant 49 : index
    %33 = memref.load %arg7[%c49] : memref<98xf32, #tpu.memory_space<smem>>
    %c51_i32 = arith.constant 51 : i32
    %34 = tpu.dynamic_rotate %27 by %c51_i32 dim 1 : vector<2x256xf32>, i32 -> vector<2x256xf32>
    %35 = vector.broadcast %32 : f32 to vector<2x256xf32>
    %36 = arith.mulf %35, %34 : vector<2x256xf32>
    %c51_i32_27 = arith.constant 51 : i32
    %37 = tpu.dynamic_rotate %28 by %c51_i32_27 dim 1 : vector<2x256xf32>, i32 -> vector<2x256xf32>
    %38 = vector.broadcast %33 : f32 to vector<2x256xf32>
    %39 = arith.mulf %38, %37 : vector<2x256xf32>
    %40 = arith.addf %36, %39 : vector<2x256xf32>
    %c3_i32 = arith.constant 3 : i32
    %41 = vector.broadcast %c3_i32 : i32 to vector<2x256xi32>
    %42 = arith.cmpi sge, %29, %41 : vector<2x256xi32>
    %c3_i32_28 = arith.constant 3 : i32
    %43 = vector.broadcast %c3_i32_28 : i32 to vector<2x256xi32>
    %44 = arith.cmpi sge, %30, %43 : vector<2x256xi32>
    %45 = arith.andi %42, %44 : vector<2x256xi1>
    %cst_29 = arith.constant 0.000000e+00 : f32
    %46 = vector.broadcast %cst_29 : f32 to vector<2x256xf32>
    %47 = arith.select %45, %40, %46 : vector<2x256xi1>, vector<2x256xf32>
    %48 = arith.addf %31, %47 : vector<2x256xf32>
    %c1 = arith.constant 1 : index
    %49 = memref.load %arg7[%c1] : memref<98xf32, #tpu.memory_space<smem>>
    %c50 = arith.constant 50 : index
    %50 = memref.load %arg7[%c50] : memref<98xf32, #tpu.memory_space<smem>>
    %c50_i32 = arith.constant 50 : i32
    %51 = tpu.dynamic_rotate %27 by %c50_i32 dim 1 : vector<2x256xf32>, i32 -> vector<2x256xf32>
    %52 = vector.broadcast %49 : f32 to vector<2x256xf32>
    %53 = arith.mulf %52, %51 : vector<2x256xf32>
    %c50_i32_30 = arith.constant 50 : i32
    %54 = tpu.dynamic_rotate %28 by %c50_i32_30 dim 1 : vector<2x256xf32>, i32 -> vector<2x256xf32>
    %55 = vector.broadcast %50 : f32 to vector<2x256xf32>
    %56 = arith.mulf %55, %54 : vector<2x256xf32>
    %57 = arith.addf %53, %56 : vector<2x256xf32>
    %c2_i32 = arith.constant 2 : i32
    %58 = vector.broadcast %c2_i32 : i32 to vector<2x256xi32>
    %59 = arith.cmpi sge, %29, %58 : vector<2x256xi32>
    %c3_i32_31 = arith.constant 3 : i32
    %60 = vector.broadcast %c3_i32_31 : i32 to vector<2x256xi32>
    %61 = arith.cmpi sge, %30, %60 : vector<2x256xi32>
    %62 = arith.andi %59, %61 : vector<2x256xi1>
    %cst_32 = arith.constant 0.000000e+00 : f32
    %63 = vector.broadcast %cst_32 : f32 to vector<2x256xf32>
    %64 = arith.select %62, %57, %63 : vector<2x256xi1>, vector<2x256xf32>
    %65 = arith.addf %48, %64 : vector<2x256xf32>
    %c2 = arith.constant 2 : index
    %66 = memref.load %arg7[%c2] : memref<98xf32, #tpu.memory_space<smem>>
    %c51 = arith.constant 51 : index
    %67 = memref.load %arg7[%c51] : memref<98xf32, #tpu.memory_space<smem>>
    %c49_i32 = arith.constant 49 : i32
    %68 = tpu.dynamic_rotate %27 by %c49_i32 dim 1 : vector<2x256xf32>, i32 -> vector<2x256xf32>
    %69 = vector.broadcast %66 : f32 to vector<2x256xf32>
    %70 = arith.mulf %69, %68 : vector<2x256xf32>
    %c49_i32_33 = arith.constant 49 : i32
    %71 = tpu.dynamic_rotate %28 by %c49_i32_33 dim 1 : vector<2x256xf32>, i32 -> vector<2x256xf32>
    %72 = vector.broadcast %67 : f32 to vector<2x256xf32>
    %73 = arith.mulf %72, %71 : vector<2x256xf32>
    %74 = arith.addf %70, %73 : vector<2x256xf32>
    %c1_i32 = arith.constant 1 : i32
    %75 = vector.broadcast %c1_i32 : i32 to vector<2x256xi32>
    %76 = arith.cmpi sge, %29, %75 : vector<2x256xi32>
    %c3_i32_34 = arith.constant 3 : i32
    %77 = vector.broadcast %c3_i32_34 : i32 to vector<2x256xi32>
    %78 = arith.cmpi sge, %30, %77 : vector<2x256xi32>
    %79 = arith.andi %76, %78 : vector<2x256xi1>
    %cst_35 = arith.constant 0.000000e+00 : f32
    %80 = vector.broadcast %cst_35 : f32 to vector<2x256xf32>
    %81 = arith.select %79, %74, %80 : vector<2x256xi1>, vector<2x256xf32>
    %82 = arith.addf %65, %81 : vector<2x256xf32>
    %c3 = arith.constant 3 : index
    %83 = memref.load %arg7[%c3] : memref<98xf32, #tpu.memory_space<smem>>
    %c52 = arith.constant 52 : index
    %84 = memref.load %arg7[%c52] : memref<98xf32, #tpu.memory_space<smem>>
    %c48_i32 = arith.constant 48 : i32
    %85 = tpu.dynamic_rotate %27 by %c48_i32 dim 1 : vector<2x256xf32>, i32 -> vector<2x256xf32>
    %86 = vector.broadcast %83 : f32 to vector<2x256xf32>
    %87 = arith.mulf %86, %85 : vector<2x256xf32>
    %c48_i32_36 = arith.constant 48 : i32
    %88 = tpu.dynamic_rotate %28 by %c48_i32_36 dim 1 : vector<2x256xf32>, i32 -> vector<2x256xf32>
    %89 = vector.broadcast %84 : f32 to vector<2x256xf32>
    %90 = arith.mulf %89, %88 : vector<2x256xf32>
    %91 = arith.addf %87, %90 : vector<2x256xf32>
    %c3_i32_37 = arith.constant 3 : i32
    %92 = vector.broadcast %c3_i32_37 : i32 to vector<2x256xi32>
    %93 = arith.cmpi sge, %30, %92 : vector<2x256xi32>
    %cst_38 = arith.constant 0.000000e+00 : f32
    %94 = vector.broadcast %cst_38 : f32 to vector<2x256xf32>
    %95 = arith.select %93, %91, %94 : vector<2x256xi1>, vector<2x256xf32>
    %96 = arith.addf %82, %95 : vector<2x256xf32>
    %c4 = arith.constant 4 : index
    %97 = memref.load %arg7[%c4] : memref<98xf32, #tpu.memory_space<smem>>
    %c53 = arith.constant 53 : index
    %98 = memref.load %arg7[%c53] : memref<98xf32, #tpu.memory_space<smem>>
    %c47_i32 = arith.constant 47 : i32
    %99 = tpu.dynamic_rotate %27 by %c47_i32 dim 1 : vector<2x256xf32>, i32 -> vector<2x256xf32>
    %100 = vector.broadcast %97 : f32 to vector<2x256xf32>
    %101 = arith.mulf %100, %99 : vector<2x256xf32>
    %c47_i32_39 = arith.constant 47 : i32
    %102 = tpu.dynamic_rotate %28 by %c47_i32_39 dim 1 : vector<2x256xf32>, i32 -> vector<2x256xf32>
    %103 = vector.broadcast %98 : f32 to vector<2x256xf32>
    %104 = arith.mulf %103, %102 : vector<2x256xf32>
    %105 = arith.addf %101, %104 : vector<2x256xf32>
    %c15_i32 = arith.constant 15 : i32
    %106 = vector.broadcast %c15_i32 : i32 to vector<2x256xi32>
    %107 = arith.cmpi slt, %29, %106 : vector<2x256xi32>
    %c3_i32_40 = arith.constant 3 : i32
    %108 = vector.broadcast %c3_i32_40 : i32 to vector<2x256xi32>
    %109 = arith.cmpi sge, %30, %108 : vector<2x256xi32>
    %110 = arith.andi %107, %109 : vector<2x256xi1>
    %cst_41 = arith.constant 0.000000e+00 : f32
    %111 = vector.broadcast %cst_41 : f32 to vector<2x256xf32>
    %112 = arith.select %110, %105, %111 : vector<2x256xi1>, vector<2x256xf32>
    %113 = arith.addf %96, %112 : vector<2x256xf32>
    %c5 = arith.constant 5 : index
    %114 = memref.load %arg7[%c5] : memref<98xf32, #tpu.memory_space<smem>>
    %c54 = arith.constant 54 : index
    %115 = memref.load %arg7[%c54] : memref<98xf32, #tpu.memory_space<smem>>
    %c46_i32 = arith.constant 46 : i32
    %116 = tpu.dynamic_rotate %27 by %c46_i32 dim 1 : vector<2x256xf32>, i32 -> vector<2x256xf32>
    %117 = vector.broadcast %114 : f32 to vector<2x256xf32>
    %118 = arith.mulf %117, %116 : vector<2x256xf32>
    %c46_i32_42 = arith.constant 46 : i32
    %119 = tpu.dynamic_rotate %28 by %c46_i32_42 dim 1 : vector<2x256xf32>, i32 -> vector<2x256xf32>
    %120 = vector.broadcast %115 : f32 to vector<2x256xf32>
    %121 = arith.mulf %120, %119 : vector<2x256xf32>
    %122 = arith.addf %118, %121 : vector<2x256xf32>
    %c14_i32 = arith.constant 14 : i32
    %123 = vector.broadcast %c14_i32 : i32 to vector<2x256xi32>
    %124 = arith.cmpi slt, %29, %123 : vector<2x256xi32>
    %c3_i32_43 = arith.constant 3 : i32
    %125 = vector.broadcast %c3_i32_43 : i32 to vector<2x256xi32>
    %126 = arith.cmpi sge, %30, %125 : vector<2x256xi32>
    %127 = arith.andi %124, %126 : vector<2x256xi1>
    %cst_44 = arith.constant 0.000000e+00 : f32
    %128 = vector.broadcast %cst_44 : f32 to vector<2x256xf32>
    %129 = arith.select %127, %122, %128 : vector<2x256xi1>, vector<2x256xf32>
    %130 = arith.addf %113, %129 : vector<2x256xf32>
    %c6 = arith.constant 6 : index
    %131 = memref.load %arg7[%c6] : memref<98xf32, #tpu.memory_space<smem>>
    %c55 = arith.constant 55 : index
    %132 = memref.load %arg7[%c55] : memref<98xf32, #tpu.memory_space<smem>>
    %c45_i32 = arith.constant 45 : i32
    %133 = tpu.dynamic_rotate %27 by %c45_i32 dim 1 : vector<2x256xf32>, i32 -> vector<2x256xf32>
    %134 = vector.broadcast %131 : f32 to vector<2x256xf32>
    %135 = arith.mulf %134, %133 : vector<2x256xf32>
    %c45_i32_45 = arith.constant 45 : i32
    %136 = tpu.dynamic_rotate %28 by %c45_i32_45 dim 1 : vector<2x256xf32>, i32 -> vector<2x256xf32>
    %137 = vector.broadcast %132 : f32 to vector<2x256xf32>
    %138 = arith.mulf %137, %136 : vector<2x256xf32>
    %139 = arith.addf %135, %138 : vector<2x256xf32>
    %c13_i32 = arith.constant 13 : i32
    %140 = vector.broadcast %c13_i32 : i32 to vector<2x256xi32>
    %141 = arith.cmpi slt, %29, %140 : vector<2x256xi32>
    %c3_i32_46 = arith.constant 3 : i32
    %142 = vector.broadcast %c3_i32_46 : i32 to vector<2x256xi32>
    %143 = arith.cmpi sge, %30, %142 : vector<2x256xi32>
    %144 = arith.andi %141, %143 : vector<2x256xi1>
    %cst_47 = arith.constant 0.000000e+00 : f32
    %145 = vector.broadcast %cst_47 : f32 to vector<2x256xf32>
    %146 = arith.select %144, %139, %145 : vector<2x256xi1>, vector<2x256xf32>
    %147 = arith.addf %130, %146 : vector<2x256xf32>
    %c7 = arith.constant 7 : index
    %148 = memref.load %arg7[%c7] : memref<98xf32, #tpu.memory_space<smem>>
    %c56 = arith.constant 56 : index
    %149 = memref.load %arg7[%c56] : memref<98xf32, #tpu.memory_space<smem>>
    %c35_i32 = arith.constant 35 : i32
    %150 = tpu.dynamic_rotate %27 by %c35_i32 dim 1 : vector<2x256xf32>, i32 -> vector<2x256xf32>
    %151 = vector.broadcast %148 : f32 to vector<2x256xf32>
    %152 = arith.mulf %151, %150 : vector<2x256xf32>
    %c35_i32_48 = arith.constant 35 : i32
    %153 = tpu.dynamic_rotate %28 by %c35_i32_48 dim 1 : vector<2x256xf32>, i32 -> vector<2x256xf32>
    %154 = vector.broadcast %149 : f32 to vector<2x256xf32>
    %155 = arith.mulf %154, %153 : vector<2x256xf32>
    %156 = arith.addf %152, %155 : vector<2x256xf32>
    %c3_i32_49 = arith.constant 3 : i32
    %157 = vector.broadcast %c3_i32_49 : i32 to vector<2x256xi32>
    %158 = arith.cmpi sge, %29, %157 : vector<2x256xi32>
    %c2_i32_50 = arith.constant 2 : i32
    %159 = vector.broadcast %c2_i32_50 : i32 to vector<2x256xi32>
    %160 = arith.cmpi sge, %30, %159 : vector<2x256xi32>
    %161 = arith.andi %158, %160 : vector<2x256xi1>
    %cst_51 = arith.constant 0.000000e+00 : f32
    %162 = vector.broadcast %cst_51 : f32 to vector<2x256xf32>
    %163 = arith.select %161, %156, %162 : vector<2x256xi1>, vector<2x256xf32>
    %164 = arith.addf %147, %163 : vector<2x256xf32>
    %c8 = arith.constant 8 : index
    %165 = memref.load %arg7[%c8] : memref<98xf32, #tpu.memory_space<smem>>
    %c57 = arith.constant 57 : index
    %166 = memref.load %arg7[%c57] : memref<98xf32, #tpu.memory_space<smem>>
    %c34_i32 = arith.constant 34 : i32
    %167 = tpu.dynamic_rotate %27 by %c34_i32 dim 1 : vector<2x256xf32>, i32 -> vector<2x256xf32>
    %168 = vector.broadcast %165 : f32 to vector<2x256xf32>
    %169 = arith.mulf %168, %167 : vector<2x256xf32>
    %c34_i32_52 = arith.constant 34 : i32
    %170 = tpu.dynamic_rotate %28 by %c34_i32_52 dim 1 : vector<2x256xf32>, i32 -> vector<2x256xf32>
    %171 = vector.broadcast %166 : f32 to vector<2x256xf32>
    %172 = arith.mulf %171, %170 : vector<2x256xf32>
    %173 = arith.addf %169, %172 : vector<2x256xf32>
    %c2_i32_53 = arith.constant 2 : i32
    %174 = vector.broadcast %c2_i32_53 : i32 to vector<2x256xi32>
    %175 = arith.cmpi sge, %29, %174 : vector<2x256xi32>
    %c2_i32_54 = arith.constant 2 : i32
    %176 = vector.broadcast %c2_i32_54 : i32 to vector<2x256xi32>
    %177 = arith.cmpi sge, %30, %176 : vector<2x256xi32>
    %178 = arith.andi %175, %177 : vector<2x256xi1>
    %cst_55 = arith.constant 0.000000e+00 : f32
    %179 = vector.broadcast %cst_55 : f32 to vector<2x256xf32>
    %180 = arith.select %178, %173, %179 : vector<2x256xi1>, vector<2x256xf32>
    %181 = arith.addf %164, %180 : vector<2x256xf32>
    %c9 = arith.constant 9 : index
    %182 = memref.load %arg7[%c9] : memref<98xf32, #tpu.memory_space<smem>>
    %c58 = arith.constant 58 : index
    %183 = memref.load %arg7[%c58] : memref<98xf32, #tpu.memory_space<smem>>
    %c33_i32 = arith.constant 33 : i32
    %184 = tpu.dynamic_rotate %27 by %c33_i32 dim 1 : vector<2x256xf32>, i32 -> vector<2x256xf32>
    %185 = vector.broadcast %182 : f32 to vector<2x256xf32>
    %186 = arith.mulf %185, %184 : vector<2x256xf32>
    %c33_i32_56 = arith.constant 33 : i32
    %187 = tpu.dynamic_rotate %28 by %c33_i32_56 dim 1 : vector<2x256xf32>, i32 -> vector<2x256xf32>
    %188 = vector.broadcast %183 : f32 to vector<2x256xf32>
    %189 = arith.mulf %188, %187 : vector<2x256xf32>
    %190 = arith.addf %186, %189 : vector<2x256xf32>
    %c1_i32_57 = arith.constant 1 : i32
    %191 = vector.broadcast %c1_i32_57 : i32 to vector<2x256xi32>
    %192 = arith.cmpi sge, %29, %191 : vector<2x256xi32>
    %c2_i32_58 = arith.constant 2 : i32
    %193 = vector.broadcast %c2_i32_58 : i32 to vector<2x256xi32>
    %194 = arith.cmpi sge, %30, %193 : vector<2x256xi32>
    %195 = arith.andi %192, %194 : vector<2x256xi1>
    %cst_59 = arith.constant 0.000000e+00 : f32
    %196 = vector.broadcast %cst_59 : f32 to vector<2x256xf32>
    %197 = arith.select %195, %190, %196 : vector<2x256xi1>, vector<2x256xf32>
    %198 = arith.addf %181, %197 : vector<2x256xf32>
    %c10 = arith.constant 10 : index
    %199 = memref.load %arg7[%c10] : memref<98xf32, #tpu.memory_space<smem>>
    %c59 = arith.constant 59 : index
    %200 = memref.load %arg7[%c59] : memref<98xf32, #tpu.memory_space<smem>>
    %c32_i32 = arith.constant 32 : i32
    %201 = tpu.dynamic_rotate %27 by %c32_i32 dim 1 : vector<2x256xf32>, i32 -> vector<2x256xf32>
    %202 = vector.broadcast %199 : f32 to vector<2x256xf32>
    %203 = arith.mulf %202, %201 : vector<2x256xf32>
    %c32_i32_60 = arith.constant 32 : i32
    %204 = tpu.dynamic_rotate %28 by %c32_i32_60 dim 1 : vector<2x256xf32>, i32 -> vector<2x256xf32>
    %205 = vector.broadcast %200 : f32 to vector<2x256xf32>
    %206 = arith.mulf %205, %204 : vector<2x256xf32>
    %207 = arith.addf %203, %206 : vector<2x256xf32>
    %c2_i32_61 = arith.constant 2 : i32
    %208 = vector.broadcast %c2_i32_61 : i32 to vector<2x256xi32>
    %209 = arith.cmpi sge, %30, %208 : vector<2x256xi32>
    %cst_62 = arith.constant 0.000000e+00 : f32
    %210 = vector.broadcast %cst_62 : f32 to vector<2x256xf32>
    %211 = arith.select %209, %207, %210 : vector<2x256xi1>, vector<2x256xf32>
    %212 = arith.addf %198, %211 : vector<2x256xf32>
    %c11 = arith.constant 11 : index
    %213 = memref.load %arg7[%c11] : memref<98xf32, #tpu.memory_space<smem>>
    %c60 = arith.constant 60 : index
    %214 = memref.load %arg7[%c60] : memref<98xf32, #tpu.memory_space<smem>>
    %c31_i32 = arith.constant 31 : i32
    %215 = tpu.dynamic_rotate %27 by %c31_i32 dim 1 : vector<2x256xf32>, i32 -> vector<2x256xf32>
    %216 = vector.broadcast %213 : f32 to vector<2x256xf32>
    %217 = arith.mulf %216, %215 : vector<2x256xf32>
    %c31_i32_63 = arith.constant 31 : i32
    %218 = tpu.dynamic_rotate %28 by %c31_i32_63 dim 1 : vector<2x256xf32>, i32 -> vector<2x256xf32>
    %219 = vector.broadcast %214 : f32 to vector<2x256xf32>
    %220 = arith.mulf %219, %218 : vector<2x256xf32>
    %221 = arith.addf %217, %220 : vector<2x256xf32>
    %c15_i32_64 = arith.constant 15 : i32
    %222 = vector.broadcast %c15_i32_64 : i32 to vector<2x256xi32>
    %223 = arith.cmpi slt, %29, %222 : vector<2x256xi32>
    %c2_i32_65 = arith.constant 2 : i32
    %224 = vector.broadcast %c2_i32_65 : i32 to vector<2x256xi32>
    %225 = arith.cmpi sge, %30, %224 : vector<2x256xi32>
    %226 = arith.andi %223, %225 : vector<2x256xi1>
    %cst_66 = arith.constant 0.000000e+00 : f32
    %227 = vector.broadcast %cst_66 : f32 to vector<2x256xf32>
    %228 = arith.select %226, %221, %227 : vector<2x256xi1>, vector<2x256xf32>
    %229 = arith.addf %212, %228 : vector<2x256xf32>
    %c12 = arith.constant 12 : index
    %230 = memref.load %arg7[%c12] : memref<98xf32, #tpu.memory_space<smem>>
    %c61 = arith.constant 61 : index
    %231 = memref.load %arg7[%c61] : memref<98xf32, #tpu.memory_space<smem>>
    %c30_i32 = arith.constant 30 : i32
    %232 = tpu.dynamic_rotate %27 by %c30_i32 dim 1 : vector<2x256xf32>, i32 -> vector<2x256xf32>
    %233 = vector.broadcast %230 : f32 to vector<2x256xf32>
    %234 = arith.mulf %233, %232 : vector<2x256xf32>
    %c30_i32_67 = arith.constant 30 : i32
    %235 = tpu.dynamic_rotate %28 by %c30_i32_67 dim 1 : vector<2x256xf32>, i32 -> vector<2x256xf32>
    %236 = vector.broadcast %231 : f32 to vector<2x256xf32>
    %237 = arith.mulf %236, %235 : vector<2x256xf32>
    %238 = arith.addf %234, %237 : vector<2x256xf32>
    %c14_i32_68 = arith.constant 14 : i32
    %239 = vector.broadcast %c14_i32_68 : i32 to vector<2x256xi32>
    %240 = arith.cmpi slt, %29, %239 : vector<2x256xi32>
    %c2_i32_69 = arith.constant 2 : i32
    %241 = vector.broadcast %c2_i32_69 : i32 to vector<2x256xi32>
    %242 = arith.cmpi sge, %30, %241 : vector<2x256xi32>
    %243 = arith.andi %240, %242 : vector<2x256xi1>
    %cst_70 = arith.constant 0.000000e+00 : f32
    %244 = vector.broadcast %cst_70 : f32 to vector<2x256xf32>
    %245 = arith.select %243, %238, %244 : vector<2x256xi1>, vector<2x256xf32>
    %246 = arith.addf %229, %245 : vector<2x256xf32>
    %c13 = arith.constant 13 : index
    %247 = memref.load %arg7[%c13] : memref<98xf32, #tpu.memory_space<smem>>
    %c62 = arith.constant 62 : index
    %248 = memref.load %arg7[%c62] : memref<98xf32, #tpu.memory_space<smem>>
    %c29_i32 = arith.constant 29 : i32
    %249 = tpu.dynamic_rotate %27 by %c29_i32 dim 1 : vector<2x256xf32>, i32 -> vector<2x256xf32>
    %250 = vector.broadcast %247 : f32 to vector<2x256xf32>
    %251 = arith.mulf %250, %249 : vector<2x256xf32>
    %c29_i32_71 = arith.constant 29 : i32
    %252 = tpu.dynamic_rotate %28 by %c29_i32_71 dim 1 : vector<2x256xf32>, i32 -> vector<2x256xf32>
    %253 = vector.broadcast %248 : f32 to vector<2x256xf32>
    %254 = arith.mulf %253, %252 : vector<2x256xf32>
    %255 = arith.addf %251, %254 : vector<2x256xf32>
    %c13_i32_72 = arith.constant 13 : i32
    %256 = vector.broadcast %c13_i32_72 : i32 to vector<2x256xi32>
    %257 = arith.cmpi slt, %29, %256 : vector<2x256xi32>
    %c2_i32_73 = arith.constant 2 : i32
    %258 = vector.broadcast %c2_i32_73 : i32 to vector<2x256xi32>
    %259 = arith.cmpi sge, %30, %258 : vector<2x256xi32>
    %260 = arith.andi %257, %259 : vector<2x256xi1>
    %cst_74 = arith.constant 0.000000e+00 : f32
    %261 = vector.broadcast %cst_74 : f32 to vector<2x256xf32>
    %262 = arith.select %260, %255, %261 : vector<2x256xi1>, vector<2x256xf32>
    %263 = arith.addf %246, %262 : vector<2x256xf32>
    %c14 = arith.constant 14 : index
    %264 = memref.load %arg7[%c14] : memref<98xf32, #tpu.memory_space<smem>>
    %c63 = arith.constant 63 : index
    %265 = memref.load %arg7[%c63] : memref<98xf32, #tpu.memory_space<smem>>
    %c19_i32 = arith.constant 19 : i32
    %266 = tpu.dynamic_rotate %27 by %c19_i32 dim 1 : vector<2x256xf32>, i32 -> vector<2x256xf32>
    %267 = vector.broadcast %264 : f32 to vector<2x256xf32>
    %268 = arith.mulf %267, %266 : vector<2x256xf32>
    %c19_i32_75 = arith.constant 19 : i32
    %269 = tpu.dynamic_rotate %28 by %c19_i32_75 dim 1 : vector<2x256xf32>, i32 -> vector<2x256xf32>
    %270 = vector.broadcast %265 : f32 to vector<2x256xf32>
    %271 = arith.mulf %270, %269 : vector<2x256xf32>
    %272 = arith.addf %268, %271 : vector<2x256xf32>
    %c3_i32_76 = arith.constant 3 : i32
    %273 = vector.broadcast %c3_i32_76 : i32 to vector<2x256xi32>
    %274 = arith.cmpi sge, %29, %273 : vector<2x256xi32>
    %c1_i32_77 = arith.constant 1 : i32
    %275 = vector.broadcast %c1_i32_77 : i32 to vector<2x256xi32>
    %276 = arith.cmpi sge, %30, %275 : vector<2x256xi32>
    %277 = arith.andi %274, %276 : vector<2x256xi1>
    %cst_78 = arith.constant 0.000000e+00 : f32
    %278 = vector.broadcast %cst_78 : f32 to vector<2x256xf32>
    %279 = arith.select %277, %272, %278 : vector<2x256xi1>, vector<2x256xf32>
    %280 = arith.addf %263, %279 : vector<2x256xf32>
    %c15 = arith.constant 15 : index
    %281 = memref.load %arg7[%c15] : memref<98xf32, #tpu.memory_space<smem>>
    %c64 = arith.constant 64 : index
    %282 = memref.load %arg7[%c64] : memref<98xf32, #tpu.memory_space<smem>>
    %c18_i32 = arith.constant 18 : i32
    %283 = tpu.dynamic_rotate %27 by %c18_i32 dim 1 : vector<2x256xf32>, i32 -> vector<2x256xf32>
    %284 = vector.broadcast %281 : f32 to vector<2x256xf32>
    %285 = arith.mulf %284, %283 : vector<2x256xf32>
    %c18_i32_79 = arith.constant 18 : i32
    %286 = tpu.dynamic_rotate %28 by %c18_i32_79 dim 1 : vector<2x256xf32>, i32 -> vector<2x256xf32>
    %287 = vector.broadcast %282 : f32 to vector<2x256xf32>
    %288 = arith.mulf %287, %286 : vector<2x256xf32>
    %289 = arith.addf %285, %288 : vector<2x256xf32>
    %c2_i32_80 = arith.constant 2 : i32
    %290 = vector.broadcast %c2_i32_80 : i32 to vector<2x256xi32>
    %291 = arith.cmpi sge, %29, %290 : vector<2x256xi32>
    %c1_i32_81 = arith.constant 1 : i32
    %292 = vector.broadcast %c1_i32_81 : i32 to vector<2x256xi32>
    %293 = arith.cmpi sge, %30, %292 : vector<2x256xi32>
    %294 = arith.andi %291, %293 : vector<2x256xi1>
    %cst_82 = arith.constant 0.000000e+00 : f32
    %295 = vector.broadcast %cst_82 : f32 to vector<2x256xf32>
    %296 = arith.select %294, %289, %295 : vector<2x256xi1>, vector<2x256xf32>
    %297 = arith.addf %280, %296 : vector<2x256xf32>
    %c16 = arith.constant 16 : index
    %298 = memref.load %arg7[%c16] : memref<98xf32, #tpu.memory_space<smem>>
    %c65 = arith.constant 65 : index
    %299 = memref.load %arg7[%c65] : memref<98xf32, #tpu.memory_space<smem>>
    %c17_i32 = arith.constant 17 : i32
    %300 = tpu.dynamic_rotate %27 by %c17_i32 dim 1 : vector<2x256xf32>, i32 -> vector<2x256xf32>
    %301 = vector.broadcast %298 : f32 to vector<2x256xf32>
    %302 = arith.mulf %301, %300 : vector<2x256xf32>
    %c17_i32_83 = arith.constant 17 : i32
    %303 = tpu.dynamic_rotate %28 by %c17_i32_83 dim 1 : vector<2x256xf32>, i32 -> vector<2x256xf32>
    %304 = vector.broadcast %299 : f32 to vector<2x256xf32>
    %305 = arith.mulf %304, %303 : vector<2x256xf32>
    %306 = arith.addf %302, %305 : vector<2x256xf32>
    %c1_i32_84 = arith.constant 1 : i32
    %307 = vector.broadcast %c1_i32_84 : i32 to vector<2x256xi32>
    %308 = arith.cmpi sge, %29, %307 : vector<2x256xi32>
    %c1_i32_85 = arith.constant 1 : i32
    %309 = vector.broadcast %c1_i32_85 : i32 to vector<2x256xi32>
    %310 = arith.cmpi sge, %30, %309 : vector<2x256xi32>
    %311 = arith.andi %308, %310 : vector<2x256xi1>
    %cst_86 = arith.constant 0.000000e+00 : f32
    %312 = vector.broadcast %cst_86 : f32 to vector<2x256xf32>
    %313 = arith.select %311, %306, %312 : vector<2x256xi1>, vector<2x256xf32>
    %314 = arith.addf %297, %313 : vector<2x256xf32>
    %c17 = arith.constant 17 : index
    %315 = memref.load %arg7[%c17] : memref<98xf32, #tpu.memory_space<smem>>
    %c66 = arith.constant 66 : index
    %316 = memref.load %arg7[%c66] : memref<98xf32, #tpu.memory_space<smem>>
    %c16_i32 = arith.constant 16 : i32
    %317 = tpu.dynamic_rotate %27 by %c16_i32 dim 1 : vector<2x256xf32>, i32 -> vector<2x256xf32>
    %318 = vector.broadcast %315 : f32 to vector<2x256xf32>
    %319 = arith.mulf %318, %317 : vector<2x256xf32>
    %c16_i32_87 = arith.constant 16 : i32
    %320 = tpu.dynamic_rotate %28 by %c16_i32_87 dim 1 : vector<2x256xf32>, i32 -> vector<2x256xf32>
    %321 = vector.broadcast %316 : f32 to vector<2x256xf32>
    %322 = arith.mulf %321, %320 : vector<2x256xf32>
    %323 = arith.addf %319, %322 : vector<2x256xf32>
    %c1_i32_88 = arith.constant 1 : i32
    %324 = vector.broadcast %c1_i32_88 : i32 to vector<2x256xi32>
    %325 = arith.cmpi sge, %30, %324 : vector<2x256xi32>
    %cst_89 = arith.constant 0.000000e+00 : f32
    %326 = vector.broadcast %cst_89 : f32 to vector<2x256xf32>
    %327 = arith.select %325, %323, %326 : vector<2x256xi1>, vector<2x256xf32>
    %328 = arith.addf %314, %327 : vector<2x256xf32>
    %c18 = arith.constant 18 : index
    %329 = memref.load %arg7[%c18] : memref<98xf32, #tpu.memory_space<smem>>
    %c67 = arith.constant 67 : index
    %330 = memref.load %arg7[%c67] : memref<98xf32, #tpu.memory_space<smem>>
    %c15_i32_90 = arith.constant 15 : i32
    %331 = tpu.dynamic_rotate %27 by %c15_i32_90 dim 1 : vector<2x256xf32>, i32 -> vector<2x256xf32>
    %332 = vector.broadcast %329 : f32 to vector<2x256xf32>
    %333 = arith.mulf %332, %331 : vector<2x256xf32>
    %c15_i32_91 = arith.constant 15 : i32
    %334 = tpu.dynamic_rotate %28 by %c15_i32_91 dim 1 : vector<2x256xf32>, i32 -> vector<2x256xf32>
    %335 = vector.broadcast %330 : f32 to vector<2x256xf32>
    %336 = arith.mulf %335, %334 : vector<2x256xf32>
    %337 = arith.addf %333, %336 : vector<2x256xf32>
    %c15_i32_92 = arith.constant 15 : i32
    %338 = vector.broadcast %c15_i32_92 : i32 to vector<2x256xi32>
    %339 = arith.cmpi slt, %29, %338 : vector<2x256xi32>
    %c1_i32_93 = arith.constant 1 : i32
    %340 = vector.broadcast %c1_i32_93 : i32 to vector<2x256xi32>
    %341 = arith.cmpi sge, %30, %340 : vector<2x256xi32>
    %342 = arith.andi %339, %341 : vector<2x256xi1>
    %cst_94 = arith.constant 0.000000e+00 : f32
    %343 = vector.broadcast %cst_94 : f32 to vector<2x256xf32>
    %344 = arith.select %342, %337, %343 : vector<2x256xi1>, vector<2x256xf32>
    %345 = arith.addf %328, %344 : vector<2x256xf32>
    %c19 = arith.constant 19 : index
    %346 = memref.load %arg7[%c19] : memref<98xf32, #tpu.memory_space<smem>>
    %c68 = arith.constant 68 : index
    %347 = memref.load %arg7[%c68] : memref<98xf32, #tpu.memory_space<smem>>
    %c14_i32_95 = arith.constant 14 : i32
    %348 = tpu.dynamic_rotate %27 by %c14_i32_95 dim 1 : vector<2x256xf32>, i32 -> vector<2x256xf32>
    %349 = vector.broadcast %346 : f32 to vector<2x256xf32>
    %350 = arith.mulf %349, %348 : vector<2x256xf32>
    %c14_i32_96 = arith.constant 14 : i32
    %351 = tpu.dynamic_rotate %28 by %c14_i32_96 dim 1 : vector<2x256xf32>, i32 -> vector<2x256xf32>
    %352 = vector.broadcast %347 : f32 to vector<2x256xf32>
    %353 = arith.mulf %352, %351 : vector<2x256xf32>
    %354 = arith.addf %350, %353 : vector<2x256xf32>
    %c14_i32_97 = arith.constant 14 : i32
    %355 = vector.broadcast %c14_i32_97 : i32 to vector<2x256xi32>
    %356 = arith.cmpi slt, %29, %355 : vector<2x256xi32>
    %c1_i32_98 = arith.constant 1 : i32
    %357 = vector.broadcast %c1_i32_98 : i32 to vector<2x256xi32>
    %358 = arith.cmpi sge, %30, %357 : vector<2x256xi32>
    %359 = arith.andi %356, %358 : vector<2x256xi1>
    %cst_99 = arith.constant 0.000000e+00 : f32
    %360 = vector.broadcast %cst_99 : f32 to vector<2x256xf32>
    %361 = arith.select %359, %354, %360 : vector<2x256xi1>, vector<2x256xf32>
    %362 = arith.addf %345, %361 : vector<2x256xf32>
    %c20 = arith.constant 20 : index
    %363 = memref.load %arg7[%c20] : memref<98xf32, #tpu.memory_space<smem>>
    %c69 = arith.constant 69 : index
    %364 = memref.load %arg7[%c69] : memref<98xf32, #tpu.memory_space<smem>>
    %c13_i32_100 = arith.constant 13 : i32
    %365 = tpu.dynamic_rotate %27 by %c13_i32_100 dim 1 : vector<2x256xf32>, i32 -> vector<2x256xf32>
    %366 = vector.broadcast %363 : f32 to vector<2x256xf32>
    %367 = arith.mulf %366, %365 : vector<2x256xf32>
    %c13_i32_101 = arith.constant 13 : i32
    %368 = tpu.dynamic_rotate %28 by %c13_i32_101 dim 1 : vector<2x256xf32>, i32 -> vector<2x256xf32>
    %369 = vector.broadcast %364 : f32 to vector<2x256xf32>
    %370 = arith.mulf %369, %368 : vector<2x256xf32>
    %371 = arith.addf %367, %370 : vector<2x256xf32>
    %c13_i32_102 = arith.constant 13 : i32
    %372 = vector.broadcast %c13_i32_102 : i32 to vector<2x256xi32>
    %373 = arith.cmpi slt, %29, %372 : vector<2x256xi32>
    %c1_i32_103 = arith.constant 1 : i32
    %374 = vector.broadcast %c1_i32_103 : i32 to vector<2x256xi32>
    %375 = arith.cmpi sge, %30, %374 : vector<2x256xi32>
    %376 = arith.andi %373, %375 : vector<2x256xi1>
    %cst_104 = arith.constant 0.000000e+00 : f32
    %377 = vector.broadcast %cst_104 : f32 to vector<2x256xf32>
    %378 = arith.select %376, %371, %377 : vector<2x256xi1>, vector<2x256xf32>
    %379 = arith.addf %362, %378 : vector<2x256xf32>
    %c21 = arith.constant 21 : index
    %380 = memref.load %arg7[%c21] : memref<98xf32, #tpu.memory_space<smem>>
    %c70 = arith.constant 70 : index
    %381 = memref.load %arg7[%c70] : memref<98xf32, #tpu.memory_space<smem>>
    %c3_i32_105 = arith.constant 3 : i32
    %382 = tpu.dynamic_rotate %27 by %c3_i32_105 dim 1 : vector<2x256xf32>, i32 -> vector<2x256xf32>
    %383 = vector.broadcast %380 : f32 to vector<2x256xf32>
    %384 = arith.mulf %383, %382 : vector<2x256xf32>
    %c3_i32_106 = arith.constant 3 : i32
    %385 = tpu.dynamic_rotate %28 by %c3_i32_106 dim 1 : vector<2x256xf32>, i32 -> vector<2x256xf32>
    %386 = vector.broadcast %381 : f32 to vector<2x256xf32>
    %387 = arith.mulf %386, %385 : vector<2x256xf32>
    %388 = arith.addf %384, %387 : vector<2x256xf32>
    %c3_i32_107 = arith.constant 3 : i32
    %389 = vector.broadcast %c3_i32_107 : i32 to vector<2x256xi32>
    %390 = arith.cmpi sge, %29, %389 : vector<2x256xi32>
    %cst_108 = arith.constant 0.000000e+00 : f32
    %391 = vector.broadcast %cst_108 : f32 to vector<2x256xf32>
    %392 = arith.select %390, %388, %391 : vector<2x256xi1>, vector<2x256xf32>
    %393 = arith.addf %379, %392 : vector<2x256xf32>
    %c22 = arith.constant 22 : index
    %394 = memref.load %arg7[%c22] : memref<98xf32, #tpu.memory_space<smem>>
    %c71 = arith.constant 71 : index
    %395 = memref.load %arg7[%c71] : memref<98xf32, #tpu.memory_space<smem>>
    %c2_i32_109 = arith.constant 2 : i32
    %396 = tpu.dynamic_rotate %27 by %c2_i32_109 dim 1 : vector<2x256xf32>, i32 -> vector<2x256xf32>
    %397 = vector.broadcast %394 : f32 to vector<2x256xf32>
    %398 = arith.mulf %397, %396 : vector<2x256xf32>
    %c2_i32_110 = arith.constant 2 : i32
    %399 = tpu.dynamic_rotate %28 by %c2_i32_110 dim 1 : vector<2x256xf32>, i32 -> vector<2x256xf32>
    %400 = vector.broadcast %395 : f32 to vector<2x256xf32>
    %401 = arith.mulf %400, %399 : vector<2x256xf32>
    %402 = arith.addf %398, %401 : vector<2x256xf32>
    %c2_i32_111 = arith.constant 2 : i32
    %403 = vector.broadcast %c2_i32_111 : i32 to vector<2x256xi32>
    %404 = arith.cmpi sge, %29, %403 : vector<2x256xi32>
    %cst_112 = arith.constant 0.000000e+00 : f32
    %405 = vector.broadcast %cst_112 : f32 to vector<2x256xf32>
    %406 = arith.select %404, %402, %405 : vector<2x256xi1>, vector<2x256xf32>
    %407 = arith.addf %393, %406 : vector<2x256xf32>
    %c23 = arith.constant 23 : index
    %408 = memref.load %arg7[%c23] : memref<98xf32, #tpu.memory_space<smem>>
    %c72 = arith.constant 72 : index
    %409 = memref.load %arg7[%c72] : memref<98xf32, #tpu.memory_space<smem>>
    %c1_i32_113 = arith.constant 1 : i32
    %410 = tpu.dynamic_rotate %27 by %c1_i32_113 dim 1 : vector<2x256xf32>, i32 -> vector<2x256xf32>
    %411 = vector.broadcast %408 : f32 to vector<2x256xf32>
    %412 = arith.mulf %411, %410 : vector<2x256xf32>
    %c1_i32_114 = arith.constant 1 : i32
    %413 = tpu.dynamic_rotate %28 by %c1_i32_114 dim 1 : vector<2x256xf32>, i32 -> vector<2x256xf32>
    %414 = vector.broadcast %409 : f32 to vector<2x256xf32>
    %415 = arith.mulf %414, %413 : vector<2x256xf32>
    %416 = arith.addf %412, %415 : vector<2x256xf32>
    %c1_i32_115 = arith.constant 1 : i32
    %417 = vector.broadcast %c1_i32_115 : i32 to vector<2x256xi32>
    %418 = arith.cmpi sge, %29, %417 : vector<2x256xi32>
    %cst_116 = arith.constant 0.000000e+00 : f32
    %419 = vector.broadcast %cst_116 : f32 to vector<2x256xf32>
    %420 = arith.select %418, %416, %419 : vector<2x256xi1>, vector<2x256xf32>
    %421 = arith.addf %407, %420 : vector<2x256xf32>
    %c24 = arith.constant 24 : index
    %422 = memref.load %arg7[%c24] : memref<98xf32, #tpu.memory_space<smem>>
    %c73 = arith.constant 73 : index
    %423 = memref.load %arg7[%c73] : memref<98xf32, #tpu.memory_space<smem>>
    %424 = vector.broadcast %422 : f32 to vector<2x256xf32>
    %425 = arith.mulf %424, %27 : vector<2x256xf32>
    %426 = vector.broadcast %423 : f32 to vector<2x256xf32>
    %427 = arith.mulf %426, %28 : vector<2x256xf32>
    %428 = arith.addf %425, %427 : vector<2x256xf32>
    %429 = arith.addf %421, %428 : vector<2x256xf32>
    %c25 = arith.constant 25 : index
    %430 = memref.load %arg7[%c25] : memref<98xf32, #tpu.memory_space<smem>>
    %c74 = arith.constant 74 : index
    %431 = memref.load %arg7[%c74] : memref<98xf32, #tpu.memory_space<smem>>
    %c255_i32 = arith.constant 255 : i32
    %432 = tpu.dynamic_rotate %27 by %c255_i32 dim 1 : vector<2x256xf32>, i32 -> vector<2x256xf32>
    %433 = vector.broadcast %430 : f32 to vector<2x256xf32>
    %434 = arith.mulf %433, %432 : vector<2x256xf32>
    %c255_i32_117 = arith.constant 255 : i32
    %435 = tpu.dynamic_rotate %28 by %c255_i32_117 dim 1 : vector<2x256xf32>, i32 -> vector<2x256xf32>
    %436 = vector.broadcast %431 : f32 to vector<2x256xf32>
    %437 = arith.mulf %436, %435 : vector<2x256xf32>
    %438 = arith.addf %434, %437 : vector<2x256xf32>
    %c15_i32_118 = arith.constant 15 : i32
    %439 = vector.broadcast %c15_i32_118 : i32 to vector<2x256xi32>
    %440 = arith.cmpi slt, %29, %439 : vector<2x256xi32>
    %cst_119 = arith.constant 0.000000e+00 : f32
    %441 = vector.broadcast %cst_119 : f32 to vector<2x256xf32>
    %442 = arith.select %440, %438, %441 : vector<2x256xi1>, vector<2x256xf32>
    %443 = arith.addf %429, %442 : vector<2x256xf32>
    %c26 = arith.constant 26 : index
    %444 = memref.load %arg7[%c26] : memref<98xf32, #tpu.memory_space<smem>>
    %c75 = arith.constant 75 : index
    %445 = memref.load %arg7[%c75] : memref<98xf32, #tpu.memory_space<smem>>
    %c254_i32 = arith.constant 254 : i32
    %446 = tpu.dynamic_rotate %27 by %c254_i32 dim 1 : vector<2x256xf32>, i32 -> vector<2x256xf32>
    %447 = vector.broadcast %444 : f32 to vector<2x256xf32>
    %448 = arith.mulf %447, %446 : vector<2x256xf32>
    %c254_i32_120 = arith.constant 254 : i32
    %449 = tpu.dynamic_rotate %28 by %c254_i32_120 dim 1 : vector<2x256xf32>, i32 -> vector<2x256xf32>
    %450 = vector.broadcast %445 : f32 to vector<2x256xf32>
    %451 = arith.mulf %450, %449 : vector<2x256xf32>
    %452 = arith.addf %448, %451 : vector<2x256xf32>
    %c14_i32_121 = arith.constant 14 : i32
    %453 = vector.broadcast %c14_i32_121 : i32 to vector<2x256xi32>
    %454 = arith.cmpi slt, %29, %453 : vector<2x256xi32>
    %cst_122 = arith.constant 0.000000e+00 : f32
    %455 = vector.broadcast %cst_122 : f32 to vector<2x256xf32>
    %456 = arith.select %454, %452, %455 : vector<2x256xi1>, vector<2x256xf32>
    %457 = arith.addf %443, %456 : vector<2x256xf32>
    %c27 = arith.constant 27 : index
    %458 = memref.load %arg7[%c27] : memref<98xf32, #tpu.memory_space<smem>>
    %c76 = arith.constant 76 : index
    %459 = memref.load %arg7[%c76] : memref<98xf32, #tpu.memory_space<smem>>
    %c253_i32 = arith.constant 253 : i32
    %460 = tpu.dynamic_rotate %27 by %c253_i32 dim 1 : vector<2x256xf32>, i32 -> vector<2x256xf32>
    %461 = vector.broadcast %458 : f32 to vector<2x256xf32>
    %462 = arith.mulf %461, %460 : vector<2x256xf32>
    %c253_i32_123 = arith.constant 253 : i32
    %463 = tpu.dynamic_rotate %28 by %c253_i32_123 dim 1 : vector<2x256xf32>, i32 -> vector<2x256xf32>
    %464 = vector.broadcast %459 : f32 to vector<2x256xf32>
    %465 = arith.mulf %464, %463 : vector<2x256xf32>
    %466 = arith.addf %462, %465 : vector<2x256xf32>
    %c13_i32_124 = arith.constant 13 : i32
    %467 = vector.broadcast %c13_i32_124 : i32 to vector<2x256xi32>
    %468 = arith.cmpi slt, %29, %467 : vector<2x256xi32>
    %cst_125 = arith.constant 0.000000e+00 : f32
    %469 = vector.broadcast %cst_125 : f32 to vector<2x256xf32>
    %470 = arith.select %468, %466, %469 : vector<2x256xi1>, vector<2x256xf32>
    %471 = arith.addf %457, %470 : vector<2x256xf32>
    %c28 = arith.constant 28 : index
    %472 = memref.load %arg7[%c28] : memref<98xf32, #tpu.memory_space<smem>>
    %c77 = arith.constant 77 : index
    %473 = memref.load %arg7[%c77] : memref<98xf32, #tpu.memory_space<smem>>
    %c243_i32 = arith.constant 243 : i32
    %474 = tpu.dynamic_rotate %27 by %c243_i32 dim 1 : vector<2x256xf32>, i32 -> vector<2x256xf32>
    %475 = vector.broadcast %472 : f32 to vector<2x256xf32>
    %476 = arith.mulf %475, %474 : vector<2x256xf32>
    %c243_i32_126 = arith.constant 243 : i32
    %477 = tpu.dynamic_rotate %28 by %c243_i32_126 dim 1 : vector<2x256xf32>, i32 -> vector<2x256xf32>
    %478 = vector.broadcast %473 : f32 to vector<2x256xf32>
    %479 = arith.mulf %478, %477 : vector<2x256xf32>
    %480 = arith.addf %476, %479 : vector<2x256xf32>
    %c3_i32_127 = arith.constant 3 : i32
    %481 = vector.broadcast %c3_i32_127 : i32 to vector<2x256xi32>
    %482 = arith.cmpi sge, %29, %481 : vector<2x256xi32>
    %c15_i32_128 = arith.constant 15 : i32
    %483 = vector.broadcast %c15_i32_128 : i32 to vector<2x256xi32>
    %484 = arith.cmpi slt, %30, %483 : vector<2x256xi32>
    %485 = arith.andi %482, %484 : vector<2x256xi1>
    %cst_129 = arith.constant 0.000000e+00 : f32
    %486 = vector.broadcast %cst_129 : f32 to vector<2x256xf32>
    %487 = arith.select %485, %480, %486 : vector<2x256xi1>, vector<2x256xf32>
    %488 = arith.addf %471, %487 : vector<2x256xf32>
    %c29 = arith.constant 29 : index
    %489 = memref.load %arg7[%c29] : memref<98xf32, #tpu.memory_space<smem>>
    %c78 = arith.constant 78 : index
    %490 = memref.load %arg7[%c78] : memref<98xf32, #tpu.memory_space<smem>>
    %c242_i32 = arith.constant 242 : i32
    %491 = tpu.dynamic_rotate %27 by %c242_i32 dim 1 : vector<2x256xf32>, i32 -> vector<2x256xf32>
    %492 = vector.broadcast %489 : f32 to vector<2x256xf32>
    %493 = arith.mulf %492, %491 : vector<2x256xf32>
    %c242_i32_130 = arith.constant 242 : i32
    %494 = tpu.dynamic_rotate %28 by %c242_i32_130 dim 1 : vector<2x256xf32>, i32 -> vector<2x256xf32>
    %495 = vector.broadcast %490 : f32 to vector<2x256xf32>
    %496 = arith.mulf %495, %494 : vector<2x256xf32>
    %497 = arith.addf %493, %496 : vector<2x256xf32>
    %c2_i32_131 = arith.constant 2 : i32
    %498 = vector.broadcast %c2_i32_131 : i32 to vector<2x256xi32>
    %499 = arith.cmpi sge, %29, %498 : vector<2x256xi32>
    %c15_i32_132 = arith.constant 15 : i32
    %500 = vector.broadcast %c15_i32_132 : i32 to vector<2x256xi32>
    %501 = arith.cmpi slt, %30, %500 : vector<2x256xi32>
    %502 = arith.andi %499, %501 : vector<2x256xi1>
    %cst_133 = arith.constant 0.000000e+00 : f32
    %503 = vector.broadcast %cst_133 : f32 to vector<2x256xf32>
    %504 = arith.select %502, %497, %503 : vector<2x256xi1>, vector<2x256xf32>
    %505 = arith.addf %488, %504 : vector<2x256xf32>
    %c30 = arith.constant 30 : index
    %506 = memref.load %arg7[%c30] : memref<98xf32, #tpu.memory_space<smem>>
    %c79 = arith.constant 79 : index
    %507 = memref.load %arg7[%c79] : memref<98xf32, #tpu.memory_space<smem>>
    %c241_i32 = arith.constant 241 : i32
    %508 = tpu.dynamic_rotate %27 by %c241_i32 dim 1 : vector<2x256xf32>, i32 -> vector<2x256xf32>
    %509 = vector.broadcast %506 : f32 to vector<2x256xf32>
    %510 = arith.mulf %509, %508 : vector<2x256xf32>
    %c241_i32_134 = arith.constant 241 : i32
    %511 = tpu.dynamic_rotate %28 by %c241_i32_134 dim 1 : vector<2x256xf32>, i32 -> vector<2x256xf32>
    %512 = vector.broadcast %507 : f32 to vector<2x256xf32>
    %513 = arith.mulf %512, %511 : vector<2x256xf32>
    %514 = arith.addf %510, %513 : vector<2x256xf32>
    %c1_i32_135 = arith.constant 1 : i32
    %515 = vector.broadcast %c1_i32_135 : i32 to vector<2x256xi32>
    %516 = arith.cmpi sge, %29, %515 : vector<2x256xi32>
    %c15_i32_136 = arith.constant 15 : i32
    %517 = vector.broadcast %c15_i32_136 : i32 to vector<2x256xi32>
    %518 = arith.cmpi slt, %30, %517 : vector<2x256xi32>
    %519 = arith.andi %516, %518 : vector<2x256xi1>
    %cst_137 = arith.constant 0.000000e+00 : f32
    %520 = vector.broadcast %cst_137 : f32 to vector<2x256xf32>
    %521 = arith.select %519, %514, %520 : vector<2x256xi1>, vector<2x256xf32>
    %522 = arith.addf %505, %521 : vector<2x256xf32>
    %c31 = arith.constant 31 : index
    %523 = memref.load %arg7[%c31] : memref<98xf32, #tpu.memory_space<smem>>
    %c80 = arith.constant 80 : index
    %524 = memref.load %arg7[%c80] : memref<98xf32, #tpu.memory_space<smem>>
    %c240_i32 = arith.constant 240 : i32
    %525 = tpu.dynamic_rotate %27 by %c240_i32 dim 1 : vector<2x256xf32>, i32 -> vector<2x256xf32>
    %526 = vector.broadcast %523 : f32 to vector<2x256xf32>
    %527 = arith.mulf %526, %525 : vector<2x256xf32>
    %c240_i32_138 = arith.constant 240 : i32
    %528 = tpu.dynamic_rotate %28 by %c240_i32_138 dim 1 : vector<2x256xf32>, i32 -> vector<2x256xf32>
    %529 = vector.broadcast %524 : f32 to vector<2x256xf32>
    %530 = arith.mulf %529, %528 : vector<2x256xf32>
    %531 = arith.addf %527, %530 : vector<2x256xf32>
    %c15_i32_139 = arith.constant 15 : i32
    %532 = vector.broadcast %c15_i32_139 : i32 to vector<2x256xi32>
    %533 = arith.cmpi slt, %30, %532 : vector<2x256xi32>
    %cst_140 = arith.constant 0.000000e+00 : f32
    %534 = vector.broadcast %cst_140 : f32 to vector<2x256xf32>
    %535 = arith.select %533, %531, %534 : vector<2x256xi1>, vector<2x256xf32>
    %536 = arith.addf %522, %535 : vector<2x256xf32>
    %c32 = arith.constant 32 : index
    %537 = memref.load %arg7[%c32] : memref<98xf32, #tpu.memory_space<smem>>
    %c81 = arith.constant 81 : index
    %538 = memref.load %arg7[%c81] : memref<98xf32, #tpu.memory_space<smem>>
    %c239_i32 = arith.constant 239 : i32
    %539 = tpu.dynamic_rotate %27 by %c239_i32 dim 1 : vector<2x256xf32>, i32 -> vector<2x256xf32>
    %540 = vector.broadcast %537 : f32 to vector<2x256xf32>
    %541 = arith.mulf %540, %539 : vector<2x256xf32>
    %c239_i32_141 = arith.constant 239 : i32
    %542 = tpu.dynamic_rotate %28 by %c239_i32_141 dim 1 : vector<2x256xf32>, i32 -> vector<2x256xf32>
    %543 = vector.broadcast %538 : f32 to vector<2x256xf32>
    %544 = arith.mulf %543, %542 : vector<2x256xf32>
    %545 = arith.addf %541, %544 : vector<2x256xf32>
    %c15_i32_142 = arith.constant 15 : i32
    %546 = vector.broadcast %c15_i32_142 : i32 to vector<2x256xi32>
    %547 = arith.cmpi slt, %29, %546 : vector<2x256xi32>
    %c15_i32_143 = arith.constant 15 : i32
    %548 = vector.broadcast %c15_i32_143 : i32 to vector<2x256xi32>
    %549 = arith.cmpi slt, %30, %548 : vector<2x256xi32>
    %550 = arith.andi %547, %549 : vector<2x256xi1>
    %cst_144 = arith.constant 0.000000e+00 : f32
    %551 = vector.broadcast %cst_144 : f32 to vector<2x256xf32>
    %552 = arith.select %550, %545, %551 : vector<2x256xi1>, vector<2x256xf32>
    %553 = arith.addf %536, %552 : vector<2x256xf32>
    %c33 = arith.constant 33 : index
    %554 = memref.load %arg7[%c33] : memref<98xf32, #tpu.memory_space<smem>>
    %c82 = arith.constant 82 : index
    %555 = memref.load %arg7[%c82] : memref<98xf32, #tpu.memory_space<smem>>
    %c238_i32 = arith.constant 238 : i32
    %556 = tpu.dynamic_rotate %27 by %c238_i32 dim 1 : vector<2x256xf32>, i32 -> vector<2x256xf32>
    %557 = vector.broadcast %554 : f32 to vector<2x256xf32>
    %558 = arith.mulf %557, %556 : vector<2x256xf32>
    %c238_i32_145 = arith.constant 238 : i32
    %559 = tpu.dynamic_rotate %28 by %c238_i32_145 dim 1 : vector<2x256xf32>, i32 -> vector<2x256xf32>
    %560 = vector.broadcast %555 : f32 to vector<2x256xf32>
    %561 = arith.mulf %560, %559 : vector<2x256xf32>
    %562 = arith.addf %558, %561 : vector<2x256xf32>
    %c14_i32_146 = arith.constant 14 : i32
    %563 = vector.broadcast %c14_i32_146 : i32 to vector<2x256xi32>
    %564 = arith.cmpi slt, %29, %563 : vector<2x256xi32>
    %c15_i32_147 = arith.constant 15 : i32
    %565 = vector.broadcast %c15_i32_147 : i32 to vector<2x256xi32>
    %566 = arith.cmpi slt, %30, %565 : vector<2x256xi32>
    %567 = arith.andi %564, %566 : vector<2x256xi1>
    %cst_148 = arith.constant 0.000000e+00 : f32
    %568 = vector.broadcast %cst_148 : f32 to vector<2x256xf32>
    %569 = arith.select %567, %562, %568 : vector<2x256xi1>, vector<2x256xf32>
    %570 = arith.addf %553, %569 : vector<2x256xf32>
    %c34 = arith.constant 34 : index
    %571 = memref.load %arg7[%c34] : memref<98xf32, #tpu.memory_space<smem>>
    %c83 = arith.constant 83 : index
    %572 = memref.load %arg7[%c83] : memref<98xf32, #tpu.memory_space<smem>>
    %c237_i32 = arith.constant 237 : i32
    %573 = tpu.dynamic_rotate %27 by %c237_i32 dim 1 : vector<2x256xf32>, i32 -> vector<2x256xf32>
    %574 = vector.broadcast %571 : f32 to vector<2x256xf32>
    %575 = arith.mulf %574, %573 : vector<2x256xf32>
    %c237_i32_149 = arith.constant 237 : i32
    %576 = tpu.dynamic_rotate %28 by %c237_i32_149 dim 1 : vector<2x256xf32>, i32 -> vector<2x256xf32>
    %577 = vector.broadcast %572 : f32 to vector<2x256xf32>
    %578 = arith.mulf %577, %576 : vector<2x256xf32>
    %579 = arith.addf %575, %578 : vector<2x256xf32>
    %c13_i32_150 = arith.constant 13 : i32
    %580 = vector.broadcast %c13_i32_150 : i32 to vector<2x256xi32>
    %581 = arith.cmpi slt, %29, %580 : vector<2x256xi32>
    %c15_i32_151 = arith.constant 15 : i32
    %582 = vector.broadcast %c15_i32_151 : i32 to vector<2x256xi32>
    %583 = arith.cmpi slt, %30, %582 : vector<2x256xi32>
    %584 = arith.andi %581, %583 : vector<2x256xi1>
    %cst_152 = arith.constant 0.000000e+00 : f32
    %585 = vector.broadcast %cst_152 : f32 to vector<2x256xf32>
    %586 = arith.select %584, %579, %585 : vector<2x256xi1>, vector<2x256xf32>
    %587 = arith.addf %570, %586 : vector<2x256xf32>
    %c35 = arith.constant 35 : index
    %588 = memref.load %arg7[%c35] : memref<98xf32, #tpu.memory_space<smem>>
    %c84 = arith.constant 84 : index
    %589 = memref.load %arg7[%c84] : memref<98xf32, #tpu.memory_space<smem>>
    %c227_i32 = arith.constant 227 : i32
    %590 = tpu.dynamic_rotate %27 by %c227_i32 dim 1 : vector<2x256xf32>, i32 -> vector<2x256xf32>
    %591 = vector.broadcast %588 : f32 to vector<2x256xf32>
    %592 = arith.mulf %591, %590 : vector<2x256xf32>
    %c227_i32_153 = arith.constant 227 : i32
    %593 = tpu.dynamic_rotate %28 by %c227_i32_153 dim 1 : vector<2x256xf32>, i32 -> vector<2x256xf32>
    %594 = vector.broadcast %589 : f32 to vector<2x256xf32>
    %595 = arith.mulf %594, %593 : vector<2x256xf32>
    %596 = arith.addf %592, %595 : vector<2x256xf32>
    %c3_i32_154 = arith.constant 3 : i32
    %597 = vector.broadcast %c3_i32_154 : i32 to vector<2x256xi32>
    %598 = arith.cmpi sge, %29, %597 : vector<2x256xi32>
    %c14_i32_155 = arith.constant 14 : i32
    %599 = vector.broadcast %c14_i32_155 : i32 to vector<2x256xi32>
    %600 = arith.cmpi slt, %30, %599 : vector<2x256xi32>
    %601 = arith.andi %598, %600 : vector<2x256xi1>
    %cst_156 = arith.constant 0.000000e+00 : f32
    %602 = vector.broadcast %cst_156 : f32 to vector<2x256xf32>
    %603 = arith.select %601, %596, %602 : vector<2x256xi1>, vector<2x256xf32>
    %604 = arith.addf %587, %603 : vector<2x256xf32>
    %c36 = arith.constant 36 : index
    %605 = memref.load %arg7[%c36] : memref<98xf32, #tpu.memory_space<smem>>
    %c85 = arith.constant 85 : index
    %606 = memref.load %arg7[%c85] : memref<98xf32, #tpu.memory_space<smem>>
    %c226_i32 = arith.constant 226 : i32
    %607 = tpu.dynamic_rotate %27 by %c226_i32 dim 1 : vector<2x256xf32>, i32 -> vector<2x256xf32>
    %608 = vector.broadcast %605 : f32 to vector<2x256xf32>
    %609 = arith.mulf %608, %607 : vector<2x256xf32>
    %c226_i32_157 = arith.constant 226 : i32
    %610 = tpu.dynamic_rotate %28 by %c226_i32_157 dim 1 : vector<2x256xf32>, i32 -> vector<2x256xf32>
    %611 = vector.broadcast %606 : f32 to vector<2x256xf32>
    %612 = arith.mulf %611, %610 : vector<2x256xf32>
    %613 = arith.addf %609, %612 : vector<2x256xf32>
    %c2_i32_158 = arith.constant 2 : i32
    %614 = vector.broadcast %c2_i32_158 : i32 to vector<2x256xi32>
    %615 = arith.cmpi sge, %29, %614 : vector<2x256xi32>
    %c14_i32_159 = arith.constant 14 : i32
    %616 = vector.broadcast %c14_i32_159 : i32 to vector<2x256xi32>
    %617 = arith.cmpi slt, %30, %616 : vector<2x256xi32>
    %618 = arith.andi %615, %617 : vector<2x256xi1>
    %cst_160 = arith.constant 0.000000e+00 : f32
    %619 = vector.broadcast %cst_160 : f32 to vector<2x256xf32>
    %620 = arith.select %618, %613, %619 : vector<2x256xi1>, vector<2x256xf32>
    %621 = arith.addf %604, %620 : vector<2x256xf32>
    %c37 = arith.constant 37 : index
    %622 = memref.load %arg7[%c37] : memref<98xf32, #tpu.memory_space<smem>>
    %c86 = arith.constant 86 : index
    %623 = memref.load %arg7[%c86] : memref<98xf32, #tpu.memory_space<smem>>
    %c225_i32 = arith.constant 225 : i32
    %624 = tpu.dynamic_rotate %27 by %c225_i32 dim 1 : vector<2x256xf32>, i32 -> vector<2x256xf32>
    %625 = vector.broadcast %622 : f32 to vector<2x256xf32>
    %626 = arith.mulf %625, %624 : vector<2x256xf32>
    %c225_i32_161 = arith.constant 225 : i32
    %627 = tpu.dynamic_rotate %28 by %c225_i32_161 dim 1 : vector<2x256xf32>, i32 -> vector<2x256xf32>
    %628 = vector.broadcast %623 : f32 to vector<2x256xf32>
    %629 = arith.mulf %628, %627 : vector<2x256xf32>
    %630 = arith.addf %626, %629 : vector<2x256xf32>
    %c1_i32_162 = arith.constant 1 : i32
    %631 = vector.broadcast %c1_i32_162 : i32 to vector<2x256xi32>
    %632 = arith.cmpi sge, %29, %631 : vector<2x256xi32>
    %c14_i32_163 = arith.constant 14 : i32
    %633 = vector.broadcast %c14_i32_163 : i32 to vector<2x256xi32>
    %634 = arith.cmpi slt, %30, %633 : vector<2x256xi32>
    %635 = arith.andi %632, %634 : vector<2x256xi1>
    %cst_164 = arith.constant 0.000000e+00 : f32
    %636 = vector.broadcast %cst_164 : f32 to vector<2x256xf32>
    %637 = arith.select %635, %630, %636 : vector<2x256xi1>, vector<2x256xf32>
    %638 = arith.addf %621, %637 : vector<2x256xf32>
    %c38 = arith.constant 38 : index
    %639 = memref.load %arg7[%c38] : memref<98xf32, #tpu.memory_space<smem>>
    %c87 = arith.constant 87 : index
    %640 = memref.load %arg7[%c87] : memref<98xf32, #tpu.memory_space<smem>>
    %c224_i32 = arith.constant 224 : i32
    %641 = tpu.dynamic_rotate %27 by %c224_i32 dim 1 : vector<2x256xf32>, i32 -> vector<2x256xf32>
    %642 = vector.broadcast %639 : f32 to vector<2x256xf32>
    %643 = arith.mulf %642, %641 : vector<2x256xf32>
    %c224_i32_165 = arith.constant 224 : i32
    %644 = tpu.dynamic_rotate %28 by %c224_i32_165 dim 1 : vector<2x256xf32>, i32 -> vector<2x256xf32>
    %645 = vector.broadcast %640 : f32 to vector<2x256xf32>
    %646 = arith.mulf %645, %644 : vector<2x256xf32>
    %647 = arith.addf %643, %646 : vector<2x256xf32>
    %c14_i32_166 = arith.constant 14 : i32
    %648 = vector.broadcast %c14_i32_166 : i32 to vector<2x256xi32>
    %649 = arith.cmpi slt, %30, %648 : vector<2x256xi32>
    %cst_167 = arith.constant 0.000000e+00 : f32
    %650 = vector.broadcast %cst_167 : f32 to vector<2x256xf32>
    %651 = arith.select %649, %647, %650 : vector<2x256xi1>, vector<2x256xf32>
    %652 = arith.addf %638, %651 : vector<2x256xf32>
    %c39 = arith.constant 39 : index
    %653 = memref.load %arg7[%c39] : memref<98xf32, #tpu.memory_space<smem>>
    %c88 = arith.constant 88 : index
    %654 = memref.load %arg7[%c88] : memref<98xf32, #tpu.memory_space<smem>>
    %c223_i32 = arith.constant 223 : i32
    %655 = tpu.dynamic_rotate %27 by %c223_i32 dim 1 : vector<2x256xf32>, i32 -> vector<2x256xf32>
    %656 = vector.broadcast %653 : f32 to vector<2x256xf32>
    %657 = arith.mulf %656, %655 : vector<2x256xf32>
    %c223_i32_168 = arith.constant 223 : i32
    %658 = tpu.dynamic_rotate %28 by %c223_i32_168 dim 1 : vector<2x256xf32>, i32 -> vector<2x256xf32>
    %659 = vector.broadcast %654 : f32 to vector<2x256xf32>
    %660 = arith.mulf %659, %658 : vector<2x256xf32>
    %661 = arith.addf %657, %660 : vector<2x256xf32>
    %c15_i32_169 = arith.constant 15 : i32
    %662 = vector.broadcast %c15_i32_169 : i32 to vector<2x256xi32>
    %663 = arith.cmpi slt, %29, %662 : vector<2x256xi32>
    %c14_i32_170 = arith.constant 14 : i32
    %664 = vector.broadcast %c14_i32_170 : i32 to vector<2x256xi32>
    %665 = arith.cmpi slt, %30, %664 : vector<2x256xi32>
    %666 = arith.andi %663, %665 : vector<2x256xi1>
    %cst_171 = arith.constant 0.000000e+00 : f32
    %667 = vector.broadcast %cst_171 : f32 to vector<2x256xf32>
    %668 = arith.select %666, %661, %667 : vector<2x256xi1>, vector<2x256xf32>
    %669 = arith.addf %652, %668 : vector<2x256xf32>
    %c40 = arith.constant 40 : index
    %670 = memref.load %arg7[%c40] : memref<98xf32, #tpu.memory_space<smem>>
    %c89 = arith.constant 89 : index
    %671 = memref.load %arg7[%c89] : memref<98xf32, #tpu.memory_space<smem>>
    %c222_i32 = arith.constant 222 : i32
    %672 = tpu.dynamic_rotate %27 by %c222_i32 dim 1 : vector<2x256xf32>, i32 -> vector<2x256xf32>
    %673 = vector.broadcast %670 : f32 to vector<2x256xf32>
    %674 = arith.mulf %673, %672 : vector<2x256xf32>
    %c222_i32_172 = arith.constant 222 : i32
    %675 = tpu.dynamic_rotate %28 by %c222_i32_172 dim 1 : vector<2x256xf32>, i32 -> vector<2x256xf32>
    %676 = vector.broadcast %671 : f32 to vector<2x256xf32>
    %677 = arith.mulf %676, %675 : vector<2x256xf32>
    %678 = arith.addf %674, %677 : vector<2x256xf32>
    %c14_i32_173 = arith.constant 14 : i32
    %679 = vector.broadcast %c14_i32_173 : i32 to vector<2x256xi32>
    %680 = arith.cmpi slt, %29, %679 : vector<2x256xi32>
    %c14_i32_174 = arith.constant 14 : i32
    %681 = vector.broadcast %c14_i32_174 : i32 to vector<2x256xi32>
    %682 = arith.cmpi slt, %30, %681 : vector<2x256xi32>
    %683 = arith.andi %680, %682 : vector<2x256xi1>
    %cst_175 = arith.constant 0.000000e+00 : f32
    %684 = vector.broadcast %cst_175 : f32 to vector<2x256xf32>
    %685 = arith.select %683, %678, %684 : vector<2x256xi1>, vector<2x256xf32>
    %686 = arith.addf %669, %685 : vector<2x256xf32>
    %c41 = arith.constant 41 : index
    %687 = memref.load %arg7[%c41] : memref<98xf32, #tpu.memory_space<smem>>
    %c90 = arith.constant 90 : index
    %688 = memref.load %arg7[%c90] : memref<98xf32, #tpu.memory_space<smem>>
    %c221_i32 = arith.constant 221 : i32
    %689 = tpu.dynamic_rotate %27 by %c221_i32 dim 1 : vector<2x256xf32>, i32 -> vector<2x256xf32>
    %690 = vector.broadcast %687 : f32 to vector<2x256xf32>
    %691 = arith.mulf %690, %689 : vector<2x256xf32>
    %c221_i32_176 = arith.constant 221 : i32
    %692 = tpu.dynamic_rotate %28 by %c221_i32_176 dim 1 : vector<2x256xf32>, i32 -> vector<2x256xf32>
    %693 = vector.broadcast %688 : f32 to vector<2x256xf32>
    %694 = arith.mulf %693, %692 : vector<2x256xf32>
    %695 = arith.addf %691, %694 : vector<2x256xf32>
    %c13_i32_177 = arith.constant 13 : i32
    %696 = vector.broadcast %c13_i32_177 : i32 to vector<2x256xi32>
    %697 = arith.cmpi slt, %29, %696 : vector<2x256xi32>
    %c14_i32_178 = arith.constant 14 : i32
    %698 = vector.broadcast %c14_i32_178 : i32 to vector<2x256xi32>
    %699 = arith.cmpi slt, %30, %698 : vector<2x256xi32>
    %700 = arith.andi %697, %699 : vector<2x256xi1>
    %cst_179 = arith.constant 0.000000e+00 : f32
    %701 = vector.broadcast %cst_179 : f32 to vector<2x256xf32>
    %702 = arith.select %700, %695, %701 : vector<2x256xi1>, vector<2x256xf32>
    %703 = arith.addf %686, %702 : vector<2x256xf32>
    %c42 = arith.constant 42 : index
    %704 = memref.load %arg7[%c42] : memref<98xf32, #tpu.memory_space<smem>>
    %c91 = arith.constant 91 : index
    %705 = memref.load %arg7[%c91] : memref<98xf32, #tpu.memory_space<smem>>
    %c211_i32 = arith.constant 211 : i32
    %706 = tpu.dynamic_rotate %27 by %c211_i32 dim 1 : vector<2x256xf32>, i32 -> vector<2x256xf32>
    %707 = vector.broadcast %704 : f32 to vector<2x256xf32>
    %708 = arith.mulf %707, %706 : vector<2x256xf32>
    %c211_i32_180 = arith.constant 211 : i32
    %709 = tpu.dynamic_rotate %28 by %c211_i32_180 dim 1 : vector<2x256xf32>, i32 -> vector<2x256xf32>
    %710 = vector.broadcast %705 : f32 to vector<2x256xf32>
    %711 = arith.mulf %710, %709 : vector<2x256xf32>
    %712 = arith.addf %708, %711 : vector<2x256xf32>
    %c3_i32_181 = arith.constant 3 : i32
    %713 = vector.broadcast %c3_i32_181 : i32 to vector<2x256xi32>
    %714 = arith.cmpi sge, %29, %713 : vector<2x256xi32>
    %c13_i32_182 = arith.constant 13 : i32
    %715 = vector.broadcast %c13_i32_182 : i32 to vector<2x256xi32>
    %716 = arith.cmpi slt, %30, %715 : vector<2x256xi32>
    %717 = arith.andi %714, %716 : vector<2x256xi1>
    %cst_183 = arith.constant 0.000000e+00 : f32
    %718 = vector.broadcast %cst_183 : f32 to vector<2x256xf32>
    %719 = arith.select %717, %712, %718 : vector<2x256xi1>, vector<2x256xf32>
    %720 = arith.addf %703, %719 : vector<2x256xf32>
    %c43 = arith.constant 43 : index
    %721 = memref.load %arg7[%c43] : memref<98xf32, #tpu.memory_space<smem>>
    %c92 = arith.constant 92 : index
    %722 = memref.load %arg7[%c92] : memref<98xf32, #tpu.memory_space<smem>>
    %c210_i32 = arith.constant 210 : i32
    %723 = tpu.dynamic_rotate %27 by %c210_i32 dim 1 : vector<2x256xf32>, i32 -> vector<2x256xf32>
    %724 = vector.broadcast %721 : f32 to vector<2x256xf32>
    %725 = arith.mulf %724, %723 : vector<2x256xf32>
    %c210_i32_184 = arith.constant 210 : i32
    %726 = tpu.dynamic_rotate %28 by %c210_i32_184 dim 1 : vector<2x256xf32>, i32 -> vector<2x256xf32>
    %727 = vector.broadcast %722 : f32 to vector<2x256xf32>
    %728 = arith.mulf %727, %726 : vector<2x256xf32>
    %729 = arith.addf %725, %728 : vector<2x256xf32>
    %c2_i32_185 = arith.constant 2 : i32
    %730 = vector.broadcast %c2_i32_185 : i32 to vector<2x256xi32>
    %731 = arith.cmpi sge, %29, %730 : vector<2x256xi32>
    %c13_i32_186 = arith.constant 13 : i32
    %732 = vector.broadcast %c13_i32_186 : i32 to vector<2x256xi32>
    %733 = arith.cmpi slt, %30, %732 : vector<2x256xi32>
    %734 = arith.andi %731, %733 : vector<2x256xi1>
    %cst_187 = arith.constant 0.000000e+00 : f32
    %735 = vector.broadcast %cst_187 : f32 to vector<2x256xf32>
    %736 = arith.select %734, %729, %735 : vector<2x256xi1>, vector<2x256xf32>
    %737 = arith.addf %720, %736 : vector<2x256xf32>
    %c44 = arith.constant 44 : index
    %738 = memref.load %arg7[%c44] : memref<98xf32, #tpu.memory_space<smem>>
    %c93 = arith.constant 93 : index
    %739 = memref.load %arg7[%c93] : memref<98xf32, #tpu.memory_space<smem>>
    %c209_i32 = arith.constant 209 : i32
    %740 = tpu.dynamic_rotate %27 by %c209_i32 dim 1 : vector<2x256xf32>, i32 -> vector<2x256xf32>
    %741 = vector.broadcast %738 : f32 to vector<2x256xf32>
    %742 = arith.mulf %741, %740 : vector<2x256xf32>
    %c209_i32_188 = arith.constant 209 : i32
    %743 = tpu.dynamic_rotate %28 by %c209_i32_188 dim 1 : vector<2x256xf32>, i32 -> vector<2x256xf32>
    %744 = vector.broadcast %739 : f32 to vector<2x256xf32>
    %745 = arith.mulf %744, %743 : vector<2x256xf32>
    %746 = arith.addf %742, %745 : vector<2x256xf32>
    %c1_i32_189 = arith.constant 1 : i32
    %747 = vector.broadcast %c1_i32_189 : i32 to vector<2x256xi32>
    %748 = arith.cmpi sge, %29, %747 : vector<2x256xi32>
    %c13_i32_190 = arith.constant 13 : i32
    %749 = vector.broadcast %c13_i32_190 : i32 to vector<2x256xi32>
    %750 = arith.cmpi slt, %30, %749 : vector<2x256xi32>
    %751 = arith.andi %748, %750 : vector<2x256xi1>
    %cst_191 = arith.constant 0.000000e+00 : f32
    %752 = vector.broadcast %cst_191 : f32 to vector<2x256xf32>
    %753 = arith.select %751, %746, %752 : vector<2x256xi1>, vector<2x256xf32>
    %754 = arith.addf %737, %753 : vector<2x256xf32>
    %c45 = arith.constant 45 : index
    %755 = memref.load %arg7[%c45] : memref<98xf32, #tpu.memory_space<smem>>
    %c94 = arith.constant 94 : index
    %756 = memref.load %arg7[%c94] : memref<98xf32, #tpu.memory_space<smem>>
    %c208_i32 = arith.constant 208 : i32
    %757 = tpu.dynamic_rotate %27 by %c208_i32 dim 1 : vector<2x256xf32>, i32 -> vector<2x256xf32>
    %758 = vector.broadcast %755 : f32 to vector<2x256xf32>
    %759 = arith.mulf %758, %757 : vector<2x256xf32>
    %c208_i32_192 = arith.constant 208 : i32
    %760 = tpu.dynamic_rotate %28 by %c208_i32_192 dim 1 : vector<2x256xf32>, i32 -> vector<2x256xf32>
    %761 = vector.broadcast %756 : f32 to vector<2x256xf32>
    %762 = arith.mulf %761, %760 : vector<2x256xf32>
    %763 = arith.addf %759, %762 : vector<2x256xf32>
    %c13_i32_193 = arith.constant 13 : i32
    %764 = vector.broadcast %c13_i32_193 : i32 to vector<2x256xi32>
    %765 = arith.cmpi slt, %30, %764 : vector<2x256xi32>
    %cst_194 = arith.constant 0.000000e+00 : f32
    %766 = vector.broadcast %cst_194 : f32 to vector<2x256xf32>
    %767 = arith.select %765, %763, %766 : vector<2x256xi1>, vector<2x256xf32>
    %768 = arith.addf %754, %767 : vector<2x256xf32>
    %c46 = arith.constant 46 : index
    %769 = memref.load %arg7[%c46] : memref<98xf32, #tpu.memory_space<smem>>
    %c95 = arith.constant 95 : index
    %770 = memref.load %arg7[%c95] : memref<98xf32, #tpu.memory_space<smem>>
    %c207_i32 = arith.constant 207 : i32
    %771 = tpu.dynamic_rotate %27 by %c207_i32 dim 1 : vector<2x256xf32>, i32 -> vector<2x256xf32>
    %772 = vector.broadcast %769 : f32 to vector<2x256xf32>
    %773 = arith.mulf %772, %771 : vector<2x256xf32>
    %c207_i32_195 = arith.constant 207 : i32
    %774 = tpu.dynamic_rotate %28 by %c207_i32_195 dim 1 : vector<2x256xf32>, i32 -> vector<2x256xf32>
    %775 = vector.broadcast %770 : f32 to vector<2x256xf32>
    %776 = arith.mulf %775, %774 : vector<2x256xf32>
    %777 = arith.addf %773, %776 : vector<2x256xf32>
    %c15_i32_196 = arith.constant 15 : i32
    %778 = vector.broadcast %c15_i32_196 : i32 to vector<2x256xi32>
    %779 = arith.cmpi slt, %29, %778 : vector<2x256xi32>
    %c13_i32_197 = arith.constant 13 : i32
    %780 = vector.broadcast %c13_i32_197 : i32 to vector<2x256xi32>
    %781 = arith.cmpi slt, %30, %780 : vector<2x256xi32>
    %782 = arith.andi %779, %781 : vector<2x256xi1>
    %cst_198 = arith.constant 0.000000e+00 : f32
    %783 = vector.broadcast %cst_198 : f32 to vector<2x256xf32>
    %784 = arith.select %782, %777, %783 : vector<2x256xi1>, vector<2x256xf32>
    %785 = arith.addf %768, %784 : vector<2x256xf32>
    %c47 = arith.constant 47 : index
    %786 = memref.load %arg7[%c47] : memref<98xf32, #tpu.memory_space<smem>>
    %c96 = arith.constant 96 : index
    %787 = memref.load %arg7[%c96] : memref<98xf32, #tpu.memory_space<smem>>
    %c206_i32 = arith.constant 206 : i32
    %788 = tpu.dynamic_rotate %27 by %c206_i32 dim 1 : vector<2x256xf32>, i32 -> vector<2x256xf32>
    %789 = vector.broadcast %786 : f32 to vector<2x256xf32>
    %790 = arith.mulf %789, %788 : vector<2x256xf32>
    %c206_i32_199 = arith.constant 206 : i32
    %791 = tpu.dynamic_rotate %28 by %c206_i32_199 dim 1 : vector<2x256xf32>, i32 -> vector<2x256xf32>
    %792 = vector.broadcast %787 : f32 to vector<2x256xf32>
    %793 = arith.mulf %792, %791 : vector<2x256xf32>
    %794 = arith.addf %790, %793 : vector<2x256xf32>
    %c14_i32_200 = arith.constant 14 : i32
    %795 = vector.broadcast %c14_i32_200 : i32 to vector<2x256xi32>
    %796 = arith.cmpi slt, %29, %795 : vector<2x256xi32>
    %c13_i32_201 = arith.constant 13 : i32
    %797 = vector.broadcast %c13_i32_201 : i32 to vector<2x256xi32>
    %798 = arith.cmpi slt, %30, %797 : vector<2x256xi32>
    %799 = arith.andi %796, %798 : vector<2x256xi1>
    %cst_202 = arith.constant 0.000000e+00 : f32
    %800 = vector.broadcast %cst_202 : f32 to vector<2x256xf32>
    %801 = arith.select %799, %794, %800 : vector<2x256xi1>, vector<2x256xf32>
    %802 = arith.addf %785, %801 : vector<2x256xf32>
    %c48 = arith.constant 48 : index
    %803 = memref.load %arg7[%c48] : memref<98xf32, #tpu.memory_space<smem>>
    %c97 = arith.constant 97 : index
    %804 = memref.load %arg7[%c97] : memref<98xf32, #tpu.memory_space<smem>>
    %c205_i32 = arith.constant 205 : i32
    %805 = tpu.dynamic_rotate %27 by %c205_i32 dim 1 : vector<2x256xf32>, i32 -> vector<2x256xf32>
    %806 = vector.broadcast %803 : f32 to vector<2x256xf32>
    %807 = arith.mulf %806, %805 : vector<2x256xf32>
    %c205_i32_203 = arith.constant 205 : i32
    %808 = tpu.dynamic_rotate %28 by %c205_i32_203 dim 1 : vector<2x256xf32>, i32 -> vector<2x256xf32>
    %809 = vector.broadcast %804 : f32 to vector<2x256xf32>
    %810 = arith.mulf %809, %808 : vector<2x256xf32>
    %811 = arith.addf %807, %810 : vector<2x256xf32>
    %c13_i32_204 = arith.constant 13 : i32
    %812 = vector.broadcast %c13_i32_204 : i32 to vector<2x256xi32>
    %813 = arith.cmpi slt, %29, %812 : vector<2x256xi32>
    %c13_i32_205 = arith.constant 13 : i32
    %814 = vector.broadcast %c13_i32_205 : i32 to vector<2x256xi32>
    %815 = arith.cmpi slt, %30, %814 : vector<2x256xi32>
    %816 = arith.andi %813, %815 : vector<2x256xi1>
    %cst_206 = arith.constant 0.000000e+00 : f32
    %817 = vector.broadcast %cst_206 : f32 to vector<2x256xf32>
    %818 = arith.select %816, %811, %817 : vector<2x256xi1>, vector<2x256xf32>
    %819 = arith.addf %802, %818 : vector<2x256xf32>
    %c0_207 = arith.constant 0 : index
    %820 = memref.load %arg8[%c0_207] : memref<1xf32, #tpu.memory_space<smem>>
    %821 = vector.broadcast %820 : f32 to vector<2x256xf32>
    %822 = arith.addf %819, %821 : vector<2x256xf32>
    %823 = vector.shape_cast %822 : vector<2x256xf32> to vector<1x2x256xf32>
    %cst_208 = arith.constant dense<0.000000e+00> : vector<1xf32>
    %824 = vector.multi_reduction <add>, %823, %cst_208 [1, 2] : vector<1x2x256xf32> to vector<1xf32>
    %825 = vector.shape_cast %824 : vector<1xf32> to vector<1x1x1xf32>
    %826 = vector.extract %825[0, 0, 0] : f32 from vector<1x1x1xf32>
    %cst_209 = arith.constant 5.120000e+02 : f32
    %827 = arith.divf %826, %cst_209 : f32
    %828 = vector.broadcast %827 : f32 to vector<2x256xf32>
    %829 = arith.subf %822, %828 : vector<2x256xf32>
    %830 = arith.mulf %829, %829 : vector<2x256xf32>
    %831 = vector.shape_cast %830 : vector<2x256xf32> to vector<1x2x256xf32>
    %cst_210 = arith.constant dense<0.000000e+00> : vector<1xf32>
    %832 = vector.multi_reduction <add>, %831, %cst_210 [1, 2] : vector<1x2x256xf32> to vector<1xf32>
    %833 = vector.shape_cast %832 : vector<1xf32> to vector<1x1x1xf32>
    %834 = vector.extract %833[0, 0, 0] : f32 from vector<1x1x1xf32>
    %cst_211 = arith.constant 5.120000e+02 : f32
    %835 = arith.divf %834, %cst_211 : f32
    %836 = vector.broadcast %827 : f32 to vector<2x256xf32>
    %837 = arith.subf %822, %836 : vector<2x256xf32>
    %cst_212 = arith.constant 9.99999974E-6 : f32
    %838 = arith.addf %835, %cst_212 : f32
    %839 = math.rsqrt %838 : f32
    %840 = vector.broadcast %839 : f32 to vector<2x256xf32>
    %841 = arith.mulf %837, %840 : vector<2x256xf32>
    %c0_213 = arith.constant 0 : index
    %842 = memref.load %arg9[%c0_213] : memref<2xf32, #tpu.memory_space<smem>>
    %843 = vector.broadcast %842 : f32 to vector<2x256xf32>
    %844 = arith.mulf %841, %843 : vector<2x256xf32>
    %c1_214 = arith.constant 1 : index
    %845 = memref.load %arg9[%c1_214] : memref<2xf32, #tpu.memory_space<smem>>
    %846 = vector.broadcast %845 : f32 to vector<2x256xf32>
    %847 = arith.addf %844, %846 : vector<2x256xf32>
    %cst_215 = arith.constant 5.000000e-01 : f32
    %848 = vector.broadcast %cst_215 : f32 to vector<2x256xf32>
    %849 = arith.mulf %848, %847 : vector<2x256xf32>
    %850 = math.tanh %849 : vector<2x256xf32>
    %cst_216 = arith.constant 5.000000e-01 : f32
    %851 = vector.broadcast %cst_216 : f32 to vector<2x256xf32>
    %852 = arith.mulf %851, %850 : vector<2x256xf32>
    %cst_217 = arith.constant 5.000000e-01 : f32
    %853 = vector.broadcast %cst_217 : f32 to vector<2x256xf32>
    %854 = arith.addf %852, %853 : vector<2x256xf32>
    %855 = vector.shape_cast %24 : vector<2x4xf32> to vector<2x4x1xf32>
    %856 = vector.broadcast %855 : vector<2x4x1xf32> to vector<2x4x256xf32>
    %857 = arith.mulf %0, %856 : vector<2x4x256xf32>
    %858 = vector.shape_cast %854 : vector<2x256xf32> to vector<2x1x256xf32>
    %859 = vector.broadcast %858 : vector<2x1x256xf32> to vector<2x4x256xf32>
    %860 = arith.mulf %857, %859 : vector<2x4x256xf32>
    %c0_218 = arith.constant 0 : index
    %c0_219 = arith.constant 0 : index
    %c0_220 = arith.constant 0 : index
    %861 = vector.load %arg10[%c0_218, %c0_219, %c0_220] : memref<2x4x256xf32, #tpu.memory_space<vmem>>, vector<2x4x256xf32>
    tpu.vector_store %arg10[%c0_218, %c0_219, %c0_220], %860 {strides = array<i32>} : memref<2x4x256xf32, #tpu.memory_space<vmem>>, vector<2x4x256xf32>,
    return
  }
}

</mosaic_0001>

<llo_original>
// kernel: cbam_forward.1
$region0: #{cbam_forward.1}
  #allocation0 [shape = 'u32[]', space=smem, size = 0x4, offset = 0x4, fixed_abs, tag = 'smem constant byte address 0x4 - core index']
  #allocation1 [shape = 'u32[144,128]{1,0:T(1,128)}', space=vmem, size = 0x12000, scoped, tag = 'internal scratch']
  #allocation2 [shape = 'f32[1]{0:T(128)S(6)}', space=smem, size = 0x200, scoped, tag = 'scoped memory for cbam_forward.1']
  %s0 = inlined_call_operand.hbm [shape: f32[2,4,256], index: 0, kind: input, shape index: {}]
  %s1 = inlined_call_operand.hbm [shape: s32[2,256], index: 1, kind: input, shape index: {}]
  %s2 = inlined_call_operand.hbm [shape: s32[2,256], index: 2, kind: input, shape index: {}]
  %s3 = inlined_call_operand.hbm [shape: f32[4,8], index: 3, kind: input, shape index: {}]
  %s4 = inlined_call_operand.hbm [shape: f32[1,8], index: 4, kind: input, shape index: {}]
  %s5 = inlined_call_operand.hbm [shape: f32[8,4], index: 5, kind: input, shape index: {}]
  %s6 = inlined_call_operand.hbm [shape: f32[1,4], index: 6, kind: input, shape index: {}]
  %s7 = inlined_call_operand.hbm [shape: f32[98], index: 7, kind: input, shape index: {}]
  %s8 = inlined_call_operand.<no memory space> [shape: f32[1], index: 8, kind: input, shape index: {}]
  %s9 = inlined_call_operand.hbm [shape: f32[2], index: 9, kind: input, shape index: {}]
  %s10 = inlined_call_operand.hbm [shape: f32[2,4,256], index: 10, kind: output, shape index: {}]
  %s11 = sld [smem:[#allocation0]]
  $region86: #{cbam_forward.1} parent=0
    _
  %s13 = ssub.s32 1, %s11
  %s14 = scalar_select 0, %s13, %s11
  %15 = sst [smem:[#allocation2]] %s8
  $region1: #{cbam_forward.1} parent=0
    #allocation3 [shape = 'u8[8192]{0}', space=vmem, size = 0x2000, scoped, tag = 'input window, operand 0, single buffered']
    #allocation4 [shape = 's32[1]{0}', space=sflag, size = 0x4, scoped, tag = 'scoped memory for cbam_forward.1']
    #allocation5 [shape = 's32[1]{0}', space=sflag, size = 0x4, scoped, tag = 'scoped memory for cbam_forward.1']
    #allocation6 [shape = 's32[1]{0}', space=sflag, size = 0x4, scoped, tag = 'scoped memory for cbam_forward.1']
    #allocation7 [shape = 'u8[2048]{0}', space=vmem, size = 0x800, scoped, tag = 'input window, operand 1, single buffered']
    #allocation8 [shape = 's32[1]{0}', space=sflag, size = 0x4, scoped, tag = 'scoped memory for cbam_forward.1']
    #allocation9 [shape = 'u8[2048]{0}', space=vmem, size = 0x800, scoped, tag = 'input window, operand 2, single buffered']
    #allocation10 [shape = 'u8[2048]{0}', space=vmem, size = 0x800, scoped, tag = 'input window, operand 3, single buffered']
    #allocation11 [shape = 's32[1]{0}', space=sflag, size = 0x4, scoped, tag = 'scoped memory for cbam_forward.1']
    #allocation12 [shape = 'u8[512]{0}', space=vmem, size = 0x400, scoped, tag = 'input window, operand 4, single buffered']
    #allocation13 [shape = 'u8[4096]{0}', space=vmem, size = 0x1000, scoped, tag = 'input window, operand 5, single buffered']
    #allocation14 [shape = 's32[1]{0}', space=sflag, size = 0x4, scoped, tag = 'scoped memory for cbam_forward.1']
    #allocation15 [shape = 'u8[512]{0}', space=vmem, size = 0x400, scoped, tag = 'input window, operand 6, single buffered']
    #allocation16 [shape = 'u8[512]{0}', space=smem, size = 0x200, scoped, tag = 'input window, operand 7, single buffered']
    #allocation17 [shape = 'u8[512]{0}', space=smem, size = 0x200, scoped, tag = 'input window, operand 9, single buffered']
    #allocation18 [shape = 's32[1]{0}', space=sflag, size = 0x4, scoped, tag = 'scoped memory for cbam_forward.1']
    #allocation19 [shape = 'u8[8192]{0}', space=vmem, size = 0x2000, scoped, tag = 'output window, operand 0, single buffered']
    %16 = vsyncpa [#allocation4], 0
    %17 = vsyncpa [#allocation8], 0
    %18 = vsyncpa [#allocation11], 0
    %19 = vsyncpa [#allocation14], 0
    %20 = vsyncpa [#allocation6], 0
    %21 = vsyncpa [#allocation18], 0
    %22 = vsyncpa [#allocation5], 0
    // Predicated region
    $region2: #{cbam_forward.1} parent=1 // pred_check
      _
    $region3: #{cbam_forward.1} parent=1 // pred_check_branch
      %24 = sbr.rel (0) target = $region5
    $region4: #{cbam_forward.1} parent=1 // pred_region
      %s26 = ssub.s32 256, 256
      %27 = vsyncadd [#allocation4], %s26
      %s28 = sshll.u32 [#allocation3], 4
      %s29 = int_to_ptr.vmem [resolvable:$true] %s28
      %34 = dma.hbm_to_vmem [thread:$0]  %s0, 256, %s29, [#allocation4], 128, 128, 8
    $region5: #{cbam_forward.1} parent=1 // pred_fallthru
      _
    // Predicated region
    $region6: #{cbam_forward.1} parent=1 // pred_check
      _
    $region7: #{cbam_forward.1} parent=1 // pred_check_branch
      %36 = sbr.rel (0) target = $region9
    $region8: #{cbam_forward.1} parent=1 // pred_region
      %s38 = ssub.s32 64, 64
      %39 = vsyncadd [#allocation8], %s38
      %s41 = sshll.u32 [#allocation7], 4
      %s42 = int_to_ptr.vmem [resolvable:$true] %s41
      %44 = dma.hbm_to_vmem [thread:$0]  %s1, 64, %s42, [#allocation8]
    $region9: #{cbam_forward.1} parent=1 // pred_fallthru
      _
    // Predicated region
    $region10: #{cbam_forward.1} parent=1 // pred_check
      _
    $region11: #{cbam_forward.1} parent=1 // pred_check_branch
      %46 = sbr.rel (0) target = $region13
    $region12: #{cbam_forward.1} parent=1 // pred_region
      %s48 = ssub.s32 64, 64
      %49 = vsyncadd [#allocation8], %s48
      %s51 = sshll.u32 [#allocation9], 4
      %s52 = int_to_ptr.vmem [resolvable:$true] %s51
      %54 = dma.hbm_to_vmem [thread:$0]  %s2, 64, %s52, [#allocation8]
    $region13: #{cbam_forward.1} parent=1 // pred_fallthru
      _
    // Predicated region
    $region14: #{cbam_forward.1} parent=1 // pred_check
      _
    $region15: #{cbam_forward.1} parent=1 // pred_check_branch
      %56 = sbr.rel (0) target = $region17
    $region16: #{cbam_forward.1} parent=1 // pred_region
      %s58 = ssub.s32 64, 64
      %59 = vsyncadd [#allocation11], %s58
      %s61 = sshll.u32 [#allocation10], 4
      %s62 = int_to_ptr.vmem [resolvable:$true] %s61
      %64 = dma.hbm_to_vmem [thread:$0]  %s3, 64, %s62, [#allocation11]
    $region17: #{cbam_forward.1} parent=1 // pred_fallthru
      _
    // Predicated region
    $region18: #{cbam_forward.1} parent=1 // pred_check
      _
    $region19: #{cbam_forward.1} parent=1 // pred_check_branch
      %66 = sbr.rel (0) target = $region21
    $region20: #{cbam_forward.1} parent=1 // pred_region
      %s68 = ssub.s32 16, 16
      %69 = vsyncadd [#allocation11], %s68
      %s71 = sshll.u32 [#allocation12], 4
      %s72 = int_to_ptr.vmem [resolvable:$true] %s71
      %74 = dma.hbm_to_vmem [thread:$0]  %s4, 16, %s72, [#allocation11]
    $region21: #{cbam_forward.1} parent=1 // pred_fallthru
      _
    // Predicated region
    $region22: #{cbam_forward.1} parent=1 // pred_check
      _
    $region23: #{cbam_forward.1} parent=1 // pred_check_branch
      %76 = sbr.rel (0) target = $region25
    $region24: #{cbam_forward.1} parent=1 // pred_region
      %s78 = ssub.s32 128, 128
      %79 = vsyncadd [#allocation14], %s78
      %s81 = sshll.u32 [#allocation13], 4
      %s82 = int_to_ptr.vmem [resolvable:$true] %s81
      %84 = dma.hbm_to_vmem [thread:$0]  %s5, 128, %s82, [#allocation14]
    $region25: #{cbam_forward.1} parent=1 // pred_fallthru
      _
    // Predicated region
    $region26: #{cbam_forward.1} parent=1 // pred_check
      _
    $region27: #{cbam_forward.1} parent=1 // pred_check_branch
      %86 = sbr.rel (0) target = $region29
    $region28: #{cbam_forward.1} parent=1 // pred_region
      %s88 = ssub.s32 16, 16
      %89 = vsyncadd [#allocation14], %s88
      %s91 = sshll.u32 [#allocation15], 4
      %s92 = int_to_ptr.vmem [resolvable:$true] %s91
      %94 = dma.hbm_to_vmem [thread:$0]  %s6, 16, %s92, [#allocation14]
    $region29: #{cbam_forward.1} parent=1 // pred_fallthru
      _
    // Predicated region
    $region30: #{cbam_forward.1} parent=1 // pred_check
      _
    $region31: #{cbam_forward.1} parent=1 // pred_check_branch
      %96 = sbr.rel (0) target = $region33
    $region32: #{cbam_forward.1} parent=1 // pred_region
      %s98 = ssub.s32 16, 16
      %99 = vsyncadd [#allocation6], %s98
      %102 = dma.hbm_to_smem %s7, 16, [#allocation16], [#allocation6]
    $region33: #{cbam_forward.1} parent=1 // pred_fallthru
      _
    // Predicated region
    $region34: #{cbam_forward.1} parent=1 // pred_check
      _
    $region35: #{cbam_forward.1} parent=1 // pred_check_branch
      %104 = sbr.rel (0) target = $region37
    $region36: #{cbam_forward.1} parent=1 // pred_region
      _
    $region37: #{cbam_forward.1} parent=1 // pred_fallthru
      _
    // Predicated region
    $region38: #{cbam_forward.1} parent=1 // pred_check
      _
    $region39: #{cbam_forward.1} parent=1 // pred_check_branch
      %106 = sbr.rel (0) target = $region41
    $region40: #{cbam_forward.1} parent=1 // pred_region
      %s108 = ssub.s32 16, 16
      %109 = vsyncadd [#allocation18], %s108
      %112 = dma.hbm_to_smem %s9, 16, [#allocation17], [#allocation18]
    $region41: #{cbam_forward.1} parent=1 // pred_fallthru
      _
    // Predicated region
    $region42: #{cbam_forward.1} parent=1 // pred_check
      _
    $region43: #{cbam_forward.1} parent=1 // pred_check_branch
      %114 = sbr.rel (0) target = $region45
    $region44: #{cbam_forward.1} parent=1 // pred_region
      %115 = dma.done [#allocation4], 256
    $region45: #{cbam_forward.1} parent=1 // pred_fallthru
      _
    // Predicated region
    $region46: #{cbam_forward.1} parent=1 // pred_check
      _
    $region47: #{cbam_forward.1} parent=1 // pred_check_branch
      %117 = sbr.rel (0) target = $region49
    $region48: #{cbam_forward.1} parent=1 // pred_region
      %118 = dma.done [#allocation8], 64
    $region49: #{cbam_forward.1} parent=1 // pred_fallthru
      _
    // Predicated region
    $region50: #{cbam_forward.1} parent=1 // pred_check
      _
    $region51: #{cbam_forward.1} parent=1 // pred_check_branch
      %120 = sbr.rel (0) target = $region53
    $region52: #{cbam_forward.1} parent=1 // pred_region
      %121 = dma.done [#allocation8], 64
    $region53: #{cbam_forward.1} parent=1 // pred_fallthru
      _
    // Predicated region
    $region54: #{cbam_forward.1} parent=1 // pred_check
      _
    $region55: #{cbam_forward.1} parent=1 // pred_check_branch
      %123 = sbr.rel (0) target = $region57
    $region56: #{cbam_forward.1} parent=1 // pred_region
      %124 = dma.done [#allocation11], 64
    $region57: #{cbam_forward.1} parent=1 // pred_fallthru
      _
    // Predicated region
    $region58: #{cbam_forward.1} parent=1 // pred_check
      _
    $region59: #{cbam_forward.1} parent=1 // pred_check_branch
      %126 = sbr.rel (0) target = $region61
    $region60: #{cbam_forward.1} parent=1 // pred_region
      %127 = dma.done [#allocation11], 16
    $region61: #{cbam_forward.1} parent=1 // pred_fallthru
      _
    // Predicated region
    $region62: #{cbam_forward.1} parent=1 // pred_check
      _
    $region63: #{cbam_forward.1} parent=1 // pred_check_branch
      %129 = sbr.rel (0) target = $region65
    $region64: #{cbam_forward.1} parent=1 // pred_region
      %130 = dma.done [#allocation14], 128
    $region65: #{cbam_forward.1} parent=1 // pred_fallthru
      _
    // Predicated region
    $region66: #{cbam_forward.1} parent=1 // pred_check
      _
    $region67: #{cbam_forward.1} parent=1 // pred_check_branch
      %132 = sbr.rel (0) target = $region69
    $region68: #{cbam_forward.1} parent=1 // pred_region
      %133 = dma.done [#allocation14], 16
    $region69: #{cbam_forward.1} parent=1 // pred_fallthru
      _
    // Predicated region
    $region70: #{cbam_forward.1} parent=1 // pred_check
      _
    $region71: #{cbam_forward.1} parent=1 // pred_check_branch
      %135 = sbr.rel (0) target = $region73
    $region72: #{cbam_forward.1} parent=1 // pred_region
      %136 = dma.done [#allocation6], 16
    $region73: #{cbam_forward.1} parent=1 // pred_fallthru
      _
    // Predicated region
    $region74: #{cbam_forward.1} parent=1 // pred_check
      _
    $region75: #{cbam_forward.1} parent=1 // pred_check_branch
      %138 = sbr.rel (0) target = $region77
    $region76: #{cbam_forward.1} parent=1 // pred_region
      %139 = dma.done [#allocation18], 16
    $region77: #{cbam_forward.1} parent=1 // pred_fallthru
      _
    %140 = sfence
    %v141 = vld [vmem:[#allocation3] sm:$0xff]
    %v142 = vld [vmem:[#allocation3 + $0x8] sm:$0xff]
    %v145 = vcombine.high %v141, %v141
    %v146 = vcombine.high %v142, %v142
    %vm149 = vcmask 1043456
    %v150 = vsel %vm149, %v141, 0.0
    %v151 = vsel %vm149, %v145, 0.0
    %v152 = vadd.f32 %v150, %v151
    %153 = vadd.xlane.f32.xlu0 %v152
    %v154 = vpop.xlane.xlu0 %153
    %v155 = vsel %vm149, %v142, 0.0
    %v156 = vsel %vm149, %v146, 0.0
    %v157 = vadd.f32 %v155, %v156
    %158 = vadd.xlane.f32.xlu0 %v157
    %v159 = vpop.xlane.xlu0 %158
    %v160 = vrcp.pop 256.0
    %v161 = vmul.f32 %v154, %v160
    %v162 = vmul.f32 %v159, %v160
    %v163 = vsel %vm149, %v141, -inf
    %v164 = vsel %vm149, %v145, -inf
    %v165 = vmax.f32 %v163, %v164
    %166 = vmax.xlane.f32.xlu0 %v165
    %v167 = vpop.xlane.xlu0 %166
    %v168 = vsel %vm149, %v142, -inf
    %v169 = vsel %vm149, %v146, -inf
    %v170 = vmax.f32 %v168, %v169
    %171 = vmax.xlane.f32.xlu0 %v170
    %v172 = vpop.xlane.xlu0 %171
    %v173 = vadd.f32 %v161, %v167
    %v174 = vadd.f32 %v162, %v172
    %v175 = vld [vmem:[#allocation10] sm:$0xf]
    %v176 = vld [vmem:[#allocation12] sm:$0x1]
    %v178 = vlaneseq
    %v179 = vshrl.u32 %v178, 7
    %v180 = vsub.s32 0, %v179
    %v181 = vrot.slane %v176, %v180
    %v185 = vlaneseq
    %v186 = vand.u32 %v185, 127
    %v187 = vlaneseq
    %v188 = vshrl.u32 %v187, 7
    %v189 = vsub.s32 %v186, %v188
    %v190 = vrot.slane %v173, %v189
    %v191 = vlaneseq
    %v192 = vshrl.u32 %v191, 7
    %v193 = vsub.s32 %v186, %v192
    %v194 = vrot.slane %v174, %v193
    %vm195 = vcmask 1041409
    %v196 = vsel %vm195, %v194, %v190
    %vm197 = vcmask 31744
    %v198 = vsel %vm197, %v196, 0
    %v201 = vsel %vm149, %v175, 0
    %203 = vmatprep.subr.mxu0 0.0
    %204 = vmatpush1.msra.mxu0 %v201
    %205 = vmatprep.subr.mxu0 0.0
    %206 = vmatpush1.msra.mxu0 0.0
    %207 = vmatprep.subr.mxu0 0.0
    %208 = vmatpush1.msra.mxu0 0.0
    %209 = vmatprep.subr.mxu0 0.0
    %210 = vmatpush1.msra.mxu0 0.0
    %211 = vmatprep.subr.mxu0 0.0
    %212 = vmatpush1.msra.mxu0 0.0
    %213 = vmatprep.subr.mxu0 0.0
    %214 = vmatpush1.msra.mxu0 0.0
    %215 = vmatprep.subr.mxu0 0.0
    %216 = vmatpush1.msra.mxu0 0.0
    %217 = vmatprep.subr.mxu0 0.0
    %218 = vmatpush1.msra.mxu0 0.0
    %219 = vmatprep.subr.mxu0 0.0
    %220 = vmatpush1.msra.mxu0 0.0
    %221 = vmatprep.subr.mxu0 0.0
    %222 = vmatpush1.msra.mxu0 0.0
    %223 = vmatprep.subr.mxu0 0.0
    %224 = vmatpush1.msra.mxu0 0.0
    %225 = vmatprep.subr.mxu0 0.0
    %226 = vmatpush1.msra.mxu0 0.0
    %227 = vmatprep.subr.mxu0 0.0
    %228 = vmatpush1.msra.mxu0 0.0
    %229 = vmatprep.subr.mxu0 0.0
    %230 = vmatpush1.msra.mxu0 0.0
    %231 = vmatprep.subr.mxu0 0.0
    %232 = vmatpush1.msra.mxu0 0.0
    %233 = vmatprep.subr.mxu0 0.0
    %234 = vmatpush1.msra.mxu0 0.0
    %235 = vmatprep.subr.mxu0 0.0
    %236 = vmatpush1.msra.mxu0 0.0
    %237 = vmatprep.subr.mxu0 0.0
    %238 = vmatpush1.msra.mxu0 0.0
    %239 = vmatprep.subr.mxu0 0.0
    %240 = vmatpush1.msra.mxu0 0.0
    %241 = vmatprep.subr.mxu0 0.0
    %242 = vmatpush1.msra.mxu0 0.0
    %243 = vmatprep.subr.mxu0 0.0
    %244 = vmatpush1.msra.mxu0 0.0
    %245 = vmatprep.subr.mxu0 0.0
    %246 = vmatpush1.msra.mxu0 0.0
    %247 = vmatprep.subr.mxu0 0.0
    %248 = vmatpush1.msra.mxu0 0.0
    %249 = vmatprep.subr.mxu0 0.0
    %250 = vmatpush1.msra.mxu0 0.0
    %251 = vmatprep.subr.mxu0 0.0
    %252 = vmatpush1.msra.mxu0 0.0
    %253 = vmatprep.subr.mxu0 0.0
    %254 = vmatpush1.msra.mxu0 0.0
    %255 = vmatprep.subr.mxu0 0.0
    %256 = vmatpush1.msra.mxu0 0.0
    %257 = vmatprep.subr.mxu0 0.0
    %258 = vmatpush1.msra.mxu0 0.0
    %259 = vmatprep.subr.mxu0 0.0
    %260 = vmatpush1.msra.mxu0 0.0
    %261 = vmatprep.subr.mxu0 0.0
    %262 = vmatpush1.msra.mxu0 0.0
    %263 = vmatprep.subr.mxu0 0.0
    %264 = vmatpush1.msra.mxu0 0.0
    %265 = vmatprep.subr.mxu0 0.0
    %266 = vmatpush1.msra.mxu0 0.0
    %267 = vmatprep.mubr.f32.mxu0 0.0
    %268 = vmatmul.mubr.f32.gmra.mrb[0].mxu0 %v198
    %v269 = vpop.f32.mrb[0].mxu0
    %v270 = vadd.f32 %v181, %v269
    %v271 = vpop.f32.mrb[0].mxu0
    %272 = vdwg.mxu0
    %v273 = vmax.f32 %v270, 0.0
    %v274 = vld [vmem:[#allocation13] sm:$0xff]
    %v275 = vld [vmem:[#allocation15] sm:$0x1]
    %v277 = vlaneseq
    %v278 = vshrl.u32 %v277, 7
    %v279 = vsub.s32 0, %v278
    %v280 = vrot.slane %v275, %v279
    %vm282 = vcmask 64512
    %v284 = vsel %vm282, %v273, 0
    %286 = vmatprep.subr.mxu0 0.0
    %287 = vmatpush1.msra.mxu0 %v274
    %288 = vmatprep.subr.mxu0 0.0
    %289 = vmatpush1.msra.mxu0 0.0
    %290 = vmatprep.subr.mxu0 0.0
    %291 = vmatpush1.msra.mxu0 0.0
    %292 = vmatprep.subr.mxu0 0.0
    %293 = vmatpush1.msra.mxu0 0.0
    %294 = vmatprep.subr.mxu0 0.0
    %295 = vmatpush1.msra.mxu0 0.0
    %296 = vmatprep.subr.mxu0 0.0
    %297 = vmatpush1.msra.mxu0 0.0
    %298 = vmatprep.subr.mxu0 0.0
    %299 = vmatpush1.msra.mxu0 0.0
    %300 = vmatprep.subr.mxu0 0.0
    %301 = vmatpush1.msra.mxu0 0.0
    %302 = vmatprep.subr.mxu0 0.0
    %303 = vmatpush1.msra.mxu0 0.0
    %304 = vmatprep.subr.mxu0 0.0
    %305 = vmatpush1.msra.mxu0 0.0
    %306 = vmatprep.subr.mxu0 0.0
    %307 = vmatpush1.msra.mxu0 0.0
    %308 = vmatprep.subr.mxu0 0.0
    %309 = vmatpush1.msra.mxu0 0.0
    %310 = vmatprep.subr.mxu0 0.0
    %311 = vmatpush1.msra.mxu0 0.0
    %312 = vmatprep.subr.mxu0 0.0
    %313 = vmatpush1.msra.mxu0 0.0
    %314 = vmatprep.subr.mxu0 0.0
    %315 = vmatpush1.msra.mxu0 0.0
    %316 = vmatprep.subr.mxu0 0.0
    %317 = vmatpush1.msra.mxu0 0.0
    %318 = vmatprep.subr.mxu0 0.0
    %319 = vmatpush1.msra.mxu0 0.0
    %320 = vmatprep.subr.mxu0 0.0
    %321 = vmatpush1.msra.mxu0 0.0
    %322 = vmatprep.subr.mxu0 0.0
    %323 = vmatpush1.msra.mxu0 0.0
    %324 = vmatprep.subr.mxu0 0.0
    %325 = vmatpush1.msra.mxu0 0.0
    %326 = vmatprep.subr.mxu0 0.0
    %327 = vmatpush1.msra.mxu0 0.0
    %328 = vmatprep.subr.mxu0 0.0
    %329 = vmatpush1.msra.mxu0 0.0
    %330 = vmatprep.subr.mxu0 0.0
    %331 = vmatpush1.msra.mxu0 0.0
    %332 = vmatprep.subr.mxu0 0.0
    %333 = vmatpush1.msra.mxu0 0.0
    %334 = vmatprep.subr.mxu0 0.0
    %335 = vmatpush1.msra.mxu0 0.0
    %336 = vmatprep.subr.mxu0 0.0
    %337 = vmatpush1.msra.mxu0 0.0
    %338 = vmatprep.subr.mxu0 0.0
    %339 = vmatpush1.msra.mxu0 0.0
    %340 = vmatprep.subr.mxu0 0.0
    %341 = vmatpush1.msra.mxu0 0.0
    %342 = vmatprep.subr.mxu0 0.0
    %343 = vmatpush1.msra.mxu0 0.0
    %344 = vmatprep.subr.mxu0 0.0
    %345 = vmatpush1.msra.mxu0 0.0
    %346 = vmatprep.subr.mxu0 0.0
    %347 = vmatpush1.msra.mxu0 0.0
    %348 = vmatprep.subr.mxu0 0.0
    %349 = vmatpush1.msra.mxu0 0.0
    %350 = vmatprep.mubr.f32.mxu0 0.0
    %351 = vmatmul.mubr.f32.gmra.mrb[0].mxu0 %v284
    %v352 = vpop.f32.mrb[0].mxu0
    %v353 = vadd.f32 %v280, %v352
    %v354 = vpop.f32.mrb[0].mxu0
    %355 = vdwg.mxu0
    %v356 = vmul.f32 %v353, 0.5
    %v357 = vtanh.pop %v356
    %v358 = vmul.f32 %v357, 0.5
    %v359 = vadd.f32 %v358, 0.5
    %v360 = vrot.slane %v150, 4
    %v361 = vadd.f32 %v150, %v360
    %v362 = vrot.slane %v361, 2
    %v363 = vadd.f32 %v361, %v362
    %v364 = vrot.slane %v363, 1
    %v365 = vadd.f32 %v363, %v364
    %v366 = vrot.slane %v151, 4
    %v367 = vadd.f32 %v151, %v366
    %v368 = vrot.slane %v367, 2
    %v369 = vadd.f32 %v367, %v368
    %v370 = vrot.slane %v369, 1
    %v371 = vadd.f32 %v369, %v370
    %v372 = vrot.slane %v155, 4
    %v373 = vadd.f32 %v155, %v372
    %v374 = vrot.slane %v373, 2
    %v375 = vadd.f32 %v373, %v374
    %v376 = vrot.slane %v375, 1
    %v377 = vadd.f32 %v375, %v376
    %v378 = vrot.slane %v156, 4
    %v379 = vadd.f32 %v156, %v378
    %v380 = vrot.slane %v379, 2
    %v381 = vadd.f32 %v379, %v380
    %v382 = vrot.slane %v381, 1
    %v383 = vadd.f32 %v381, %v382
    %v384 = vrcp.pop 4.0
    %v385 = vmul.f32 %v365, %v384
    %v386 = vmul.f32 %v371, %v384
    %v387 = vmul.f32 %v377, %v384
    %v388 = vmul.f32 %v383, %v384
    %v389 = vrot.slane %v163, 4
    %v390 = vmax.f32 %v163, %v389
    %v391 = vrot.slane %v390, 2
    %v392 = vmax.f32 %v390, %v391
    %v393 = vrot.slane %v392, 1
    %v394 = vmax.f32 %v392, %v393
    %v395 = vrot.slane %v164, 4
    %v396 = vmax.f32 %v164, %v395
    %v397 = vrot.slane %v396, 2
    %v398 = vmax.f32 %v396, %v397
    %v399 = vrot.slane %v398, 1
    %v400 = vmax.f32 %v398, %v399
    %v401 = vrot.slane %v168, 4
    %v402 = vmax.f32 %v168, %v401
    %v403 = vrot.slane %v402, 2
    %v404 = vmax.f32 %v402, %v403
    %v405 = vrot.slane %v404, 1
    %v406 = vmax.f32 %v404, %v405
    %v407 = vrot.slane %v169, 4
    %v408 = vmax.f32 %v169, %v407
    %v409 = vrot.slane %v408, 2
    %v410 = vmax.f32 %v408, %v409
    %v411 = vrot.slane %v410, 1
    %v412 = vmax.f32 %v410, %v411
    %v413 = vld [vmem:[#allocation7] sm:$0xf]
    %v414 = vld [vmem:[#allocation9] sm:$0xf]
    %s415 = sld [smem:[#allocation16]]
    %s416 = sld [smem:[#allocation16 + $0x31]]
    %v421 = vsel %vm195, %v387, %v385
    %v422 = vsel %vm195, %v388, %v386
    %425 = vrot.lane.b32.xlu0 %v421, 51
    %v426 = vpop.permute.xlu0 %425
    %427 = vrot.lane.b32.xlu0 %v422, 51
    %v428 = vpop.permute.xlu0 %427
    %vm429 = vcmp.lt.s32.totalorder %v186, 51
    %v430 = vsel %vm429, %v426, %v428
    %v431 = vsel %vm429, %v428, %v426
    %v432 = vstv %s415
    %v433 = vmul.f32 %v432, %v431
    %v434 = vmul.f32 %v432, %v430
    %v439 = vsel %vm195, %v406, %v394
    %v440 = vsel %vm195, %v412, %v400
    %443 = vrot.lane.b32.xlu0 %v439, 51
    %v444 = vpop.permute.xlu0 %443
    %445 = vrot.lane.b32.xlu0 %v440, 51
    %v446 = vpop.permute.xlu0 %445
    %v447 = vsel %vm429, %v444, %v446
    %v448 = vsel %vm429, %v446, %v444
    %v449 = vstv %s416
    %v450 = vmul.f32 %v449, %v448
    %v451 = vmul.f32 %v449, %v447
    %v452 = vadd.f32 %v433, %v450
    %v453 = vadd.f32 %v434, %v451
    %vm454 = vcmp.ge.s32.totalorder %v413, 3
    %vm455 = vcmp.ge.s32.totalorder %v414, 3
    %vm456 = vmand %vm454, %vm455
    %v459 = vcombine.low %v452, %v453
    %v461 = vunpack.c.l.s4 1983009808
    %v462 = vunpack.c.0.s8 %v461
    %v463 = vlaneseq
    %v464 = vshrl.u32 %v463, 7
    %v465 = vsub.s32 %v462, %v464
    %v466 = vrot.slane %v459, %v465
    %v468 = vsel %vm456, %v466, 0.0
    %v469 = vadd.f32 %v468, 0.0
    %s470 = sld [smem:[#allocation16 + $0x1]]
    %s471 = sld [smem:[#allocation16 + $0x32]]
    %472 = vrot.lane.b32.xlu0 %v421, 50
    %v473 = vpop.permute.xlu0 %472
    %474 = vrot.lane.b32.xlu0 %v422, 50
    %v475 = vpop.permute.xlu0 %474
    %vm476 = vcmp.lt.s32.totalorder %v186, 50
    %v477 = vsel %vm476, %v473, %v475
    %v478 = vsel %vm476, %v475, %v473
    %v479 = vstv %s470
    %v480 = vmul.f32 %v479, %v478
    %v481 = vmul.f32 %v479, %v477
    %482 = vrot.lane.b32.xlu0 %v439, 50
    %v483 = vpop.permute.xlu0 %482
    %484 = vrot.lane.b32.xlu0 %v440, 50
    %v485 = vpop.permute.xlu0 %484
    %v486 = vsel %vm476, %v483, %v485
    %v487 = vsel %vm476, %v485, %v483
    %v488 = vstv %s471
    %v489 = vmul.f32 %v488, %v487
    %v490 = vmul.f32 %v488, %v486
    %v491 = vadd.f32 %v480, %v489
    %v492 = vadd.f32 %v481, %v490
    %vm493 = vcmp.ge.s32.totalorder %v413, 2
    %vm494 = vmand %vm493, %vm455
    %v497 = vcombine.low %v491, %v492
    %v499 = vunpack.c.l.s4 1983009808
    %v500 = vunpack.c.0.s8 %v499
    %v501 = vlaneseq
    %v502 = vshrl.u32 %v501, 7
    %v503 = vsub.s32 %v500, %v502
    %v504 = vrot.slane %v497, %v503
    %v506 = vsel %vm494, %v504, 0.0
    %v507 = vadd.f32 %v469, %v506
    %s508 = sld [smem:[#allocation16 + $0x2]]
    %s509 = sld [smem:[#allocation16 + $0x33]]
    %510 = vrot.lane.b32.xlu0 %v421, 49
    %v511 = vpop.permute.xlu0 %510
    %512 = vrot.lane.b32.xlu0 %v422, 49
    %v513 = vpop.permute.xlu0 %512
    %vm514 = vcmp.lt.s32.totalorder %v186, 49
    %v515 = vsel %vm514, %v511, %v513
    %v516 = vsel %vm514, %v513, %v511
    %v517 = vstv %s508
    %v518 = vmul.f32 %v517, %v516
    %v519 = vmul.f32 %v517, %v515
    %520 = vrot.lane.b32.xlu0 %v439, 49
    %v521 = vpop.permute.xlu0 %520
    %522 = vrot.lane.b32.xlu0 %v440, 49
    %v523 = vpop.permute.xlu0 %522
    %v524 = vsel %vm514, %v521, %v523
    %v525 = vsel %vm514, %v523, %v521
    %v526 = vstv %s509
    %v527 = vmul.f32 %v526, %v525
    %v528 = vmul.f32 %v526, %v524
    %v529 = vadd.f32 %v518, %v527
    %v530 = vadd.f32 %v519, %v528
    %vm531 = vcmp.ge.s32.totalorder %v413, 1
    %vm532 = vmand %vm531, %vm455
    %v535 = vcombine.low %v529, %v530
    %v537 = vunpack.c.l.s4 1983009808
    %v538 = vunpack.c.0.s8 %v537
    %v539 = vlaneseq
    %v540 = vshrl.u32 %v539, 7
    %v541 = vsub.s32 %v538, %v540
    %v542 = vrot.slane %v535, %v541
    %v544 = vsel %vm532, %v542, 0.0
    %v545 = vadd.f32 %v507, %v544
    %s546 = sld [smem:[#allocation16 + $0x3]]
    %s547 = sld [smem:[#allocation16 + $0x34]]
    %548 = vrot.lane.b32.xlu0 %v421, 48
    %v549 = vpop.permute.xlu0 %548
    %550 = vrot.lane.b32.xlu0 %v422, 48
    %v551 = vpop.permute.xlu0 %550
    %vm552 = vcmp.lt.s32.totalorder %v186, 48
    %v553 = vsel %vm552, %v549, %v551
    %v554 = vsel %vm552, %v551, %v549
    %v555 = vstv %s546
    %v556 = vmul.f32 %v555, %v554
    %v557 = vmul.f32 %v555, %v553
    %558 = vrot.lane.b32.xlu0 %v439, 48
    %v559 = vpop.permute.xlu0 %558
    %560 = vrot.lane.b32.xlu0 %v440, 48
    %v561 = vpop.permute.xlu0 %560
    %v562 = vsel %vm552, %v559, %v561
    %v563 = vsel %vm552, %v561, %v559
    %v564 = vstv %s547
    %v565 = vmul.f32 %v564, %v563
    %v566 = vmul.f32 %v564, %v562
    %v567 = vadd.f32 %v556, %v565
    %v568 = vadd.f32 %v557, %v566
    %v571 = vcombine.low %v567, %v568
    %v573 = vunpack.c.l.s4 1983009808
    %v574 = vunpack.c.0.s8 %v573
    %v575 = vlaneseq
    %v576 = vshrl.u32 %v575, 7
    %v577 = vsub.s32 %v574, %v576
    %v578 = vrot.slane %v571, %v577
    %v580 = vsel %vm455, %v578, 0.0
    %v581 = vadd.f32 %v545, %v580
    %s582 = sld [smem:[#allocation16 + $0x4]]
    %s583 = sld [smem:[#allocation16 + $0x35]]
    %584 = vrot.lane.b32.xlu0 %v421, 47
    %v585 = vpop.permute.xlu0 %584
    %586 = vrot.lane.b32.xlu0 %v422, 47
    %v587 = vpop.permute.xlu0 %586
    %vm588 = vcmp.lt.s32.totalorder %v186, 47
    %v589 = vsel %vm588, %v585, %v587
    %v590 = vsel %vm588, %v587, %v585
    %v591 = vstv %s582
    %v592 = vmul.f32 %v591, %v590
    %v593 = vmul.f32 %v591, %v589
    %594 = vrot.lane.b32.xlu0 %v439, 47
    %v595 = vpop.permute.xlu0 %594
    %596 = vrot.lane.b32.xlu0 %v440, 47
    %v597 = vpop.permute.xlu0 %596
    %v598 = vsel %vm588, %v595, %v597
    %v599 = vsel %vm588, %v597, %v595
    %v600 = vstv %s583
    %v601 = vmul.f32 %v600, %v599
    %v602 = vmul.f32 %v600, %v598
    %v603 = vadd.f32 %v592, %v601
    %v604 = vadd.f32 %v593, %v602
    %vm605 = vcmp.lt.s32.totalorder %v413, 15
    %vm606 = vmand %vm605, %vm455
    %v609 = vcombine.low %v603, %v604
    %v611 = vunpack.c.l.s4 1983009808
    %v612 = vunpack.c.0.s8 %v611
    %v613 = vlaneseq
    %v614 = vshrl.u32 %v613, 7
    %v615 = vsub.s32 %v612, %v614
    %v616 = vrot.slane %v609, %v615
    %v618 = vsel %vm606, %v616, 0.0
    %v619 = vadd.f32 %v581, %v618
    %s620 = sld [smem:[#allocation16 + $0x5]]
    %s621 = sld [smem:[#allocation16 + $0x36]]
    %622 = vrot.lane.b32.xlu0 %v421, 46
    %v623 = vpop.permute.xlu0 %622
    %624 = vrot.lane.b32.xlu0 %v422, 46
    %v625 = vpop.permute.xlu0 %624
    %vm626 = vcmp.lt.s32.totalorder %v186, 46
    %v627 = vsel %vm626, %v623, %v625
    %v628 = vsel %vm626, %v625, %v623
    %v629 = vstv %s620
    %v630 = vmul.f32 %v629, %v628
    %v631 = vmul.f32 %v629, %v627
    %632 = vrot.lane.b32.xlu0 %v439, 46
    %v633 = vpop.permute.xlu0 %632
    %634 = vrot.lane.b32.xlu0 %v440, 46
    %v635 = vpop.permute.xlu0 %634
    %v636 = vsel %vm626, %v633, %v635
    %v637 = vsel %vm626, %v635, %v633
    %v638 = vstv %s621
    %v639 = vmul.f32 %v638, %v637
    %v640 = vmul.f32 %v638, %v636
    %v641 = vadd.f32 %v630, %v639
    %v642 = vadd.f32 %v631, %v640
    %vm643 = vcmp.lt.s32.totalorder %v413, 14
    %vm644 = vmand %vm643, %vm455
    %v647 = vcombine.low %v641, %v642
    %v649 = vunpack.c.l.s4 1983009808
    %v650 = vunpack.c.0.s8 %v649
    %v651 = vlaneseq
    %v652 = vshrl.u32 %v651, 7
    %v653 = vsub.s32 %v650, %v652
    %v654 = vrot.slane %v647, %v653
    %v656 = vsel %vm644, %v654, 0.0
    %v657 = vadd.f32 %v619, %v656
    %s658 = sld [smem:[#allocation16 + $0x6]]
    %s659 = sld [smem:[#allocation16 + $0x37]]
    %660 = vrot.lane.b32.xlu0 %v421, 45
    %v661 = vpop.permute.xlu0 %660
    %662 = vrot.lane.b32.xlu0 %v422, 45
    %v663 = vpop.permute.xlu0 %662
    %vm664 = vcmp.lt.s32.totalorder %v186, 45
    %v665 = vsel %vm664, %v661, %v663
    %v666 = vsel %vm664, %v663, %v661
    %v667 = vstv %s658
    %v668 = vmul.f32 %v667, %v666
    %v669 = vmul.f32 %v667, %v665
    %670 = vrot.lane.b32.xlu0 %v439, 45
    %v671 = vpop.permute.xlu0 %670
    %672 = vrot.lane.b32.xlu0 %v440, 45
    %v673 = vpop.permute.xlu0 %672
    %v674 = vsel %vm664, %v671, %v673
    %v675 = vsel %vm664, %v673, %v671
    %v676 = vstv %s659
    %v677 = vmul.f32 %v676, %v675
    %v678 = vmul.f32 %v676, %v674
    %v679 = vadd.f32 %v668, %v677
    %v680 = vadd.f32 %v669, %v678
    %vm681 = vcmp.lt.s32.totalorder %v413, 13
    %vm682 = vmand %vm681, %vm455
    %v685 = vcombine.low %v679, %v680
    %v687 = vunpack.c.l.s4 1983009808
    %v688 = vunpack.c.0.s8 %v687
    %v689 = vlaneseq
    %v690 = vshrl.u32 %v689, 7
    %v691 = vsub.s32 %v688, %v690
    %v692 = vrot.slane %v685, %v691
    %v694 = vsel %vm682, %v692, 0.0
    %v695 = vadd.f32 %v657, %v694
    %s696 = sld [smem:[#allocation16 + $0x7]]
    %s697 = sld [smem:[#allocation16 + $0x38]]
    %698 = vrot.lane.b32.xlu0 %v421, 35
    %v699 = vpop.permute.xlu0 %698
    %700 = vrot.lane.b32.xlu0 %v422, 35
    %v701 = vpop.permute.xlu0 %700
    %vm702 = vcmp.lt.s32.totalorder %v186, 35
    %v703 = vsel %vm702, %v699, %v701
    %v704 = vsel %vm702, %v701, %v699
    %v705 = vstv %s696
    %v706 = vmul.f32 %v705, %v704
    %v707 = vmul.f32 %v705, %v703
    %708 = vrot.lane.b32.xlu0 %v439, 35
    %v709 = vpop.permute.xlu0 %708
    %710 = vrot.lane.b32.xlu0 %v440, 35
    %v711 = vpop.permute.xlu0 %710
    %v712 = vsel %vm702, %v709, %v711
    %v713 = vsel %vm702, %v711, %v709
    %v714 = vstv %s697
    %v715 = vmul.f32 %v714, %v713
    %v716 = vmul.f32 %v714, %v712
    %v717 = vadd.f32 %v706, %v715
    %v718 = vadd.f32 %v707, %v716
    %vm719 = vcmp.ge.s32.totalorder %v414, 2
    %vm720 = vmand %vm454, %vm719
    %v723 = vcombine.low %v717, %v718
    %v725 = vunpack.c.l.s4 1983009808
    %v726 = vunpack.c.0.s8 %v725
    %v727 = vlaneseq
    %v728 = vshrl.u32 %v727, 7
    %v729 = vsub.s32 %v726, %v728
    %v730 = vrot.slane %v723, %v729
    %v732 = vsel %vm720, %v730, 0.0
    %v733 = vadd.f32 %v695, %v732
    %s734 = sld [smem:[#allocation16 + $0x8]]
    %s735 = sld [smem:[#allocation16 + $0x39]]
    %736 = vrot.lane.b32.xlu0 %v421, 34
    %v737 = vpop.permute.xlu0 %736
    %738 = vrot.lane.b32.xlu0 %v422, 34
    %v739 = vpop.permute.xlu0 %738
    %vm740 = vcmp.lt.s32.totalorder %v186, 34
    %v741 = vsel %vm740, %v737, %v739
    %v742 = vsel %vm740, %v739, %v737
    %v743 = vstv %s734
    %v744 = vmul.f32 %v743, %v742
    %v745 = vmul.f32 %v743, %v741
    %746 = vrot.lane.b32.xlu0 %v439, 34
    %v747 = vpop.permute.xlu0 %746
    %748 = vrot.lane.b32.xlu0 %v440, 34
    %v749 = vpop.permute.xlu0 %748
    %v750 = vsel %vm740, %v747, %v749
    %v751 = vsel %vm740, %v749, %v747
    %v752 = vstv %s735
    %v753 = vmul.f32 %v752, %v751
    %v754 = vmul.f32 %v752, %v750
    %v755 = vadd.f32 %v744, %v753
    %v756 = vadd.f32 %v745, %v754
    %vm757 = vmand %vm493, %vm719
    %v760 = vcombine.low %v755, %v756
    %v762 = vunpack.c.l.s4 1983009808
    %v763 = vunpack.c.0.s8 %v762
    %v764 = vlaneseq
    %v765 = vshrl.u32 %v764, 7
    %v766 = vsub.s32 %v763, %v765
    %v767 = vrot.slane %v760, %v766
    %v769 = vsel %vm757, %v767, 0.0
    %v770 = vadd.f32 %v733, %v769
    %s771 = sld [smem:[#allocation16 + $0x9]]
    %s772 = sld [smem:[#allocation16 + $0x3a]]
    %773 = vrot.lane.b32.xlu0 %v421, 33
    %v774 = vpop.permute.xlu0 %773
    %775 = vrot.lane.b32.xlu0 %v422, 33
    %v776 = vpop.permute.xlu0 %775
    %vm777 = vcmp.lt.s32.totalorder %v186, 33
    %v778 = vsel %vm777, %v774, %v776
    %v779 = vsel %vm777, %v776, %v774
    %v780 = vstv %s771
    %v781 = vmul.f32 %v780, %v779
    %v782 = vmul.f32 %v780, %v778
    %783 = vrot.lane.b32.xlu0 %v439, 33
    %v784 = vpop.permute.xlu0 %783
    %785 = vrot.lane.b32.xlu0 %v440, 33
    %v786 = vpop.permute.xlu0 %785
    %v787 = vsel %vm777, %v784, %v786
    %v788 = vsel %vm777, %v786, %v784
    %v789 = vstv %s772
    %v790 = vmul.f32 %v789, %v788
    %v791 = vmul.f32 %v789, %v787
    %v792 = vadd.f32 %v781, %v790
    %v793 = vadd.f32 %v782, %v791
    %vm794 = vmand %vm531, %vm719
    %v797 = vcombine.low %v792, %v793
    %v799 = vunpack.c.l.s4 1983009808
    %v800 = vunpack.c.0.s8 %v799
    %v801 = vlaneseq
    %v802 = vshrl.u32 %v801, 7
    %v803 = vsub.s32 %v800, %v802
    %v804 = vrot.slane %v797, %v803
    %v806 = vsel %vm794, %v804, 0.0
    %v807 = vadd.f32 %v770, %v806
    %s808 = sld [smem:[#allocation16 + $0xa]]
    %s809 = sld [smem:[#allocation16 + $0x3b]]
    %810 = vrot.lane.b32.xlu0 %v421, 32
    %v811 = vpop.permute.xlu0 %810
    %812 = vrot.lane.b32.xlu0 %v422, 32
    %v813 = vpop.permute.xlu0 %812
    %vm814 = vcmp.lt.s32.totalorder %v186, 32
    %v815 = vsel %vm814, %v811, %v813
    %v816 = vsel %vm814, %v813, %v811
    %v817 = vstv %s808
    %v818 = vmul.f32 %v817, %v816
    %v819 = vmul.f32 %v817, %v815
    %820 = vrot.lane.b32.xlu0 %v439, 32
    %v821 = vpop.permute.xlu0 %820
    %822 = vrot.lane.b32.xlu0 %v440, 32
    %v823 = vpop.permute.xlu0 %822
    %v824 = vsel %vm814, %v821, %v823
    %v825 = vsel %vm814, %v823, %v821
    %v826 = vstv %s809
    %v827 = vmul.f32 %v826, %v825
    %v828 = vmul.f32 %v826, %v824
    %v829 = vadd.f32 %v818, %v827
    %v830 = vadd.f32 %v819, %v828
    %v833 = vcombine.low %v829, %v830
    %v835 = vunpack.c.l.s4 1983009808
    %v836 = vunpack.c.0.s8 %v835
    %v837 = vlaneseq
    %v838 = vshrl.u32 %v837, 7
    %v839 = vsub.s32 %v836, %v838
    %v840 = vrot.slane %v833, %v839
    %v842 = vsel %vm719, %v840, 0.0
    %v843 = vadd.f32 %v807, %v842
    %s844 = sld [smem:[#allocation16 + $0xb]]
    %s845 = sld [smem:[#allocation16 + $0x3c]]
    %846 = vrot.lane.b32.xlu0 %v421, 31
    %v847 = vpop.permute.xlu0 %846
    %848 = vrot.lane.b32.xlu0 %v422, 31
    %v849 = vpop.permute.xlu0 %848
    %vm850 = vcmp.lt.s32.totalorder %v186, 31
    %v851 = vsel %vm850, %v847, %v849
    %v852 = vsel %vm850, %v849, %v847
    %v853 = vstv %s844
    %v854 = vmul.f32 %v853, %v852
    %v855 = vmul.f32 %v853, %v851
    %856 = vrot.lane.b32.xlu0 %v439, 31
    %v857 = vpop.permute.xlu0 %856
    %858 = vrot.lane.b32.xlu0 %v440, 31
    %v859 = vpop.permute.xlu0 %858
    %v860 = vsel %vm850, %v857, %v859
    %v861 = vsel %vm850, %v859, %v857
    %v862 = vstv %s845
    %v863 = vmul.f32 %v862, %v861
    %v864 = vmul.f32 %v862, %v860
    %v865 = vadd.f32 %v854, %v863
    %v866 = vadd.f32 %v855, %v864
    %vm867 = vmand %vm605, %vm719
    %v870 = vcombine.low %v865, %v866
    %v872 = vunpack.c.l.s4 1983009808
    %v873 = vunpack.c.0.s8 %v872
    %v874 = vlaneseq
    %v875 = vshrl.u32 %v874, 7
    %v876 = vsub.s32 %v873, %v875
    %v877 = vrot.slane %v870, %v876
    %v879 = vsel %vm867, %v877, 0.0
    %v880 = vadd.f32 %v843, %v879
    %s881 = sld [smem:[#allocation16 + $0xc]]
    %s882 = sld [smem:[#allocation16 + $0x3d]]
    %883 = vrot.lane.b32.xlu0 %v421, 30
    %v884 = vpop.permute.xlu0 %883
    %885 = vrot.lane.b32.xlu0 %v422, 30
    %v886 = vpop.permute.xlu0 %885
    %vm887 = vcmp.lt.s32.totalorder %v186, 30
    %v888 = vsel %vm887, %v884, %v886
    %v889 = vsel %vm887, %v886, %v884
    %v890 = vstv %s881
    %v891 = vmul.f32 %v890, %v889
    %v892 = vmul.f32 %v890, %v888
    %893 = vrot.lane.b32.xlu0 %v439, 30
    %v894 = vpop.permute.xlu0 %893
    %895 = vrot.lane.b32.xlu0 %v440, 30
    %v896 = vpop.permute.xlu0 %895
    %v897 = vsel %vm887, %v894, %v896
    %v898 = vsel %vm887, %v896, %v894
    %v899 = vstv %s882
    %v900 = vmul.f32 %v899, %v898
    %v901 = vmul.f32 %v899, %v897
    %v902 = vadd.f32 %v891, %v900
    %v903 = vadd.f32 %v892, %v901
    %vm904 = vmand %vm643, %vm719
    %v907 = vcombine.low %v902, %v903
    %v909 = vunpack.c.l.s4 1983009808
    %v910 = vunpack.c.0.s8 %v909
    %v911 = vlaneseq
    %v912 = vshrl.u32 %v911, 7
    %v913 = vsub.s32 %v910, %v912
    %v914 = vrot.slane %v907, %v913
    %v916 = vsel %vm904, %v914, 0.0
    %v917 = vadd.f32 %v880, %v916
    %s918 = sld [smem:[#allocation16 + $0xd]]
    %s919 = sld [smem:[#allocation16 + $0x3e]]
    %920 = vrot.lane.b32.xlu0 %v421, 29
    %v921 = vpop.permute.xlu0 %920
    %922 = vrot.lane.b32.xlu0 %v422, 29
    %v923 = vpop.permute.xlu0 %922
    %vm924 = vcmp.lt.s32.totalorder %v186, 29
    %v925 = vsel %vm924, %v921, %v923
    %v926 = vsel %vm924, %v923, %v921
    %v927 = vstv %s918
    %v928 = vmul.f32 %v927, %v926
    %v929 = vmul.f32 %v927, %v925
    %930 = vrot.lane.b32.xlu0 %v439, 29
    %v931 = vpop.permute.xlu0 %930
    %932 = vrot.lane.b32.xlu0 %v440, 29
    %v933 = vpop.permute.xlu0 %932
    %v934 = vsel %vm924, %v931, %v933
    %v935 = vsel %vm924, %v933, %v931
    %v936 = vstv %s919
    %v937 = vmul.f32 %v936, %v935
    %v938 = vmul.f32 %v936, %v934
    %v939 = vadd.f32 %v928, %v937
    %v940 = vadd.f32 %v929, %v938
    %vm941 = vmand %vm681, %vm719
    %v944 = vcombine.low %v939, %v940
    %v946 = vunpack.c.l.s4 1983009808
    %v947 = vunpack.c.0.s8 %v946
    %v948 = vlaneseq
    %v949 = vshrl.u32 %v948, 7
    %v950 = vsub.s32 %v947, %v949
    %v951 = vrot.slane %v944, %v950
    %v953 = vsel %vm941, %v951, 0.0
    %v954 = vadd.f32 %v917, %v953
    %s955 = sld [smem:[#allocation16 + $0xe]]
    %s956 = sld [smem:[#allocation16 + $0x3f]]
    %957 = vrot.lane.b32.xlu0 %v421, 19
    %v958 = vpop.permute.xlu0 %957
    %959 = vrot.lane.b32.xlu0 %v422, 19
    %v960 = vpop.permute.xlu0 %959
    %vm961 = vcmp.lt.s32.totalorder %v186, 19
    %v962 = vsel %vm961, %v958, %v960
    %v963 = vsel %vm961, %v960, %v958
    %v964 = vstv %s955
    %v965 = vmul.f32 %v964, %v963
    %v966 = vmul.f32 %v964, %v962
    %967 = vrot.lane.b32.xlu0 %v439, 19
    %v968 = vpop.permute.xlu0 %967
    %969 = vrot.lane.b32.xlu0 %v440, 19
    %v970 = vpop.permute.xlu0 %969
    %v971 = vsel %vm961, %v968, %v970
    %v972 = vsel %vm961, %v970, %v968
    %v973 = vstv %s956
    %v974 = vmul.f32 %v973, %v972
    %v975 = vmul.f32 %v973, %v971
    %v976 = vadd.f32 %v965, %v974
    %v977 = vadd.f32 %v966, %v975
    %vm978 = vcmp.ge.s32.totalorder %v414, 1
    %vm979 = vmand %vm454, %vm978
    %v982 = vcombine.low %v976, %v977
    %v984 = vunpack.c.l.s4 1983009808
    %v985 = vunpack.c.0.s8 %v984
    %v986 = vlaneseq
    %v987 = vshrl.u32 %v986, 7
    %v988 = vsub.s32 %v985, %v987
    %v989 = vrot.slane %v982, %v988
    %v991 = vsel %vm979, %v989, 0.0
    %v992 = vadd.f32 %v954, %v991
    %s993 = sld [smem:[#allocation16 + $0xf]]
    %s994 = sld [smem:[#allocation16 + $0x40]]
    %995 = vrot.lane.b32.xlu0 %v421, 18
    %v996 = vpop.permute.xlu0 %995
    %997 = vrot.lane.b32.xlu0 %v422, 18
    %v998 = vpop.permute.xlu0 %997
    %vm999 = vcmp.lt.s32.totalorder %v186, 18
    %v1000 = vsel %vm999, %v996, %v998
    %v1001 = vsel %vm999, %v998, %v996
    %v1002 = vstv %s993
    %v1003 = vmul.f32 %v1002, %v1001
    %v1004 = vmul.f32 %v1002, %v1000
    %1005 = vrot.lane.b32.xlu0 %v439, 18
    %v1006 = vpop.permute.xlu0 %1005
    %1007 = vrot.lane.b32.xlu0 %v440, 18
    %v1008 = vpop.permute.xlu0 %1007
    %v1009 = vsel %vm999, %v1006, %v1008
    %v1010 = vsel %vm999, %v1008, %v1006
    %v1011 = vstv %s994
    %v1012 = vmul.f32 %v1011, %v1010
    %v1013 = vmul.f32 %v1011, %v1009
    %v1014 = vadd.f32 %v1003, %v1012
    %v1015 = vadd.f32 %v1004, %v1013
    %vm1016 = vmand %vm493, %vm978
    %v1019 = vcombine.low %v1014, %v1015
    %v1021 = vunpack.c.l.s4 1983009808
    %v1022 = vunpack.c.0.s8 %v1021
    %v1023 = vlaneseq
    %v1024 = vshrl.u32 %v1023, 7
    %v1025 = vsub.s32 %v1022, %v1024
    %v1026 = vrot.slane %v1019, %v1025
    %v1028 = vsel %vm1016, %v1026, 0.0
    %v1029 = vadd.f32 %v992, %v1028
    %s1030 = sld [smem:[#allocation16 + $0x10]]
    %s1031 = sld [smem:[#allocation16 + $0x41]]
    %1032 = vrot.lane.b32.xlu0 %v421, 17
    %v1033 = vpop.permute.xlu0 %1032
    %1034 = vrot.lane.b32.xlu0 %v422, 17
    %v1035 = vpop.permute.xlu0 %1034
    %vm1036 = vcmp.lt.s32.totalorder %v186, 17
    %v1037 = vsel %vm1036, %v1033, %v1035
    %v1038 = vsel %vm1036, %v1035, %v1033
    %v1039 = vstv %s1030
    %v1040 = vmul.f32 %v1039, %v1038
    %v1041 = vmul.f32 %v1039, %v1037
    %1042 = vrot.lane.b32.xlu0 %v439, 17
    %v1043 = vpop.permute.xlu0 %1042
    %1044 = vrot.lane.b32.xlu0 %v440, 17
    %v1045 = vpop.permute.xlu0 %1044
    %v1046 = vsel %vm1036, %v1043, %v1045
    %v1047 = vsel %vm1036, %v1045, %v1043
    %v1048 = vstv %s1031
    %v1049 = vmul.f32 %v1048, %v1047
    %v1050 = vmul.f32 %v1048, %v1046
    %v1051 = vadd.f32 %v1040, %v1049
    %v1052 = vadd.f32 %v1041, %v1050
    %vm1053 = vmand %vm531, %vm978
    %v1056 = vcombine.low %v1051, %v1052
    %v1058 = vunpack.c.l.s4 1983009808
    %v1059 = vunpack.c.0.s8 %v1058
    %v1060 = vlaneseq
    %v1061 = vshrl.u32 %v1060, 7
    %v1062 = vsub.s32 %v1059, %v1061
    %v1063 = vrot.slane %v1056, %v1062
    %v1065 = vsel %vm1053, %v1063, 0.0
    %v1066 = vadd.f32 %v1029, %v1065
    %s1067 = sld [smem:[#allocation16 + $0x11]]
    %s1068 = sld [smem:[#allocation16 + $0x42]]
    %1069 = vrot.lane.b32.xlu0 %v421, 16
    %v1070 = vpop.permute.xlu0 %1069
    %1071 = vrot.lane.b32.xlu0 %v422, 16
    %v1072 = vpop.permute.xlu0 %1071
    %vm1073 = vcmp.lt.s32.totalorder %v186, 16
    %v1074 = vsel %vm1073, %v1070, %v1072
    %v1075 = vsel %vm1073, %v1072, %v1070
    %v1076 = vstv %s1067
    %v1077 = vmul.f32 %v1076, %v1075
    %v1078 = vmul.f32 %v1076, %v1074
    %1079 = vrot.lane.b32.xlu0 %v439, 16
    %v1080 = vpop.permute.xlu0 %1079
    %1081 = vrot.lane.b32.xlu0 %v440, 16
    %v1082 = vpop.permute.xlu0 %1081
    %v1083 = vsel %vm1073, %v1080, %v1082
    %v1084 = vsel %vm1073, %v1082, %v1080
    %v1085 = vstv %s1068
    %v1086 = vmul.f32 %v1085, %v1084
    %v1087 = vmul.f32 %v1085, %v1083
    %v1088 = vadd.f32 %v1077, %v1086
    %v1089 = vadd.f32 %v1078, %v1087
    %v1092 = vcombine.low %v1088, %v1089
    %v1094 = vunpack.c.l.s4 1983009808
    %v1095 = vunpack.c.0.s8 %v1094
    %v1096 = vlaneseq
    %v1097 = vshrl.u32 %v1096, 7
    %v1098 = vsub.s32 %v1095, %v1097
    %v1099 = vrot.slane %v1092, %v1098
    %v1101 = vsel %vm978, %v1099, 0.0
    %v1102 = vadd.f32 %v1066, %v1101
    %s1103 = sld [smem:[#allocation16 + $0x12]]
    %s1104 = sld [smem:[#allocation16 + $0x43]]
    %1105 = vrot.lane.b32.xlu0 %v421, 15
    %v1106 = vpop.permute.xlu0 %1105
    %1107 = vrot.lane.b32.xlu0 %v422, 15
    %v1108 = vpop.permute.xlu0 %1107
    %vm1109 = vcmp.lt.s32.totalorder %v186, 15
    %v1110 = vsel %vm1109, %v1106, %v1108
    %v1111 = vsel %vm1109, %v1108, %v1106
    %v1112 = vstv %s1103
    %v1113 = vmul.f32 %v1112, %v1111
    %v1114 = vmul.f32 %v1112, %v1110
    %1115 = vrot.lane.b32.xlu0 %v439, 15
    %v1116 = vpop.permute.xlu0 %1115
    %1117 = vrot.lane.b32.xlu0 %v440, 15
    %v1118 = vpop.permute.xlu0 %1117
    %v1119 = vsel %vm1109, %v1116, %v1118
    %v1120 = vsel %vm1109, %v1118, %v1116
    %v1121 = vstv %s1104
    %v1122 = vmul.f32 %v1121, %v1120
    %v1123 = vmul.f32 %v1121, %v1119
    %v1124 = vadd.f32 %v1113, %v1122
    %v1125 = vadd.f32 %v1114, %v1123
    %vm1126 = vmand %vm605, %vm978
    %v1129 = vcombine.low %v1124, %v1125
    %v1131 = vunpack.c.l.s4 1983009808
    %v1132 = vunpack.c.0.s8 %v1131
    %v1133 = vlaneseq
    %v1134 = vshrl.u32 %v1133, 7
    %v1135 = vsub.s32 %v1132, %v1134
    %v1136 = vrot.slane %v1129, %v1135
    %v1138 = vsel %vm1126, %v1136, 0.0
    %v1139 = vadd.f32 %v1102, %v1138
    %s1140 = sld [smem:[#allocation16 + $0x13]]
    %s1141 = sld [smem:[#allocation16 + $0x44]]
    %1142 = vrot.lane.b32.xlu0 %v421, 14
    %v1143 = vpop.permute.xlu0 %1142
    %1144 = vrot.lane.b32.xlu0 %v422, 14
    %v1145 = vpop.permute.xlu0 %1144
    %vm1146 = vcmp.lt.s32.totalorder %v186, 14
    %v1147 = vsel %vm1146, %v1143, %v1145
    %v1148 = vsel %vm1146, %v1145, %v1143
    %v1149 = vstv %s1140
    %v1150 = vmul.f32 %v1149, %v1148
    %v1151 = vmul.f32 %v1149, %v1147
    %1152 = vrot.lane.b32.xlu0 %v439, 14
    %v1153 = vpop.permute.xlu0 %1152
    %1154 = vrot.lane.b32.xlu0 %v440, 14
    %v1155 = vpop.permute.xlu0 %1154
    %v1156 = vsel %vm1146, %v1153, %v1155
    %v1157 = vsel %vm1146, %v1155, %v1153
    %v1158 = vstv %s1141
    %v1159 = vmul.f32 %v1158, %v1157
    %v1160 = vmul.f32 %v1158, %v1156
    %v1161 = vadd.f32 %v1150, %v1159
    %v1162 = vadd.f32 %v1151, %v1160
    %vm1163 = vmand %vm643, %vm978
    %v1166 = vcombine.low %v1161, %v1162
    %v1168 = vunpack.c.l.s4 1983009808
    %v1169 = vunpack.c.0.s8 %v1168
    %v1170 = vlaneseq
    %v1171 = vshrl.u32 %v1170, 7
    %v1172 = vsub.s32 %v1169, %v1171
    %v1173 = vrot.slane %v1166, %v1172
    %v1175 = vsel %vm1163, %v1173, 0.0
    %v1176 = vadd.f32 %v1139, %v1175
    %s1177 = sld [smem:[#allocation16 + $0x14]]
    %s1178 = sld [smem:[#allocation16 + $0x45]]
    %1179 = vrot.lane.b32.xlu0 %v421, 13
    %v1180 = vpop.permute.xlu0 %1179
    %1181 = vrot.lane.b32.xlu0 %v422, 13
    %v1182 = vpop.permute.xlu0 %1181
    %vm1183 = vcmp.lt.s32.totalorder %v186, 13
    %v1184 = vsel %vm1183, %v1180, %v1182
    %v1185 = vsel %vm1183, %v1182, %v1180
    %v1186 = vstv %s1177
    %v1187 = vmul.f32 %v1186, %v1185
    %v1188 = vmul.f32 %v1186, %v1184
    %1189 = vrot.lane.b32.xlu0 %v439, 13
    %v1190 = vpop.permute.xlu0 %1189
    %1191 = vrot.lane.b32.xlu0 %v440, 13
    %v1192 = vpop.permute.xlu0 %1191
    %v1193 = vsel %vm1183, %v1190, %v1192
    %v1194 = vsel %vm1183, %v1192, %v1190
    %v1195 = vstv %s1178
    %v1196 = vmul.f32 %v1195, %v1194
    %v1197 = vmul.f32 %v1195, %v1193
    %v1198 = vadd.f32 %v1187, %v1196
    %v1199 = vadd.f32 %v1188, %v1197
    %vm1200 = vmand %vm681, %vm978
    %v1203 = vcombine.low %v1198, %v1199
    %v1205 = vunpack.c.l.s4 1983009808
    %v1206 = vunpack.c.0.s8 %v1205
    %v1207 = vlaneseq
    %v1208 = vshrl.u32 %v1207, 7
    %v1209 = vsub.s32 %v1206, %v1208
    %v1210 = vrot.slane %v1203, %v1209
    %v1212 = vsel %vm1200, %v1210, 0.0
    %v1213 = vadd.f32 %v1176, %v1212
    %s1214 = sld [smem:[#allocation16 + $0x15]]
    %s1215 = sld [smem:[#allocation16 + $0x46]]
    %1216 = vrot.lane.b32.xlu0 %v421, 3
    %v1217 = vpop.permute.xlu0 %1216
    %1218 = vrot.lane.b32.xlu0 %v422, 3
    %v1219 = vpop.permute.xlu0 %1218
    %vm1220 = vcmp.lt.s32.totalorder %v186, 3
    %v1221 = vsel %vm1220, %v1217, %v1219
    %v1222 = vsel %vm1220, %v1219, %v1217
    %v1223 = vstv %s1214
    %v1224 = vmul.f32 %v1223, %v1222
    %v1225 = vmul.f32 %v1223, %v1221
    %1226 = vrot.lane.b32.xlu0 %v439, 3
    %v1227 = vpop.permute.xlu0 %1226
    %1228 = vrot.lane.b32.xlu0 %v440, 3
    %v1229 = vpop.permute.xlu0 %1228
    %v1230 = vsel %vm1220, %v1227, %v1229
    %v1231 = vsel %vm1220, %v1229, %v1227
    %v1232 = vstv %s1215
    %v1233 = vmul.f32 %v1232, %v1231
    %v1234 = vmul.f32 %v1232, %v1230
    %v1235 = vadd.f32 %v1224, %v1233
    %v1236 = vadd.f32 %v1225, %v1234
    %v1239 = vcombine.low %v1235, %v1236
    %v1241 = vunpack.c.l.s4 1983009808
    %v1242 = vunpack.c.0.s8 %v1241
    %v1243 = vlaneseq
    %v1244 = vshrl.u32 %v1243, 7
    %v1245 = vsub.s32 %v1242, %v1244
    %v1246 = vrot.slane %v1239, %v1245
    %v1248 = vsel %vm454, %v1246, 0.0
    %v1249 = vadd.f32 %v1213, %v1248
    %s1250 = sld [smem:[#allocation16 + $0x16]]
    %s1251 = sld [smem:[#allocation16 + $0x47]]
    %1252 = vrot.lane.b32.xlu0 %v421, 2
    %v1253 = vpop.permute.xlu0 %1252
    %1254 = vrot.lane.b32.xlu0 %v422, 2
    %v1255 = vpop.permute.xlu0 %1254
    %vm1256 = vcmp.lt.s32.totalorder %v186, 2
    %v1257 = vsel %vm1256, %v1253, %v1255
    %v1258 = vsel %vm1256, %v1255, %v1253
    %v1259 = vstv %s1250
    %v1260 = vmul.f32 %v1259, %v1258
    %v1261 = vmul.f32 %v1259, %v1257
    %1262 = vrot.lane.b32.xlu0 %v439, 2
    %v1263 = vpop.permute.xlu0 %1262
    %1264 = vrot.lane.b32.xlu0 %v440, 2
    %v1265 = vpop.permute.xlu0 %1264
    %v1266 = vsel %vm1256, %v1263, %v1265
    %v1267 = vsel %vm1256, %v1265, %v1263
    %v1268 = vstv %s1251
    %v1269 = vmul.f32 %v1268, %v1267
    %v1270 = vmul.f32 %v1268, %v1266
    %v1271 = vadd.f32 %v1260, %v1269
    %v1272 = vadd.f32 %v1261, %v1270
    %v1275 = vcombine.low %v1271, %v1272
    %v1277 = vunpack.c.l.s4 1983009808
    %v1278 = vunpack.c.0.s8 %v1277
    %v1279 = vlaneseq
    %v1280 = vshrl.u32 %v1279, 7
    %v1281 = vsub.s32 %v1278, %v1280
    %v1282 = vrot.slane %v1275, %v1281
    %v1284 = vsel %vm493, %v1282, 0.0
    %v1285 = vadd.f32 %v1249, %v1284
    %s1286 = sld [smem:[#allocation16 + $0x17]]
    %s1287 = sld [smem:[#allocation16 + $0x48]]
    %1288 = vrot.lane.b32.xlu0 %v421, 1
    %v1289 = vpop.permute.xlu0 %1288
    %1290 = vrot.lane.b32.xlu0 %v422, 1
    %v1291 = vpop.permute.xlu0 %1290
    %vm1292 = vcmp.lt.s32.totalorder %v186, 1
    %v1293 = vsel %vm1292, %v1289, %v1291
    %v1294 = vsel %vm1292, %v1291, %v1289
    %v1295 = vstv %s1286
    %v1296 = vmul.f32 %v1295, %v1294
    %v1297 = vmul.f32 %v1295, %v1293
    %1298 = vrot.lane.b32.xlu0 %v439, 1
    %v1299 = vpop.permute.xlu0 %1298
    %1300 = vrot.lane.b32.xlu0 %v440, 1
    %v1301 = vpop.permute.xlu0 %1300
    %v1302 = vsel %vm1292, %v1299, %v1301
    %v1303 = vsel %vm1292, %v1301, %v1299
    %v1304 = vstv %s1287
    %v1305 = vmul.f32 %v1304, %v1303
    %v1306 = vmul.f32 %v1304, %v1302
    %v1307 = vadd.f32 %v1296, %v1305
    %v1308 = vadd.f32 %v1297, %v1306
    %v1311 = vcombine.low %v1307, %v1308
    %v1313 = vunpack.c.l.s4 1983009808
    %v1314 = vunpack.c.0.s8 %v1313
    %v1315 = vlaneseq
    %v1316 = vshrl.u32 %v1315, 7
    %v1317 = vsub.s32 %v1314, %v1316
    %v1318 = vrot.slane %v1311, %v1317
    %v1320 = vsel %vm531, %v1318, 0.0
    %v1321 = vadd.f32 %v1285, %v1320
    %s1322 = sld [smem:[#allocation16 + $0x18]]
    %s1323 = sld [smem:[#allocation16 + $0x49]]
    %v1324 = vstv %s1322
    %v1325 = vmul.f32 %v1324, %v385
    %v1326 = vmul.f32 %v1324, %v386
    %v1327 = vmul.f32 %v1324, %v387
    %v1328 = vmul.f32 %v1324, %v388
    %v1329 = vstv %s1323
    %v1330 = vmul.f32 %v1329, %v394
    %v1331 = vmul.f32 %v1329, %v400
    %v1332 = vmul.f32 %v1329, %v406
    %v1333 = vmul.f32 %v1329, %v412
    %v1334 = vadd.f32 %v1325, %v1330
    %v1335 = vadd.f32 %v1326, %v1331
    %v1336 = vadd.f32 %v1327, %v1332
    %v1337 = vadd.f32 %v1328, %v1333
    %v1342 = vcombine.low %v1334, %v1335
    %v1344 = vunpack.c.l.s4 1983009808
    %v1345 = vunpack.c.0.s8 %v1344
    %v1346 = vlaneseq
    %v1347 = vshrl.u32 %v1346, 7
    %v1348 = vsub.s32 %v1345, %v1347
    %v1349 = vrot.slane %v1342, %v1348
    %v1350 = vcombine.low %v1336, %v1337
    %v1352 = vunpack.c.l.s4 1983009808
    %v1353 = vunpack.c.0.s8 %v1352
    %v1354 = vlaneseq
    %v1355 = vshrl.u32 %v1354, 7
    %v1356 = vsub.s32 %v1353, %v1355
    %v1357 = vrot.slane %v1350, %v1356
    %vm1358 = vcmask 1044484
    %v1359 = vsel %vm1358, %v1349, %v1349
    %vm1360 = vcmask 1046534
    %v1361 = vsel %vm1360, %v1349, %v1359
    %v1362 = vrot.slane %v1357, 7
    %v1363 = vsel %vm195, %v1362, %v1361
    %vm1364 = vcmask 1043459
    %v1365 = vsel %vm1364, %v1362, %v1363
    %vm1366 = vcmask 1045509
    %v1367 = vsel %vm1366, %v1362, %v1365
    %vm1368 = vcmask 1047559
    %v1369 = vsel %vm1368, %v1362, %v1367
    %v1371 = vadd.f32 %v1321, %v1369
    %s1372 = sld [smem:[#allocation16 + $0x19]]
    %s1373 = sld [smem:[#allocation16 + $0x4a]]
    %1374 = vrot.lane.b32.xlu0 %v421, 127
    %v1375 = vpop.permute.xlu0 %1374
    %1376 = vrot.lane.b32.xlu0 %v422, 127
    %v1377 = vpop.permute.xlu0 %1376
    %vm1378 = vcmp.lt.s32.totalorder %v186, 127
    %v1379 = vsel %vm1378, %v1375, %v1377
    %v1380 = vsel %vm1378, %v1377, %v1375
    %v1381 = vstv %s1372
    %v1382 = vmul.f32 %v1381, %v1379
    %v1383 = vmul.f32 %v1381, %v1380
    %1384 = vrot.lane.b32.xlu0 %v439, 127
    %v1385 = vpop.permute.xlu0 %1384
    %1386 = vrot.lane.b32.xlu0 %v440, 127
    %v1387 = vpop.permute.xlu0 %1386
    %v1388 = vsel %vm1378, %v1385, %v1387
    %v1389 = vsel %vm1378, %v1387, %v1385
    %v1390 = vstv %s1373
    %v1391 = vmul.f32 %v1390, %v1388
    %v1392 = vmul.f32 %v1390, %v1389
    %v1393 = vadd.f32 %v1382, %v1391
    %v1394 = vadd.f32 %v1383, %v1392
    %v1397 = vcombine.low %v1393, %v1394
    %v1399 = vunpack.c.l.s4 1983009808
    %v1400 = vunpack.c.0.s8 %v1399
    %v1401 = vlaneseq
    %v1402 = vshrl.u32 %v1401, 7
    %v1403 = vsub.s32 %v1400, %v1402
    %v1404 = vrot.slane %v1397, %v1403
    %v1406 = vsel %vm605, %v1404, 0.0
    %v1407 = vadd.f32 %v1371, %v1406
    %s1408 = sld [smem:[#allocation16 + $0x1a]]
    %s1409 = sld [smem:[#allocation16 + $0x4b]]
    %1410 = vrot.lane.b32.xlu0 %v421, 126
    %v1411 = vpop.permute.xlu0 %1410
    %1412 = vrot.lane.b32.xlu0 %v422, 126
    %v1413 = vpop.permute.xlu0 %1412
    %vm1414 = vcmp.lt.s32.totalorder %v186, 126
    %v1415 = vsel %vm1414, %v1411, %v1413
    %v1416 = vsel %vm1414, %v1413, %v1411
    %v1417 = vstv %s1408
    %v1418 = vmul.f32 %v1417, %v1415
    %v1419 = vmul.f32 %v1417, %v1416
    %1420 = vrot.lane.b32.xlu0 %v439, 126
    %v1421 = vpop.permute.xlu0 %1420
    %1422 = vrot.lane.b32.xlu0 %v440, 126
    %v1423 = vpop.permute.xlu0 %1422
    %v1424 = vsel %vm1414, %v1421, %v1423
    %v1425 = vsel %vm1414, %v1423, %v1421
    %v1426 = vstv %s1409
    %v1427 = vmul.f32 %v1426, %v1424
    %v1428 = vmul.f32 %v1426, %v1425
    %v1429 = vadd.f32 %v1418, %v1427
    %v1430 = vadd.f32 %v1419, %v1428
    %v1433 = vcombine.low %v1429, %v1430
    %v1435 = vunpack.c.l.s4 1983009808
    %v1436 = vunpack.c.0.s8 %v1435
    %v1437 = vlaneseq
    %v1438 = vshrl.u32 %v1437, 7
    %v1439 = vsub.s32 %v1436, %v1438
    %v1440 = vrot.slane %v1433, %v1439
    %v1442 = vsel %vm643, %v1440, 0.0
    %v1443 = vadd.f32 %v1407, %v1442
    %s1444 = sld [smem:[#allocation16 + $0x1b]]
    %s1445 = sld [smem:[#allocation16 + $0x4c]]
    %1446 = vrot.lane.b32.xlu0 %v421, 125
    %v1447 = vpop.permute.xlu0 %1446
    %1448 = vrot.lane.b32.xlu0 %v422, 125
    %v1449 = vpop.permute.xlu0 %1448
    %vm1450 = vcmp.lt.s32.totalorder %v186, 125
    %v1451 = vsel %vm1450, %v1447, %v1449
    %v1452 = vsel %vm1450, %v1449, %v1447
    %v1453 = vstv %s1444
    %v1454 = vmul.f32 %v1453, %v1451
    %v1455 = vmul.f32 %v1453, %v1452
    %1456 = vrot.lane.b32.xlu0 %v439, 125
    %v1457 = vpop.permute.xlu0 %1456
    %1458 = vrot.lane.b32.xlu0 %v440, 125
    %v1459 = vpop.permute.xlu0 %1458
    %v1460 = vsel %vm1450, %v1457, %v1459
    %v1461 = vsel %vm1450, %v1459, %v1457
    %v1462 = vstv %s1445
    %v1463 = vmul.f32 %v1462, %v1460
    %v1464 = vmul.f32 %v1462, %v1461
    %v1465 = vadd.f32 %v1454, %v1463
    %v1466 = vadd.f32 %v1455, %v1464
    %v1469 = vcombine.low %v1465, %v1466
    %v1471 = vunpack.c.l.s4 1983009808
    %v1472 = vunpack.c.0.s8 %v1471
    %v1473 = vlaneseq
    %v1474 = vshrl.u32 %v1473, 7
    %v1475 = vsub.s32 %v1472, %v1474
    %v1476 = vrot.slane %v1469, %v1475
    %v1478 = vsel %vm681, %v1476, 0.0
    %v1479 = vadd.f32 %v1443, %v1478
    %s1480 = sld [smem:[#allocation16 + $0x1c]]
    %s1481 = sld [smem:[#allocation16 + $0x4d]]
    %1482 = vrot.lane.b32.xlu0 %v421, 115
    %v1483 = vpop.permute.xlu0 %1482
    %1484 = vrot.lane.b32.xlu0 %v422, 115
    %v1485 = vpop.permute.xlu0 %1484
    %vm1486 = vcmp.lt.s32.totalorder %v186, 115
    %v1487 = vsel %vm1486, %v1483, %v1485
    %v1488 = vsel %vm1486, %v1485, %v1483
    %v1489 = vstv %s1480
    %v1490 = vmul.f32 %v1489, %v1487
    %v1491 = vmul.f32 %v1489, %v1488
    %1492 = vrot.lane.b32.xlu0 %v439, 115
    %v1493 = vpop.permute.xlu0 %1492
    %1494 = vrot.lane.b32.xlu0 %v440, 115
    %v1495 = vpop.permute.xlu0 %1494
    %v1496 = vsel %vm1486, %v1493, %v1495
    %v1497 = vsel %vm1486, %v1495, %v1493
    %v1498 = vstv %s1481
    %v1499 = vmul.f32 %v1498, %v1496
    %v1500 = vmul.f32 %v1498, %v1497
    %v1501 = vadd.f32 %v1490, %v1499
    %v1502 = vadd.f32 %v1491, %v1500
    %vm1503 = vcmp.lt.s32.totalorder %v414, 15
    %vm1504 = vmand %vm454, %vm1503
    %v1507 = vcombine.low %v1501, %v1502
    %v1509 = vunpack.c.l.s4 1983009808
    %v1510 = vunpack.c.0.s8 %v1509
    %v1511 = vlaneseq
    %v1512 = vshrl.u32 %v1511, 7
    %v1513 = vsub.s32 %v1510, %v1512
    %v1514 = vrot.slane %v1507, %v1513
    %v1516 = vsel %vm1504, %v1514, 0.0
    %v1517 = vadd.f32 %v1479, %v1516
    %s1518 = sld [smem:[#allocation16 + $0x1d]]
    %s1519 = sld [smem:[#allocation16 + $0x4e]]
    %1520 = vrot.lane.b32.xlu0 %v421, 114
    %v1521 = vpop.permute.xlu0 %1520
    %1522 = vrot.lane.b32.xlu0 %v422, 114
    %v1523 = vpop.permute.xlu0 %1522
    %vm1524 = vcmp.lt.s32.totalorder %v186, 114
    %v1525 = vsel %vm1524, %v1521, %v1523
    %v1526 = vsel %vm1524, %v1523, %v1521
    %v1527 = vstv %s1518
    %v1528 = vmul.f32 %v1527, %v1525
    %v1529 = vmul.f32 %v1527, %v1526
    %1530 = vrot.lane.b32.xlu0 %v439, 114
    %v1531 = vpop.permute.xlu0 %1530
    %1532 = vrot.lane.b32.xlu0 %v440, 114
    %v1533 = vpop.permute.xlu0 %1532
    %v1534 = vsel %vm1524, %v1531, %v1533
    %v1535 = vsel %vm1524, %v1533, %v1531
    %v1536 = vstv %s1519
    %v1537 = vmul.f32 %v1536, %v1534
    %v1538 = vmul.f32 %v1536, %v1535
    %v1539 = vadd.f32 %v1528, %v1537
    %v1540 = vadd.f32 %v1529, %v1538
    %vm1541 = vmand %vm493, %vm1503
    %v1544 = vcombine.low %v1539, %v1540
    %v1546 = vunpack.c.l.s4 1983009808
    %v1547 = vunpack.c.0.s8 %v1546
    %v1548 = vlaneseq
    %v1549 = vshrl.u32 %v1548, 7
    %v1550 = vsub.s32 %v1547, %v1549
    %v1551 = vrot.slane %v1544, %v1550
    %v1553 = vsel %vm1541, %v1551, 0.0
    %v1554 = vadd.f32 %v1517, %v1553
    %s1555 = sld [smem:[#allocation16 + $0x1e]]
    %s1556 = sld [smem:[#allocation16 + $0x4f]]
    %1557 = vrot.lane.b32.xlu0 %v421, 113
    %v1558 = vpop.permute.xlu0 %1557
    %1559 = vrot.lane.b32.xlu0 %v422, 113
    %v1560 = vpop.permute.xlu0 %1559
    %vm1561 = vcmp.lt.s32.totalorder %v186, 113
    %v1562 = vsel %vm1561, %v1558, %v1560
    %v1563 = vsel %vm1561, %v1560, %v1558
    %v1564 = vstv %s1555
    %v1565 = vmul.f32 %v1564, %v1562
    %v1566 = vmul.f32 %v1564, %v1563
    %1567 = vrot.lane.b32.xlu0 %v439, 113
    %v1568 = vpop.permute.xlu0 %1567
    %1569 = vrot.lane.b32.xlu0 %v440, 113
    %v1570 = vpop.permute.xlu0 %1569
    %v1571 = vsel %vm1561, %v1568, %v1570
    %v1572 = vsel %vm1561, %v1570, %v1568
    %v1573 = vstv %s1556
    %v1574 = vmul.f32 %v1573, %v1571
    %v1575 = vmul.f32 %v1573, %v1572
    %v1576 = vadd.f32 %v1565, %v1574
    %v1577 = vadd.f32 %v1566, %v1575
    %vm1578 = vmand %vm531, %vm1503
    %v1581 = vcombine.low %v1576, %v1577
    %v1583 = vunpack.c.l.s4 1983009808
    %v1584 = vunpack.c.0.s8 %v1583
    %v1585 = vlaneseq
    %v1586 = vshrl.u32 %v1585, 7
    %v1587 = vsub.s32 %v1584, %v1586
    %v1588 = vrot.slane %v1581, %v1587
    %v1590 = vsel %vm1578, %v1588, 0.0
    %v1591 = vadd.f32 %v1554, %v1590
    %s1592 = sld [smem:[#allocation16 + $0x1f]]
    %s1593 = sld [smem:[#allocation16 + $0x50]]
    %1594 = vrot.lane.b32.xlu0 %v421, 112
    %v1595 = vpop.permute.xlu0 %1594
    %1596 = vrot.lane.b32.xlu0 %v422, 112
    %v1597 = vpop.permute.xlu0 %1596
    %vm1598 = vcmp.lt.s32.totalorder %v186, 112
    %v1599 = vsel %vm1598, %v1595, %v1597
    %v1600 = vsel %vm1598, %v1597, %v1595
    %v1601 = vstv %s1592
    %v1602 = vmul.f32 %v1601, %v1599
    %v1603 = vmul.f32 %v1601, %v1600
    %1604 = vrot.lane.b32.xlu0 %v439, 112
    %v1605 = vpop.permute.xlu0 %1604
    %1606 = vrot.lane.b32.xlu0 %v440, 112
    %v1607 = vpop.permute.xlu0 %1606
    %v1608 = vsel %vm1598, %v1605, %v1607
    %v1609 = vsel %vm1598, %v1607, %v1605
    %v1610 = vstv %s1593
    %v1611 = vmul.f32 %v1610, %v1608
    %v1612 = vmul.f32 %v1610, %v1609
    %v1613 = vadd.f32 %v1602, %v1611
    %v1614 = vadd.f32 %v1603, %v1612
    %v1617 = vcombine.low %v1613, %v1614
    %v1619 = vunpack.c.l.s4 1983009808
    %v1620 = vunpack.c.0.s8 %v1619
    %v1621 = vlaneseq
    %v1622 = vshrl.u32 %v1621, 7
    %v1623 = vsub.s32 %v1620, %v1622
    %v1624 = vrot.slane %v1617, %v1623
    %v1626 = vsel %vm1503, %v1624, 0.0
    %v1627 = vadd.f32 %v1591, %v1626
    %s1628 = sld [smem:[#allocation16 + $0x20]]
    %s1629 = sld [smem:[#allocation16 + $0x51]]
    %1630 = vrot.lane.b32.xlu0 %v421, 111
    %v1631 = vpop.permute.xlu0 %1630
    %1632 = vrot.lane.b32.xlu0 %v422, 111
    %v1633 = vpop.permute.xlu0 %1632
    %vm1634 = vcmp.lt.s32.totalorder %v186, 111
    %v1635 = vsel %vm1634, %v1631, %v1633
    %v1636 = vsel %vm1634, %v1633, %v1631
    %v1637 = vstv %s1628
    %v1638 = vmul.f32 %v1637, %v1635
    %v1639 = vmul.f32 %v1637, %v1636
    %1640 = vrot.lane.b32.xlu0 %v439, 111
    %v1641 = vpop.permute.xlu0 %1640
    %1642 = vrot.lane.b32.xlu0 %v440, 111
    %v1643 = vpop.permute.xlu0 %1642
    %v1644 = vsel %vm1634, %v1641, %v1643
    %v1645 = vsel %vm1634, %v1643, %v1641
    %v1646 = vstv %s1629
    %v1647 = vmul.f32 %v1646, %v1644
    %v1648 = vmul.f32 %v1646, %v1645
    %v1649 = vadd.f32 %v1638, %v1647
    %v1650 = vadd.f32 %v1639, %v1648
    %vm1651 = vmand %vm605, %vm1503
    %v1654 = vcombine.low %v1649, %v1650
    %v1656 = vunpack.c.l.s4 1983009808
    %v1657 = vunpack.c.0.s8 %v1656
    %v1658 = vlaneseq
    %v1659 = vshrl.u32 %v1658, 7
    %v1660 = vsub.s32 %v1657, %v1659
    %v1661 = vrot.slane %v1654, %v1660
    %v1663 = vsel %vm1651, %v1661, 0.0
    %v1664 = vadd.f32 %v1627, %v1663
    %s1665 = sld [smem:[#allocation16 + $0x21]]
    %s1666 = sld [smem:[#allocation16 + $0x52]]
    %1667 = vrot.lane.b32.xlu0 %v421, 110
    %v1668 = vpop.permute.xlu0 %1667
    %1669 = vrot.lane.b32.xlu0 %v422, 110
    %v1670 = vpop.permute.xlu0 %1669
    %vm1671 = vcmp.lt.s32.totalorder %v186, 110
    %v1672 = vsel %vm1671, %v1668, %v1670
    %v1673 = vsel %vm1671, %v1670, %v1668
    %v1674 = vstv %s1665
    %v1675 = vmul.f32 %v1674, %v1672
    %v1676 = vmul.f32 %v1674, %v1673
    %1677 = vrot.lane.b32.xlu0 %v439, 110
    %v1678 = vpop.permute.xlu0 %1677
    %1679 = vrot.lane.b32.xlu0 %v440, 110
    %v1680 = vpop.permute.xlu0 %1679
    %v1681 = vsel %vm1671, %v1678, %v1680
    %v1682 = vsel %vm1671, %v1680, %v1678
    %v1683 = vstv %s1666
    %v1684 = vmul.f32 %v1683, %v1681
    %v1685 = vmul.f32 %v1683, %v1682
    %v1686 = vadd.f32 %v1675, %v1684
    %v1687 = vadd.f32 %v1676, %v1685
    %vm1688 = vmand %vm643, %vm1503
    %v1691 = vcombine.low %v1686, %v1687
    %v1693 = vunpack.c.l.s4 1983009808
    %v1694 = vunpack.c.0.s8 %v1693
    %v1695 = vlaneseq
    %v1696 = vshrl.u32 %v1695, 7
    %v1697 = vsub.s32 %v1694, %v1696
    %v1698 = vrot.slane %v1691, %v1697
    %v1700 = vsel %vm1688, %v1698, 0.0
    %v1701 = vadd.f32 %v1664, %v1700
    %s1702 = sld [smem:[#allocation16 + $0x22]]
    %s1703 = sld [smem:[#allocation16 + $0x53]]
    %1704 = vrot.lane.b32.xlu0 %v421, 109
    %v1705 = vpop.permute.xlu0 %1704
    %1706 = vrot.lane.b32.xlu0 %v422, 109
    %v1707 = vpop.permute.xlu0 %1706
    %vm1708 = vcmp.lt.s32.totalorder %v186, 109
    %v1709 = vsel %vm1708, %v1705, %v1707
    %v1710 = vsel %vm1708, %v1707, %v1705
    %v1711 = vstv %s1702
    %v1712 = vmul.f32 %v1711, %v1709
    %v1713 = vmul.f32 %v1711, %v1710
    %1714 = vrot.lane.b32.xlu0 %v439, 109
    %v1715 = vpop.permute.xlu0 %1714
    %1716 = vrot.lane.b32.xlu0 %v440, 109
    %v1717 = vpop.permute.xlu0 %1716
    %v1718 = vsel %vm1708, %v1715, %v1717
    %v1719 = vsel %vm1708, %v1717, %v1715
    %v1720 = vstv %s1703
    %v1721 = vmul.f32 %v1720, %v1718
    %v1722 = vmul.f32 %v1720, %v1719
    %v1723 = vadd.f32 %v1712, %v1721
    %v1724 = vadd.f32 %v1713, %v1722
    %vm1725 = vmand %vm681, %vm1503
    %v1728 = vcombine.low %v1723, %v1724
    %v1730 = vunpack.c.l.s4 1983009808
    %v1731 = vunpack.c.0.s8 %v1730
    %v1732 = vlaneseq
    %v1733 = vshrl.u32 %v1732, 7
    %v1734 = vsub.s32 %v1731, %v1733
    %v1735 = vrot.slane %v1728, %v1734
    %v1737 = vsel %vm1725, %v1735, 0.0
    %v1738 = vadd.f32 %v1701, %v1737
    %s1739 = sld [smem:[#allocation16 + $0x23]]
    %s1740 = sld [smem:[#allocation16 + $0x54]]
    %1741 = vrot.lane.b32.xlu0 %v421, 99
    %v1742 = vpop.permute.xlu0 %1741
    %1743 = vrot.lane.b32.xlu0 %v422, 99
    %v1744 = vpop.permute.xlu0 %1743
    %vm1745 = vcmp.lt.s32.totalorder %v186, 99
    %v1746 = vsel %vm1745, %v1742, %v1744
    %v1747 = vsel %vm1745, %v1744, %v1742
    %v1748 = vstv %s1739
    %v1749 = vmul.f32 %v1748, %v1746
    %v1750 = vmul.f32 %v1748, %v1747
    %1751 = vrot.lane.b32.xlu0 %v439, 99
    %v1752 = vpop.permute.xlu0 %1751
    %1753 = vrot.lane.b32.xlu0 %v440, 99
    %v1754 = vpop.permute.xlu0 %1753
    %v1755 = vsel %vm1745, %v1752, %v1754
    %v1756 = vsel %vm1745, %v1754, %v1752
    %v1757 = vstv %s1740
    %v1758 = vmul.f32 %v1757, %v1755
    %v1759 = vmul.f32 %v1757, %v1756
    %v1760 = vadd.f32 %v1749, %v1758
    %v1761 = vadd.f32 %v1750, %v1759
    %vm1762 = vcmp.lt.s32.totalorder %v414, 14
    %vm1763 = vmand %vm454, %vm1762
    %v1766 = vcombine.low %v1760, %v1761
    %v1768 = vunpack.c.l.s4 1983009808
    %v1769 = vunpack.c.0.s8 %v1768
    %v1770 = vlaneseq
    %v1771 = vshrl.u32 %v1770, 7
    %v1772 = vsub.s32 %v1769, %v1771
    %v1773 = vrot.slane %v1766, %v1772
    %v1775 = vsel %vm1763, %v1773, 0.0
    %v1776 = vadd.f32 %v1738, %v1775
    %s1777 = sld [smem:[#allocation16 + $0x24]]
    %s1778 = sld [smem:[#allocation16 + $0x55]]
    %1779 = vrot.lane.b32.xlu0 %v421, 98
    %v1780 = vpop.permute.xlu0 %1779
    %1781 = vrot.lane.b32.xlu0 %v422, 98
    %v1782 = vpop.permute.xlu0 %1781
    %vm1783 = vcmp.lt.s32.totalorder %v186, 98
    %v1784 = vsel %vm1783, %v1780, %v1782
    %v1785 = vsel %vm1783, %v1782, %v1780
    %v1786 = vstv %s1777
    %v1787 = vmul.f32 %v1786, %v1784
    %v1788 = vmul.f32 %v1786, %v1785
    %1789 = vrot.lane.b32.xlu0 %v439, 98
    %v1790 = vpop.permute.xlu0 %1789
    %1791 = vrot.lane.b32.xlu0 %v440, 98
    %v1792 = vpop.permute.xlu0 %1791
    %v1793 = vsel %vm1783, %v1790, %v1792
    %v1794 = vsel %vm1783, %v1792, %v1790
    %v1795 = vstv %s1778
    %v1796 = vmul.f32 %v1795, %v1793
    %v1797 = vmul.f32 %v1795, %v1794
    %v1798 = vadd.f32 %v1787, %v1796
    %v1799 = vadd.f32 %v1788, %v1797
    %vm1800 = vmand %vm493, %vm1762
    %v1803 = vcombine.low %v1798, %v1799
    %v1805 = vunpack.c.l.s4 1983009808
    %v1806 = vunpack.c.0.s8 %v1805
    %v1807 = vlaneseq
    %v1808 = vshrl.u32 %v1807, 7
    %v1809 = vsub.s32 %v1806, %v1808
    %v1810 = vrot.slane %v1803, %v1809
    %v1812 = vsel %vm1800, %v1810, 0.0
    %v1813 = vadd.f32 %v1776, %v1812
    %s1814 = sld [smem:[#allocation16 + $0x25]]
    %s1815 = sld [smem:[#allocation16 + $0x56]]
    %1816 = vrot.lane.b32.xlu0 %v421, 97
    %v1817 = vpop.permute.xlu0 %1816
    %1818 = vrot.lane.b32.xlu0 %v422, 97
    %v1819 = vpop.permute.xlu0 %1818
    %vm1820 = vcmp.lt.s32.totalorder %v186, 97
    %v1821 = vsel %vm1820, %v1817, %v1819
    %v1822 = vsel %vm1820, %v1819, %v1817
    %v1823 = vstv %s1814
    %v1824 = vmul.f32 %v1823, %v1821
    %v1825 = vmul.f32 %v1823, %v1822
    %1826 = vrot.lane.b32.xlu0 %v439, 97
    %v1827 = vpop.permute.xlu0 %1826
    %1828 = vrot.lane.b32.xlu0 %v440, 97
    %v1829 = vpop.permute.xlu0 %1828
    %v1830 = vsel %vm1820, %v1827, %v1829
    %v1831 = vsel %vm1820, %v1829, %v1827
    %v1832 = vstv %s1815
    %v1833 = vmul.f32 %v1832, %v1830
    %v1834 = vmul.f32 %v1832, %v1831
    %v1835 = vadd.f32 %v1824, %v1833
    %v1836 = vadd.f32 %v1825, %v1834
    %vm1837 = vmand %vm531, %vm1762
    %v1840 = vcombine.low %v1835, %v1836
    %v1842 = vunpack.c.l.s4 1983009808
    %v1843 = vunpack.c.0.s8 %v1842
    %v1844 = vlaneseq
    %v1845 = vshrl.u32 %v1844, 7
    %v1846 = vsub.s32 %v1843, %v1845
    %v1847 = vrot.slane %v1840, %v1846
    %v1849 = vsel %vm1837, %v1847, 0.0
    %v1850 = vadd.f32 %v1813, %v1849
    %s1851 = sld [smem:[#allocation16 + $0x26]]
    %s1852 = sld [smem:[#allocation16 + $0x57]]
    %1853 = vrot.lane.b32.xlu0 %v421, 96
    %v1854 = vpop.permute.xlu0 %1853
    %1855 = vrot.lane.b32.xlu0 %v422, 96
    %v1856 = vpop.permute.xlu0 %1855
    %vm1857 = vcmp.lt.s32.totalorder %v186, 96
    %v1858 = vsel %vm1857, %v1854, %v1856
    %v1859 = vsel %vm1857, %v1856, %v1854
    %v1860 = vstv %s1851
    %v1861 = vmul.f32 %v1860, %v1858
    %v1862 = vmul.f32 %v1860, %v1859
    %1863 = vrot.lane.b32.xlu0 %v439, 96
    %v1864 = vpop.permute.xlu0 %1863
    %1865 = vrot.lane.b32.xlu0 %v440, 96
    %v1866 = vpop.permute.xlu0 %1865
    %v1867 = vsel %vm1857, %v1864, %v1866
    %v1868 = vsel %vm1857, %v1866, %v1864
    %v1869 = vstv %s1852
    %v1870 = vmul.f32 %v1869, %v1867
    %v1871 = vmul.f32 %v1869, %v1868
    %v1872 = vadd.f32 %v1861, %v1870
    %v1873 = vadd.f32 %v1862, %v1871
    %v1876 = vcombine.low %v1872, %v1873
    %v1878 = vunpack.c.l.s4 1983009808
    %v1879 = vunpack.c.0.s8 %v1878
    %v1880 = vlaneseq
    %v1881 = vshrl.u32 %v1880, 7
    %v1882 = vsub.s32 %v1879, %v1881
    %v1883 = vrot.slane %v1876, %v1882
    %v1885 = vsel %vm1762, %v1883, 0.0
    %v1886 = vadd.f32 %v1850, %v1885
    %s1887 = sld [smem:[#allocation16 + $0x27]]
    %s1888 = sld [smem:[#allocation16 + $0x58]]
    %1889 = vrot.lane.b32.xlu0 %v421, 95
    %v1890 = vpop.permute.xlu0 %1889
    %1891 = vrot.lane.b32.xlu0 %v422, 95
    %v1892 = vpop.permute.xlu0 %1891
    %vm1893 = vcmp.lt.s32.totalorder %v186, 95
    %v1894 = vsel %vm1893, %v1890, %v1892
    %v1895 = vsel %vm1893, %v1892, %v1890
    %v1896 = vstv %s1887
    %v1897 = vmul.f32 %v1896, %v1894
    %v1898 = vmul.f32 %v1896, %v1895
    %1899 = vrot.lane.b32.xlu0 %v439, 95
    %v1900 = vpop.permute.xlu0 %1899
    %1901 = vrot.lane.b32.xlu0 %v440, 95
    %v1902 = vpop.permute.xlu0 %1901
    %v1903 = vsel %vm1893, %v1900, %v1902
    %v1904 = vsel %vm1893, %v1902, %v1900
    %v1905 = vstv %s1888
    %v1906 = vmul.f32 %v1905, %v1903
    %v1907 = vmul.f32 %v1905, %v1904
    %v1908 = vadd.f32 %v1897, %v1906
    %v1909 = vadd.f32 %v1898, %v1907
    %vm1910 = vmand %vm605, %vm1762
    %v1913 = vcombine.low %v1908, %v1909
    %v1915 = vunpack.c.l.s4 1983009808
    %v1916 = vunpack.c.0.s8 %v1915
    %v1917 = vlaneseq
    %v1918 = vshrl.u32 %v1917, 7
    %v1919 = vsub.s32 %v1916, %v1918
    %v1920 = vrot.slane %v1913, %v1919
    %v1922 = vsel %vm1910, %v1920, 0.0
    %v1923 = vadd.f32 %v1886, %v1922
    %s1924 = sld [smem:[#allocation16 + $0x28]]
    %s1925 = sld [smem:[#allocation16 + $0x59]]
    %1926 = vrot.lane.b32.xlu0 %v421, 94
    %v1927 = vpop.permute.xlu0 %1926
    %1928 = vrot.lane.b32.xlu0 %v422, 94
    %v1929 = vpop.permute.xlu0 %1928
    %vm1930 = vcmp.lt.s32.totalorder %v186, 94
    %v1931 = vsel %vm1930, %v1927, %v1929
    %v1932 = vsel %vm1930, %v1929, %v1927
    %v1933 = vstv %s1924
    %v1934 = vmul.f32 %v1933, %v1931
    %v1935 = vmul.f32 %v1933, %v1932
    %1936 = vrot.lane.b32.xlu0 %v439, 94
    %v1937 = vpop.permute.xlu0 %1936
    %1938 = vrot.lane.b32.xlu0 %v440, 94
    %v1939 = vpop.permute.xlu0 %1938
    %v1940 = vsel %vm1930, %v1937, %v1939
    %v1941 = vsel %vm1930, %v1939, %v1937
    %v1942 = vstv %s1925
    %v1943 = vmul.f32 %v1942, %v1940
    %v1944 = vmul.f32 %v1942, %v1941
    %v1945 = vadd.f32 %v1934, %v1943
    %v1946 = vadd.f32 %v1935, %v1944
    %vm1947 = vmand %vm643, %vm1762
    %v1950 = vcombine.low %v1945, %v1946
    %v1952 = vunpack.c.l.s4 1983009808
    %v1953 = vunpack.c.0.s8 %v1952
    %v1954 = vlaneseq
    %v1955 = vshrl.u32 %v1954, 7
    %v1956 = vsub.s32 %v1953, %v1955
    %v1957 = vrot.slane %v1950, %v1956
    %v1959 = vsel %vm1947, %v1957, 0.0
    %v1960 = vadd.f32 %v1923, %v1959
    %s1961 = sld [smem:[#allocation16 + $0x29]]
    %s1962 = sld [smem:[#allocation16 + $0x5a]]
    %1963 = vrot.lane.b32.xlu0 %v421, 93
    %v1964 = vpop.permute.xlu0 %1963
    %1965 = vrot.lane.b32.xlu0 %v422, 93
    %v1966 = vpop.permute.xlu0 %1965
    %vm1967 = vcmp.lt.s32.totalorder %v186, 93
    %v1968 = vsel %vm1967, %v1964, %v1966
    %v1969 = vsel %vm1967, %v1966, %v1964
    %v1970 = vstv %s1961
    %v1971 = vmul.f32 %v1970, %v1968
    %v1972 = vmul.f32 %v1970, %v1969
    %1973 = vrot.lane.b32.xlu0 %v439, 93
    %v1974 = vpop.permute.xlu0 %1973
    %1975 = vrot.lane.b32.xlu0 %v440, 93
    %v1976 = vpop.permute.xlu0 %1975
    %v1977 = vsel %vm1967, %v1974, %v1976
    %v1978 = vsel %vm1967, %v1976, %v1974
    %v1979 = vstv %s1962
    %v1980 = vmul.f32 %v1979, %v1977
    %v1981 = vmul.f32 %v1979, %v1978
    %v1982 = vadd.f32 %v1971, %v1980
    %v1983 = vadd.f32 %v1972, %v1981
    %vm1984 = vmand %vm681, %vm1762
    %v1987 = vcombine.low %v1982, %v1983
    %v1989 = vunpack.c.l.s4 1983009808
    %v1990 = vunpack.c.0.s8 %v1989
    %v1991 = vlaneseq
    %v1992 = vshrl.u32 %v1991, 7
    %v1993 = vsub.s32 %v1990, %v1992
    %v1994 = vrot.slane %v1987, %v1993
    %v1996 = vsel %vm1984, %v1994, 0.0
    %v1997 = vadd.f32 %v1960, %v1996
    %s1998 = sld [smem:[#allocation16 + $0x2a]]
    %s1999 = sld [smem:[#allocation16 + $0x5b]]
    %2000 = vrot.lane.b32.xlu0 %v421, 83
    %v2001 = vpop.permute.xlu0 %2000
    %2002 = vrot.lane.b32.xlu0 %v422, 83
    %v2003 = vpop.permute.xlu0 %2002
    %vm2004 = vcmp.lt.s32.totalorder %v186, 83
    %v2005 = vsel %vm2004, %v2001, %v2003
    %v2006 = vsel %vm2004, %v2003, %v2001
    %v2007 = vstv %s1998
    %v2008 = vmul.f32 %v2007, %v2005
    %v2009 = vmul.f32 %v2007, %v2006
    %2010 = vrot.lane.b32.xlu0 %v439, 83
    %v2011 = vpop.permute.xlu0 %2010
    %2012 = vrot.lane.b32.xlu0 %v440, 83
    %v2013 = vpop.permute.xlu0 %2012
    %v2014 = vsel %vm2004, %v2011, %v2013
    %v2015 = vsel %vm2004, %v2013, %v2011
    %v2016 = vstv %s1999
    %v2017 = vmul.f32 %v2016, %v2014
    %v2018 = vmul.f32 %v2016, %v2015
    %v2019 = vadd.f32 %v2008, %v2017
    %v2020 = vadd.f32 %v2009, %v2018
    %vm2021 = vcmp.lt.s32.totalorder %v414, 13
    %vm2022 = vmand %vm454, %vm2021
    %v2025 = vcombine.low %v2019, %v2020
    %v2027 = vunpack.c.l.s4 1983009808
    %v2028 = vunpack.c.0.s8 %v2027
    %v2029 = vlaneseq
    %v2030 = vshrl.u32 %v2029, 7
    %v2031 = vsub.s32 %v2028, %v2030
    %v2032 = vrot.slane %v2025, %v2031
    %v2034 = vsel %vm2022, %v2032, 0.0
    %v2035 = vadd.f32 %v1997, %v2034
    %s2036 = sld [smem:[#allocation16 + $0x2b]]
    %s2037 = sld [smem:[#allocation16 + $0x5c]]
    %2038 = vrot.lane.b32.xlu0 %v421, 82
    %v2039 = vpop.permute.xlu0 %2038
    %2040 = vrot.lane.b32.xlu0 %v422, 82
    %v2041 = vpop.permute.xlu0 %2040
    %vm2042 = vcmp.lt.s32.totalorder %v186, 82
    %v2043 = vsel %vm2042, %v2039, %v2041
    %v2044 = vsel %vm2042, %v2041, %v2039
    %v2045 = vstv %s2036
    %v2046 = vmul.f32 %v2045, %v2043
    %v2047 = vmul.f32 %v2045, %v2044
    %2048 = vrot.lane.b32.xlu0 %v439, 82
    %v2049 = vpop.permute.xlu0 %2048
    %2050 = vrot.lane.b32.xlu0 %v440, 82
    %v2051 = vpop.permute.xlu0 %2050
    %v2052 = vsel %vm2042, %v2049, %v2051
    %v2053 = vsel %vm2042, %v2051, %v2049
    %v2054 = vstv %s2037
    %v2055 = vmul.f32 %v2054, %v2052
    %v2056 = vmul.f32 %v2054, %v2053
    %v2057 = vadd.f32 %v2046, %v2055
    %v2058 = vadd.f32 %v2047, %v2056
    %vm2059 = vmand %vm493, %vm2021
    %v2062 = vcombine.low %v2057, %v2058
    %v2064 = vunpack.c.l.s4 1983009808
    %v2065 = vunpack.c.0.s8 %v2064
    %v2066 = vlaneseq
    %v2067 = vshrl.u32 %v2066, 7
    %v2068 = vsub.s32 %v2065, %v2067
    %v2069 = vrot.slane %v2062, %v2068
    %v2071 = vsel %vm2059, %v2069, 0.0
    %v2072 = vadd.f32 %v2035, %v2071
    %s2073 = sld [smem:[#allocation16 + $0x2c]]
    %s2074 = sld [smem:[#allocation16 + $0x5d]]
    %2075 = vrot.lane.b32.xlu0 %v421, 81
    %v2076 = vpop.permute.xlu0 %2075
    %2077 = vrot.lane.b32.xlu0 %v422, 81
    %v2078 = vpop.permute.xlu0 %2077
    %vm2079 = vcmp.lt.s32.totalorder %v186, 81
    %v2080 = vsel %vm2079, %v2076, %v2078
    %v2081 = vsel %vm2079, %v2078, %v2076
    %v2082 = vstv %s2073
    %v2083 = vmul.f32 %v2082, %v2080
    %v2084 = vmul.f32 %v2082, %v2081
    %2085 = vrot.lane.b32.xlu0 %v439, 81
    %v2086 = vpop.permute.xlu0 %2085
    %2087 = vrot.lane.b32.xlu0 %v440, 81
    %v2088 = vpop.permute.xlu0 %2087
    %v2089 = vsel %vm2079, %v2086, %v2088
    %v2090 = vsel %vm2079, %v2088, %v2086
    %v2091 = vstv %s2074
    %v2092 = vmul.f32 %v2091, %v2089
    %v2093 = vmul.f32 %v2091, %v2090
    %v2094 = vadd.f32 %v2083, %v2092
    %v2095 = vadd.f32 %v2084, %v2093
    %vm2096 = vmand %vm531, %vm2021
    %v2099 = vcombine.low %v2094, %v2095
    %v2101 = vunpack.c.l.s4 1983009808
    %v2102 = vunpack.c.0.s8 %v2101
    %v2103 = vlaneseq
    %v2104 = vshrl.u32 %v2103, 7
    %v2105 = vsub.s32 %v2102, %v2104
    %v2106 = vrot.slane %v2099, %v2105
    %v2108 = vsel %vm2096, %v2106, 0.0
    %v2109 = vadd.f32 %v2072, %v2108
    %s2110 = sld [smem:[#allocation16 + $0x2d]]
    %s2111 = sld [smem:[#allocation16 + $0x5e]]
    %2112 = vrot.lane.b32.xlu0 %v421, 80
    %v2113 = vpop.permute.xlu0 %2112
    %2114 = vrot.lane.b32.xlu0 %v422, 80
    %v2115 = vpop.permute.xlu0 %2114
    %vm2116 = vcmp.lt.s32.totalorder %v186, 80
    %v2117 = vsel %vm2116, %v2113, %v2115
    %v2118 = vsel %vm2116, %v2115, %v2113
    %v2119 = vstv %s2110
    %v2120 = vmul.f32 %v2119, %v2117
    %v2121 = vmul.f32 %v2119, %v2118
    %2122 = vrot.lane.b32.xlu0 %v439, 80
    %v2123 = vpop.permute.xlu0 %2122
    %2124 = vrot.lane.b32.xlu0 %v440, 80
    %v2125 = vpop.permute.xlu0 %2124
    %v2126 = vsel %vm2116, %v2123, %v2125
    %v2127 = vsel %vm2116, %v2125, %v2123
    %v2128 = vstv %s2111
    %v2129 = vmul.f32 %v2128, %v2126
    %v2130 = vmul.f32 %v2128, %v2127
    %v2131 = vadd.f32 %v2120, %v2129
    %v2132 = vadd.f32 %v2121, %v2130
    %v2135 = vcombine.low %v2131, %v2132
    %v2137 = vunpack.c.l.s4 1983009808
    %v2138 = vunpack.c.0.s8 %v2137
    %v2139 = vlaneseq
    %v2140 = vshrl.u32 %v2139, 7
    %v2141 = vsub.s32 %v2138, %v2140
    %v2142 = vrot.slane %v2135, %v2141
    %v2144 = vsel %vm2021, %v2142, 0.0
    %v2145 = vadd.f32 %v2109, %v2144
    %s2146 = sld [smem:[#allocation16 + $0x2e]]
    %s2147 = sld [smem:[#allocation16 + $0x5f]]
    %2148 = vrot.lane.b32.xlu0 %v421, 79
    %v2149 = vpop.permute.xlu0 %2148
    %2150 = vrot.lane.b32.xlu0 %v422, 79
    %v2151 = vpop.permute.xlu0 %2150
    %vm2152 = vcmp.lt.s32.totalorder %v186, 79
    %v2153 = vsel %vm2152, %v2149, %v2151
    %v2154 = vsel %vm2152, %v2151, %v2149
    %v2155 = vstv %s2146
    %v2156 = vmul.f32 %v2155, %v2153
    %v2157 = vmul.f32 %v2155, %v2154
    %2158 = vrot.lane.b32.xlu0 %v439, 79
    %v2159 = vpop.permute.xlu0 %2158
    %2160 = vrot.lane.b32.xlu0 %v440, 79
    %v2161 = vpop.permute.xlu0 %2160
    %v2162 = vsel %vm2152, %v2159, %v2161
    %v2163 = vsel %vm2152, %v2161, %v2159
    %v2164 = vstv %s2147
    %v2165 = vmul.f32 %v2164, %v2162
    %v2166 = vmul.f32 %v2164, %v2163
    %v2167 = vadd.f32 %v2156, %v2165
    %v2168 = vadd.f32 %v2157, %v2166
    %vm2169 = vmand %vm605, %vm2021
    %v2172 = vcombine.low %v2167, %v2168
    %v2174 = vunpack.c.l.s4 1983009808
    %v2175 = vunpack.c.0.s8 %v2174
    %v2176 = vlaneseq
    %v2177 = vshrl.u32 %v2176, 7
    %v2178 = vsub.s32 %v2175, %v2177
    %v2179 = vrot.slane %v2172, %v2178
    %v2181 = vsel %vm2169, %v2179, 0.0
    %v2182 = vadd.f32 %v2145, %v2181
    %s2183 = sld [smem:[#allocation16 + $0x2f]]
    %s2184 = sld [smem:[#allocation16 + $0x60]]
    %2185 = vrot.lane.b32.xlu0 %v421, 78
    %v2186 = vpop.permute.xlu0 %2185
    %2187 = vrot.lane.b32.xlu0 %v422, 78
    %v2188 = vpop.permute.xlu0 %2187
    %vm2189 = vcmp.lt.s32.totalorder %v186, 78
    %v2190 = vsel %vm2189, %v2186, %v2188
    %v2191 = vsel %vm2189, %v2188, %v2186
    %v2192 = vstv %s2183
    %v2193 = vmul.f32 %v2192, %v2190
    %v2194 = vmul.f32 %v2192, %v2191
    %2195 = vrot.lane.b32.xlu0 %v439, 78
    %v2196 = vpop.permute.xlu0 %2195
    %2197 = vrot.lane.b32.xlu0 %v440, 78
    %v2198 = vpop.permute.xlu0 %2197
    %v2199 = vsel %vm2189, %v2196, %v2198
    %v2200 = vsel %vm2189, %v2198, %v2196
    %v2201 = vstv %s2184
    %v2202 = vmul.f32 %v2201, %v2199
    %v2203 = vmul.f32 %v2201, %v2200
    %v2204 = vadd.f32 %v2193, %v2202
    %v2205 = vadd.f32 %v2194, %v2203
    %vm2206 = vmand %vm643, %vm2021
    %v2209 = vcombine.low %v2204, %v2205
    %v2211 = vunpack.c.l.s4 1983009808
    %v2212 = vunpack.c.0.s8 %v2211
    %v2213 = vlaneseq
    %v2214 = vshrl.u32 %v2213, 7
    %v2215 = vsub.s32 %v2212, %v2214
    %v2216 = vrot.slane %v2209, %v2215
    %v2218 = vsel %vm2206, %v2216, 0.0
    %v2219 = vadd.f32 %v2182, %v2218
    %s2220 = sld [smem:[#allocation16 + $0x30]]
    %s2221 = sld [smem:[#allocation16 + $0x61]]
    %2222 = vrot.lane.b32.xlu0 %v421, 77
    %v2223 = vpop.permute.xlu0 %2222
    %2224 = vrot.lane.b32.xlu0 %v422, 77
    %v2225 = vpop.permute.xlu0 %2224
    %vm2226 = vcmp.lt.s32.totalorder %v186, 77
    %v2227 = vsel %vm2226, %v2223, %v2225
    %v2228 = vsel %vm2226, %v2225, %v2223
    %v2229 = vstv %s2220
    %v2230 = vmul.f32 %v2229, %v2227
    %v2231 = vmul.f32 %v2229, %v2228
    %2232 = vrot.lane.b32.xlu0 %v439, 77
    %v2233 = vpop.permute.xlu0 %2232
    %2234 = vrot.lane.b32.xlu0 %v440, 77
    %v2235 = vpop.permute.xlu0 %2234
    %v2236 = vsel %vm2226, %v2233, %v2235
    %v2237 = vsel %vm2226, %v2235, %v2233
    %v2238 = vstv %s2221
    %v2239 = vmul.f32 %v2238, %v2236
    %v2240 = vmul.f32 %v2238, %v2237
    %v2241 = vadd.f32 %v2230, %v2239
    %v2242 = vadd.f32 %v2231, %v2240
    %vm2243 = vmand %vm681, %vm2021
    %v2246 = vcombine.low %v2241, %v2242
    %v2248 = vunpack.c.l.s4 1983009808
    %v2249 = vunpack.c.0.s8 %v2248
    %v2250 = vlaneseq
    %v2251 = vshrl.u32 %v2250, 7
    %v2252 = vsub.s32 %v2249, %v2251
    %v2253 = vrot.slane %v2246, %v2252
    %v2255 = vsel %vm2243, %v2253, 0.0
    %v2256 = vadd.f32 %v2219, %v2255
    %s2257 = sld [smem:[#allocation2]]
    %v2258 = vstv %s2257
    %v2259 = vadd.f32 %v2256, %v2258
    %v2262 = vunpack.c.l.s4 1983009808
    %v2263 = vunpack.c.0.s8 %v2262
    %v2264 = vlaneseq
    %v2265 = vshrl.u32 %v2264, 7
    %v2266 = vsub.s32 %v2263, %v2265
    %v2267 = vrot.slane %v2259, %v2266
    %v2268 = vcombine.high %v2267, %v2267
    %vm2271 = vcmask 1041408
    %v2272 = vsel %vm2271, %v2267, 0.0
    %v2273 = vsel %vm2271, %v2268, 0.0
    %v2274 = vadd.f32 %v2272, %v2273
    %2275 = vadd.xlane.f32.xlu0 %v2274
    %v2276 = vpop.xlane.xlu0 %2275
    %v2277 = vrot.slane %v2276, 4
    %v2278 = vadd.f32 %v2276, %v2277
    %v2279 = vrot.slane %v2278, 2
    %v2280 = vadd.f32 %v2278, %v2279
    %v2281 = vrot.slane %v2280, 1
    %v2282 = vadd.f32 %v2280, %v2281
    %s2283 = vtos %v2282
    %v2284 = vrcp.pop 512.0
    %s2285 = vtos %v2284
    %s2286 = smul.f32 %s2283, %s2285
    %v2287 = vstv %s2286
    %v2288 = vsub.f32 %v2259, %v2287
    %v2289 = vmul.f32 %v2288, %v2288
    %v2292 = vunpack.c.l.s4 1983009808
    %v2293 = vunpack.c.0.s8 %v2292
    %v2294 = vlaneseq
    %v2295 = vshrl.u32 %v2294, 7
    %v2296 = vsub.s32 %v2293, %v2295
    %v2297 = vrot.slane %v2289, %v2296
    %v2298 = vcombine.high %v2297, %v2297
    %v2301 = vsel %vm2271, %v2297, 0.0
    %v2302 = vsel %vm2271, %v2298, 0.0
    %v2303 = vadd.f32 %v2301, %v2302
    %2304 = vadd.xlane.f32.xlu0 %v2303
    %v2305 = vpop.xlane.xlu0 %2304
    %v2306 = vrot.slane %v2305, 4
    %v2307 = vadd.f32 %v2305, %v2306
    %v2308 = vrot.slane %v2307, 2
    %v2309 = vadd.f32 %v2307, %v2308
    %v2310 = vrot.slane %v2309, 1
    %v2311 = vadd.f32 %v2309, %v2310
    %s2312 = vtos %v2311
    %v2313 = vrcp.pop 512.0
    %s2314 = vtos %v2313
    %s2315 = smul.f32 %s2312, %s2314
    %s2316 = sadd.f32 %s2315, 1e-05
    %v2317 = vstv %s2316
    %v2318 = vrsqrt.pop %v2317
    %s2319 = vtos %v2318
    %v2320 = vstv %s2319
    %v2321 = vmul.f32 %v2288, %v2320
    %s2322 = sld [smem:[#allocation17]]
    %v2323 = vstv %s2322
    %v2324 = vmul.f32 %v2321, %v2323
    %s2325 = sld [smem:[#allocation17 + $0x1]]
    %v2326 = vstv %s2325
    %v2327 = vadd.f32 %v2324, %v2326
    %v2328 = vmul.f32 %v2327, 0.5
    %v2329 = vtanh.pop %v2328
    %v2330 = vmul.f32 %v2329, 0.5
    %v2331 = vadd.f32 %v2330, 0.5
    %v2332 = vlaneseq
    %v2333 = vshrl.u32 %v2332, 7
    %v2334 = vsub.s32 0, %v2333
    %v2335 = vrot.slane %v359, %v2334
    %2337 = vbcast.lane.b32.xlu0 %v2335, 256
    %v2338 = vpop.permute.xlu0 %2337
    %v2339 = vlaneseq
    %v2340 = vshrl.u32 %v2339, 7
    %v2341 = vsub.s32 1, %v2340
    %v2342 = vrot.slane %v359, %v2341
    %2344 = vbcast.lane.b32.xlu0 %v2342, 256
    %v2345 = vpop.permute.xlu0 %2344
    %v2349 = vunpack.c.l.s4 839922192
    %v2350 = vunpack.c.0.s8 %v2349
    %v2351 = vlaneseq
    %v2352 = vshrl.u32 %v2351, 7
    %v2353 = vsub.s32 %v2350, %v2352
    %v2354 = vrot.slane %v2338, %v2353
    %v2356 = vunpack.c.l.s4 839922192
    %v2357 = vunpack.c.0.s8 %v2356
    %v2358 = vlaneseq
    %v2359 = vshrl.u32 %v2358, 7
    %v2360 = vsub.s32 %v2357, %v2359
    %v2361 = vrot.slane %v2345, %v2360
    %v2364 = vmul.f32 %v141, %v2354
    %v2365 = vmul.f32 %v142, %v2361
    %v2368 = vunpack.c.l.s4 1966171168
    %v2369 = vunpack.c.0.s8 %v2368
    %v2370 = vlaneseq
    %v2371 = vshrl.u32 %v2370, 7
    %v2372 = vsub.s32 %v2369, %v2371
    %v2373 = vrot.slane %v2331, %v2372
    %v2374 = vcombine.high %v2373, %v2373
    %v2375 = vlaneseq
    %v2376 = vshrl.u32 %v2375, 7
    %v2377 = vsub.s32 0, %v2376
    %v2378 = vrot.slane %v2373, %v2377
    %v2379 = vlaneseq
    %v2380 = vshrl.u32 %v2379, 7
    %v2381 = vsub.s32 1, %v2380
    %v2382 = vrot.slane %v2373, %v2381
    %v2383 = vlaneseq
    %v2384 = vshrl.u32 %v2383, 7
    %v2385 = vsub.s32 0, %v2384
    %v2386 = vrot.slane %v2374, %v2385
    %v2387 = vlaneseq
    %v2388 = vshrl.u32 %v2387, 7
    %v2389 = vsub.s32 1, %v2388
    %v2390 = vrot.slane %v2374, %v2389
    %v2391 = vcombine.low %v2378, %v2382
    %v2392 = vcombine.low %v2386, %v2390
    %v2395 = vmul.f32 %v2364, %v2391
    %v2396 = vmul.f32 %v2365, %v2392
    %2397 = vst [vmem:[#allocation19] sm:$0xff] %v2395
    %2398 = vst [vmem:[#allocation19 + $0x8] sm:$0xff] %v2396
    // Predicated region
    $region78: #{cbam_forward.1} parent=1 // pred_check
      _
    $region79: #{cbam_forward.1} parent=1 // pred_check_branch
      %2400 = sbr.rel (0) target = $region81
    $region80: #{cbam_forward.1} parent=1 // pred_region
      %s2402 = ssub.s32 256, 256
      %2403 = vsyncadd [#allocation5], %s2402
      %s2404 = sshll.u32 [#allocation19], 4
      %s2405 = int_to_ptr.vmem [resolvable:$true] %s2404
      %2410 = dma.vmem_to_hbm [thread:$0]  %s2405, 256, %s10, [#allocation5], 128, 128, 8
    $region81: #{cbam_forward.1} parent=1 // pred_fallthru
      _
    // Predicated region
    $region82: #{cbam_forward.1} parent=1 // pred_check
      _
    $region83: #{cbam_forward.1} parent=1 // pred_check_branch
      %2412 = sbr.rel (0) target = $region85
    $region84: #{cbam_forward.1} parent=1 // pred_region
      %2413 = dma.done [#allocation5], 256
    $region85: #{cbam_forward.1} parent=1 // pred_fallthru
      _
    %2414 = vsyncpa [#allocation4], 1
    %2415 = vsyncpa [#allocation8], 1
    %2416 = vsyncpa [#allocation11], 1
    %2417 = vsyncpa [#allocation14], 1
    %2418 = vsyncpa [#allocation5], 1
    %2419 = vsyncpa [#allocation6], 1
    %2420 = vsyncpa [#allocation18], 1

</llo_original>
